<compile_context>
chip_gen: v5e
topology: v5e:2x2
jax: 0.10.0
libtpu: 0.0.40
codegen_flags: <defaults>
</compile_context>

<pallas_src>
import math
import functools

import jax
import jax.numpy as jnp
from jax.experimental import pallas as pl
from jax.experimental.pallas import tpu as pltpu

# ----------------------- small synthetic config ------------------------------
N_MELS = 16        # config.audio.n_mels
N_DIM = 32         # config.audio_encoder.n_dim
N_HEADS = 4        # config.audio_encoder.n_heads
N_DIM_HEAD = 8     # config.audio_encoder.n_dim_head
N_DIM_FFN = 64     # config.audio_encoder.n_dim_ffn
N_LAYERS = 2       # config.audio_encoder.n_layers
N_OUT = 32         # config.audio_encoder.n_output_embeddings
CONV_KERNEL = 31


# ----------------------------- in-kernel helpers -----------------------------
def _gelu(x):
    # exact (erf) GELU, matching torch.nn.GELU() default
    return 0.5 * x * (1.0 + jax.lax.erf(x * (1.0 / math.sqrt(2.0))))


def _layer_norm(x, g, b, eps=1e-5):
    mu = jnp.mean(x, axis=-1, keepdims=True)
    xc = x - mu
    var = jnp.mean(xc * xc, axis=-1, keepdims=True)
    return xc * jax.lax.rsqrt(var + eps) * g + b


# ------------------------------ ALiBi slopes ----------------------------------
def _alibi_slopes(n_heads):
    def pow2(n):
        start = 2.0 ** (-(2.0 ** -(math.log2(n) - 3)))
        return [start * (start ** i) for i in range(n)]
    if math.log2(n_heads).is_integer():
        return pow2(n_heads)
    closest = 2 ** int(math.floor(math.log2(n_heads)))
    return pow2(closest) + pow2(2 * closest)[0::2][: n_heads - closest]


# ------------------------------ fused kernel ----------------------------------
def _audio_encoder_kernel(audio_ref, mask_ref,
                          w_in_ref, w_conv_ref, vecg_ref,
                          wqkv_ref, wo_ref, vecl_ref,
                          w1_ref, b1_ref, w2_ref,
                          w_out_ref, b_out_ref,
                          o_ref, xpad_ref,
                          *, n_heads, n_dim_head, n_layers, conv_k, slopes):
    B, T, n_mels = audio_ref.shape
    D = w_in_ref.shape[1]
    HD = n_heads * n_dim_head
    BT = B * T
    pad = conv_k // 2

    vg = vecg_ref[...]                                   # (4, D)
    b_in, b_conv = vg[0:1], vg[1:2]
    oln_g, oln_b = vg[2:3], vg[3:4]

    # ---- 1) transformer_input : Linear(n_mels -> n_dim) over all B*T tokens ----
    x = jnp.dot(audio_ref[...].reshape(BT, n_mels), w_in_ref[...],
                preferred_element_type=jnp.float32) + b_in            # (BT, D)

    # ---- 2) conv_embed : depthwise Conv1d(k=31, groups=D, pad=15) + GELU, residual ----
    # Zero only the two pad halos of the VMEM scratch, then write the payload rows.
    xb = x.reshape(B, T, D)
    xpad_ref[:, :pad, :] = jnp.zeros((B, pad, D), jnp.float32)
    xpad_ref[:, pad + T:, :] = jnp.zeros((B, pad, D), jnp.float32)
    xpad_ref[:, pad:pad + T, :] = xb
    w_conv = w_conv_ref[...]                                          # (K, D)
    acc = jnp.zeros((B, T, D), jnp.float32)
    for tap in range(conv_k):                  # static unroll over 31 taps (VPU madds)
        acc = acc + xpad_ref[:, tap:tap + T, :] * w_conv[tap:tap + 1, :]
    x = (xb + _gelu(acc + b_conv)).reshape(BT, D)

    # ---- attention bias: ALiBi (constant slopes) + key padding mask, computed once ----
    qpos = jax.lax.broadcasted_iota(jnp.int32, (T, T), 0)
    kpos = jax.lax.broadcasted_iota(jnp.int32, (T, T), 1)
    dist = -jnp.abs(kpos - qpos).astype(jnp.float32)                  # (T, T)
    key_bias = (mask_ref[...] - 1.0) * 1e9                            # (B, 1, T): 0 valid, -1e9 masked
    head_bias = [jnp.float32(s) * dist + key_bias for s in slopes]    # H x (B, T, T)

    # ---- 3) transformer: pre-norm blocks ----
    for l in range(n_layers):                  # static unroll over layers
        vl = vecl_ref[l]                                              # (6, D)
        ln1_g, ln1_b = vl[0:1], vl[1:2]
        ln2_g, ln2_b = vl[2:3], vl[3:4]
        bo, b2 = vl[4:5], vl[5:6]

        # --- attention: fused QKV matmul (scale pre-folded into q weights) ---
        h = _layer_norm(x, ln1_g, ln1_b)                              # (BT, D)
        qkv = jnp.dot(h, wqkv_ref[l],
                      preferred_element_type=jnp.float32)             # (BT, 3*HD)
        qkv = qkv.reshape(B, T, 3 * HD)

        heads = []
        for hh in range(n_heads):              # scores/softmax are inherently per-head
            lo = hh * n_dim_head
            q = qkv[:, :, lo:lo + n_dim_head]                         # (B, T, dh)
            k = qkv[:, :, HD + lo:HD + lo + n_dim_head]
            v = qkv[:, :, 2 * HD + lo:2 * HD + lo + n_dim_head]
            s = jnp.einsum('bqe,bke->bqk', q, k,
                           preferred_element_type=jnp.float32) + head_bias[hh]
            s = s - jnp.max(s, axis=-1, keepdims=True)
            p = jnp.exp(s)
            p = p / jnp.sum(p, axis=-1, keepdims=True)   # exact division (torch softmax parity)
            heads.append(jnp.einsum('bqk,bke->bqe', p, v,
                                    preferred_element_type=jnp.float32))

        oh = jnp.concatenate(heads, axis=-1).reshape(BT, HD)          # (BT, H*dh)
        x = x + jnp.dot(oh, wo_ref[l], preferred_element_type=jnp.float32) + bo

        # --- FFN ---
        h2 = _layer_norm(x, ln2_g, ln2_b)
        h2 = _gelu(jnp.dot(h2, w1_ref[l], preferred_element_type=jnp.float32) + b1_ref[l])
        # TODO(synk): att_dropout / ffn_dropout=0.1 are training-time ops; inference path only.
        x = x + jnp.dot(h2, w2_ref[l], preferred_element_type=jnp.float32) + b2

    # ---- 4) final output LayerNorm + output Linear ----
    y = _layer_norm(x, oln_g, oln_b)
    y = jnp.dot(y, w_out_ref[...], preferred_element_type=jnp.float32) + b_out_ref[...]
    o_ref[...] = y.reshape(B, T, -1).astype(o_ref.dtype)


# --------------------------- parameter init / packing --------------------------
def init_params(key):
    ks = jax.random.split(key, 64)
    it = iter(ks)

    def nrm(shape, std=0.02):
        return jax.random.normal(next(it), shape, jnp.float32) * std

    inner = N_HEADS * N_DIM_HEAD
    params = {
        'w_in': nrm((N_MELS, N_DIM)), 'b_in': nrm((N_DIM,)),
        'w_conv': nrm((CONV_KERNEL, N_DIM)), 'b_conv': nrm((N_DIM,)),
        'layers': [],
        'out_ln_g': jnp.ones((N_DIM,), jnp.float32),
        'out_ln_b': jnp.zeros((N_DIM,), jnp.float32),
        'w_out': nrm((N_DIM, N_OUT)), 'b_out': nrm((N_OUT,)),
    }
    for _ in range(N_LAYERS):
        params['layers'].append({
            'ln1_g': jnp.ones((N_DIM,), jnp.float32), 'ln1_b': jnp.zeros((N_DIM,), jnp.float32),
            'wq': nrm((N_DIM, inner)), 'wk': nrm((N_DIM, inner)), 'wv': nrm((N_DIM, inner)),
            'wo': nrm((inner, N_DIM)), 'bo': jnp.zeros((N_DIM,), jnp.float32),
            'ln2_g': jnp.ones((N_DIM,), jnp.float32), 'ln2_b': jnp.zeros((N_DIM,), jnp.float32),
            'w1': nrm((N_DIM, N_DIM_FFN)), 'b1': jnp.zeros((N_DIM_FFN,), jnp.float32),
            'w2': nrm((N_DIM_FFN, N_DIM)), 'b2': jnp.zeros((N_DIM,), jnp.float32),
        })
    return params


def pack_params(params):
    """Stack per-layer params, fuse q|k|v weights (with 1/sqrt(dh) folded into q),
    and consolidate the small per-vector params into a few stacked arrays."""
    L, F = N_LAYERS, N_DIM_FFN
    lp = params['layers']
    st = lambda k: jnp.stack([l[k] for l in lp], axis=0)
    scale = 1.0 / math.sqrt(N_DIM_HEAD)
    return {
        'w_in': params['w_in'],
        'w_conv': params['w_conv'],
        # global vectors: [b_in, b_conv, out_ln_g, out_ln_b]
        'vec_glob': jnp.stack([params['b_in'], params['b_conv'],
                               params['out_ln_g'], params['out_ln_b']], axis=0),
        # fused QKV weights, attention scale folded into the q block
        'wqkv': jnp.concatenate([st('wq') * scale, st('wk'), st('wv')], axis=-1),
        'wo': st('wo'),                                   # (L, H*dh, D)
        # per-layer vectors: [ln1_g, ln1_b, ln2_g, ln2_b, bo, b2]
        'vec_layer': jnp.stack([st('ln1_g'), st('ln1_b'), st('ln2_g'),
                                st('ln2_b'), st('bo'), st('b2')], axis=1),
        'w1': st('w1'), 'b1': st('b1').reshape(L, 1, F),
        'w2': st('w2'),
        'w_out': params['w_out'],
        'b_out': params['b_out'].reshape(1, N_OUT),
    }


# ------------------------------ forward pass -----------------------------------
@jax.jit
def audio_encoder_forward(packed, audio, mask):
    B, T, _ = audio.shape
    maskf = mask.astype(jnp.float32).reshape(B, 1, T)
    kern = functools.partial(_audio_encoder_kernel, n_heads=N_HEADS,
                             n_dim_head=N_DIM_HEAD, n_layers=N_LAYERS,
                             conv_k=CONV_KERNEL,
                             slopes=tuple(_alibi_slopes(N_HEADS)))

    def full(shape):
        # single-step grid: everything is a whole-array block resident in VMEM
        return pl.BlockSpec(shape, lambda i, _n=len(shape): (0,) * _n)

    H, D, dh, F, L, K, M = (N_HEADS, N_DIM, N_DIM_HEAD, N_DIM_FFN,
                            N_LAYERS, CONV_KERNEL, N_MELS)
    HD = H * dh
    return pl.pallas_call(
        kern,
        grid=(1,),                 # whole batch per step -> (B*T)-row matmuls
        in_specs=[
            full((B, T, M)),       # audio
            full((B, 1, T)),       # mask (float, 1 = valid)
            full((M, D)),          # transformer_input weight
            full((K, D)),          # depthwise conv weight
            full((4, D)),          # [b_in, b_conv, out_ln_g, out_ln_b]
            full((L, D, 3 * HD)),  # fused q|k|v weights
            full((L, HD, D)),      # attention output projection
            full((L, 6, D)),       # [ln1_g, ln1_b, ln2_g, ln2_b, bo, b2]
            full((L, D, F)),       # ffn w1
            full((L, 1, F)),       # ffn b1
            full((L, F, D)),       # ffn w2
            full((D, N_OUT)),      # output Linear weight
            full((1, N_OUT)),      # output Linear bias
        ],
        out_specs=full((B, T, N_OUT)),
        out_shape=jax.ShapeDtypeStruct((B, T, N_OUT), jnp.float32),
        scratch_shapes=[pltpu.VMEM((B, T + K - 1, D), jnp.float32)],  # padded conv input
        compiler_params=pltpu.CompilerParams(
            dimension_semantics=("arbitrary",),
            vmem_limit_bytes=32 * 1024 * 1024),
    )(audio, maskf,
      packed['w_in'], packed['w_conv'], packed['vec_glob'],
      packed['wqkv'], packed['wo'], packed['vec_layer'],
      packed['w1'], packed['b1'], packed['w2'],
      packed['w_out'], packed['b_out'])


if __name__ == "__main__":
    key = jax.random.PRNGKey(0)
    kp, ka = jax.random.split(key, 2)
    params = init_params(kp)
    packed = pack_params(params)

    B, T = 2, 16
    audio = jax.random.normal(ka, (B, T, N_MELS), jnp.float32)
    lengths = jnp.array([16, 12], jnp.int32)
    mask = jnp.arange(T)[None, :] < lengths[:, None]     # (B, T) bool, True = valid frame

    out = audio_encoder_forward(packed, audio, mask)
    jax.block_until_ready(out)
    assert out.shape == (B, T, N_OUT) and out.dtype == jnp.float32
    print("KERNEL_OK")
</pallas_src>

<mosaic_0001>
module attributes {stable_mosaic.version = 11 : i64} {
  func.func @_audio_encoder_kernel(%arg0: i32, %arg1: memref<2x16x16xf32, #tpu.memory_space<vmem>>, %arg2: memref<2x1x16xf32, #tpu.memory_space<vmem>>, %arg3: memref<16x32xf32, #tpu.memory_space<vmem>>, %arg4: memref<31x32xf32, #tpu.memory_space<vmem>>, %arg5: memref<4x32xf32, #tpu.memory_space<vmem>>, %arg6: memref<2x32x96xf32, #tpu.memory_space<vmem>>, %arg7: memref<2x32x32xf32, #tpu.memory_space<vmem>>, %arg8: memref<2x6x32xf32, #tpu.memory_space<vmem>>, %arg9: memref<2x32x64xf32, #tpu.memory_space<vmem>>, %arg10: memref<2x1x64xf32, #tpu.memory_space<vmem>>, %arg11: memref<2x64x32xf32, #tpu.memory_space<vmem>>, %arg12: memref<32x32xf32, #tpu.memory_space<vmem>>, %arg13: memref<1x32xf32, #tpu.memory_space<vmem>>, %arg14: memref<2x16x32xf32, #tpu.memory_space<vmem>>, %arg15: memref<2x46x32xf32, #tpu.memory_space<vmem>>) attributes {dimension_semantics = [#tpu.dimension_semantics<arbitrary>], iteration_bounds = array<i64: 1>, scalar_prefetch = 0 : i64, scratch_operands = 1 : i64, tpu.core_type = #tpu.core_type<tc>, window_params = [{pipeline_mode = #tpu.pipeline_mode<synchronous>, transform_indices = @transform_0, window_bounds = array<i64: 2, 16, 16>}, {pipeline_mode = #tpu.pipeline_mode<synchronous>, transform_indices = @transform_1, window_bounds = array<i64: 2, 1, 16>}, {pipeline_mode = #tpu.pipeline_mode<synchronous>, transform_indices = @transform_2, window_bounds = array<i64: 16, 32>}, {pipeline_mode = #tpu.pipeline_mode<synchronous>, transform_indices = @transform_3, window_bounds = array<i64: 31, 32>}, {pipeline_mode = #tpu.pipeline_mode<synchronous>, transform_indices = @transform_4, window_bounds = array<i64: 4, 32>}, {pipeline_mode = #tpu.pipeline_mode<synchronous>, transform_indices = @transform_5, window_bounds = array<i64: 2, 32, 96>}, {pipeline_mode = #tpu.pipeline_mode<synchronous>, transform_indices = @transform_6, window_bounds = array<i64: 2, 32, 32>}, {pipeline_mode = #tpu.pipeline_mode<synchronous>, transform_indices = @transform_7, window_bounds = array<i64: 2, 6, 32>}, {pipeline_mode = #tpu.pipeline_mode<synchronous>, transform_indices = @transform_8, window_bounds = array<i64: 2, 32, 64>}, {pipeline_mode = #tpu.pipeline_mode<synchronous>, transform_indices = @transform_9, window_bounds = array<i64: 2, 1, 64>}, {pipeline_mode = #tpu.pipeline_mode<synchronous>, transform_indices = @transform_10, window_bounds = array<i64: 2, 64, 32>}, {pipeline_mode = #tpu.pipeline_mode<synchronous>, transform_indices = @transform_11, window_bounds = array<i64: 32, 32>}, {pipeline_mode = #tpu.pipeline_mode<synchronous>, transform_indices = @transform_12, window_bounds = array<i64: 1, 32>}, {pipeline_mode = #tpu.pipeline_mode<synchronous>, transform_indices = @transform_13, window_bounds = array<i64: 2, 16, 32>}]} {
    %c0 = arith.constant 0 : index
    %c0_0 = arith.constant 0 : index
    %0 = vector.load %arg5[%c0, %c0_0] : memref<4x32xf32, #tpu.memory_space<vmem>>, vector<4x32xf32>
    %1 = vector.extract_strided_slice %0 {offsets = [0, 0], sizes = [1, 32], strides = [1, 1]} : vector<4x32xf32> to vector<1x32xf32>
    %2 = vector.extract_strided_slice %0 {offsets = [1, 0], sizes = [1, 32], strides = [1, 1]} : vector<4x32xf32> to vector<1x32xf32>
    %3 = vector.extract_strided_slice %0 {offsets = [2, 0], sizes = [1, 32], strides = [1, 1]} : vector<4x32xf32> to vector<1x32xf32>
    %4 = vector.extract_strided_slice %0 {offsets = [3, 0], sizes = [1, 32], strides = [1, 1]} : vector<4x32xf32> to vector<1x32xf32>
    %c0_1 = arith.constant 0 : index
    %c0_2 = arith.constant 0 : index
    %c0_3 = arith.constant 0 : index
    %5 = vector.load %arg1[%c0_1, %c0_2, %c0_3] : memref<2x16x16xf32, #tpu.memory_space<vmem>>, vector<2x16x16xf32>
    %6 = vector.shape_cast %5 : vector<2x16x16xf32> to vector<32x16xf32>
    %c0_4 = arith.constant 0 : index
    %c0_5 = arith.constant 0 : index
    %7 = vector.load %arg3[%c0_4, %c0_5] : memref<16x32xf32, #tpu.memory_space<vmem>>, vector<16x32xf32>
    %cst = arith.constant dense<0.000000e+00> : vector<32x32xf32>
    %8 = tpu.matmul %6, %7, %cst {dimension_numbers = #tpu.dot_dimension_numbers<[1], [0], [0], [1], [0, 0, 1, 1], [], []>} : vector<32x16xf32>, vector<16x32xf32>, vector<32x32xf32> -> vector<32x32xf32>
    %9 = vector.broadcast %1 : vector<1x32xf32> to vector<32x32xf32>
    %10 = arith.addf %8, %9 : vector<32x32xf32>
    %11 = vector.shape_cast %10 : vector<32x32xf32> to vector<2x16x32xf32>
    %cst_6 = arith.constant 0.000000e+00 : f32
    %12 = vector.broadcast %cst_6 : f32 to vector<2x15x32xf32>
    %c0_7 = arith.constant 0 : index
    %c0_8 = arith.constant 0 : index
    %c0_9 = arith.constant 0 : index
    %13 = vector.load %arg15[%c0_7, %c0_8, %c0_9] : memref<2x46x32xf32, #tpu.memory_space<vmem>>, vector<2x15x32xf32>
    tpu.vector_store %arg15[%c0_7, %c0_8, %c0_9], %12 {strides = array<i32>} : memref<2x46x32xf32, #tpu.memory_space<vmem>>, vector<2x15x32xf32>,
    %cst_10 = arith.constant 0.000000e+00 : f32
    %14 = vector.broadcast %cst_10 : f32 to vector<2x15x32xf32>
    %c0_11 = arith.constant 0 : index
    %c31 = arith.constant 31 : index
    %c0_12 = arith.constant 0 : index
    %15 = vector.load %arg15[%c0_11, %c31, %c0_12] : memref<2x46x32xf32, #tpu.memory_space<vmem>>, vector<2x15x32xf32>
    tpu.vector_store %arg15[%c0_11, %c31, %c0_12], %14 {strides = array<i32>} : memref<2x46x32xf32, #tpu.memory_space<vmem>>, vector<2x15x32xf32>,
    %c0_13 = arith.constant 0 : index
    %c15 = arith.constant 15 : index
    %c0_14 = arith.constant 0 : index
    %16 = vector.load %arg15[%c0_13, %c15, %c0_14] : memref<2x46x32xf32, #tpu.memory_space<vmem>>, vector<2x16x32xf32>
    tpu.vector_store %arg15[%c0_13, %c15, %c0_14], %11 {strides = array<i32>} : memref<2x46x32xf32, #tpu.memory_space<vmem>>, vector<2x16x32xf32>,
    %c0_15 = arith.constant 0 : index
    %c0_16 = arith.constant 0 : index
    %17 = vector.load %arg4[%c0_15, %c0_16] : memref<31x32xf32, #tpu.memory_space<vmem>>, vector<31x32xf32>
    %cst_17 = arith.constant 0.000000e+00 : f32
    %18 = vector.broadcast %cst_17 : f32 to vector<2x16x32xf32>
    %c0_18 = arith.constant 0 : index
    %c0_19 = arith.constant 0 : index
    %c0_20 = arith.constant 0 : index
    %19 = vector.load %arg15[%c0_18, %c0_19, %c0_20] : memref<2x46x32xf32, #tpu.memory_space<vmem>>, vector<2x16x32xf32>
    %20 = vector.extract_strided_slice %17 {offsets = [0, 0], sizes = [1, 32], strides = [1, 1]} : vector<31x32xf32> to vector<1x32xf32>
    %21 = vector.shape_cast %20 : vector<1x32xf32> to vector<1x1x32xf32>
    %22 = vector.broadcast %21 : vector<1x1x32xf32> to vector<2x16x32xf32>
    %23 = arith.mulf %19, %22 : vector<2x16x32xf32>
    %24 = arith.addf %18, %23 : vector<2x16x32xf32>
    %c0_21 = arith.constant 0 : index
    %c1 = arith.constant 1 : index
    %c0_22 = arith.constant 0 : index
    %25 = vector.load %arg15[%c0_21, %c1, %c0_22] : memref<2x46x32xf32, #tpu.memory_space<vmem>>, vector<2x16x32xf32>
    %26 = vector.extract_strided_slice %17 {offsets = [1, 0], sizes = [1, 32], strides = [1, 1]} : vector<31x32xf32> to vector<1x32xf32>
    %27 = vector.shape_cast %26 : vector<1x32xf32> to vector<1x1x32xf32>
    %28 = vector.broadcast %27 : vector<1x1x32xf32> to vector<2x16x32xf32>
    %29 = arith.mulf %25, %28 : vector<2x16x32xf32>
    %30 = arith.addf %24, %29 : vector<2x16x32xf32>
    %c0_23 = arith.constant 0 : index
    %c2 = arith.constant 2 : index
    %c0_24 = arith.constant 0 : index
    %31 = vector.load %arg15[%c0_23, %c2, %c0_24] : memref<2x46x32xf32, #tpu.memory_space<vmem>>, vector<2x16x32xf32>
    %32 = vector.extract_strided_slice %17 {offsets = [2, 0], sizes = [1, 32], strides = [1, 1]} : vector<31x32xf32> to vector<1x32xf32>
    %33 = vector.shape_cast %32 : vector<1x32xf32> to vector<1x1x32xf32>
    %34 = vector.broadcast %33 : vector<1x1x32xf32> to vector<2x16x32xf32>
    %35 = arith.mulf %31, %34 : vector<2x16x32xf32>
    %36 = arith.addf %30, %35 : vector<2x16x32xf32>
    %c0_25 = arith.constant 0 : index
    %c3 = arith.constant 3 : index
    %c0_26 = arith.constant 0 : index
    %37 = vector.load %arg15[%c0_25, %c3, %c0_26] : memref<2x46x32xf32, #tpu.memory_space<vmem>>, vector<2x16x32xf32>
    %38 = vector.extract_strided_slice %17 {offsets = [3, 0], sizes = [1, 32], strides = [1, 1]} : vector<31x32xf32> to vector<1x32xf32>
    %39 = vector.shape_cast %38 : vector<1x32xf32> to vector<1x1x32xf32>
    %40 = vector.broadcast %39 : vector<1x1x32xf32> to vector<2x16x32xf32>
    %41 = arith.mulf %37, %40 : vector<2x16x32xf32>
    %42 = arith.addf %36, %41 : vector<2x16x32xf32>
    %c0_27 = arith.constant 0 : index
    %c4 = arith.constant 4 : index
    %c0_28 = arith.constant 0 : index
    %43 = vector.load %arg15[%c0_27, %c4, %c0_28] : memref<2x46x32xf32, #tpu.memory_space<vmem>>, vector<2x16x32xf32>
    %44 = vector.extract_strided_slice %17 {offsets = [4, 0], sizes = [1, 32], strides = [1, 1]} : vector<31x32xf32> to vector<1x32xf32>
    %45 = vector.shape_cast %44 : vector<1x32xf32> to vector<1x1x32xf32>
    %46 = vector.broadcast %45 : vector<1x1x32xf32> to vector<2x16x32xf32>
    %47 = arith.mulf %43, %46 : vector<2x16x32xf32>
    %48 = arith.addf %42, %47 : vector<2x16x32xf32>
    %c0_29 = arith.constant 0 : index
    %c5 = arith.constant 5 : index
    %c0_30 = arith.constant 0 : index
    %49 = vector.load %arg15[%c0_29, %c5, %c0_30] : memref<2x46x32xf32, #tpu.memory_space<vmem>>, vector<2x16x32xf32>
    %50 = vector.extract_strided_slice %17 {offsets = [5, 0], sizes = [1, 32], strides = [1, 1]} : vector<31x32xf32> to vector<1x32xf32>
    %51 = vector.shape_cast %50 : vector<1x32xf32> to vector<1x1x32xf32>
    %52 = vector.broadcast %51 : vector<1x1x32xf32> to vector<2x16x32xf32>
    %53 = arith.mulf %49, %52 : vector<2x16x32xf32>
    %54 = arith.addf %48, %53 : vector<2x16x32xf32>
    %c0_31 = arith.constant 0 : index
    %c6 = arith.constant 6 : index
    %c0_32 = arith.constant 0 : index
    %55 = vector.load %arg15[%c0_31, %c6, %c0_32] : memref<2x46x32xf32, #tpu.memory_space<vmem>>, vector<2x16x32xf32>
    %56 = vector.extract_strided_slice %17 {offsets = [6, 0], sizes = [1, 32], strides = [1, 1]} : vector<31x32xf32> to vector<1x32xf32>
    %57 = vector.shape_cast %56 : vector<1x32xf32> to vector<1x1x32xf32>
    %58 = vector.broadcast %57 : vector<1x1x32xf32> to vector<2x16x32xf32>
    %59 = arith.mulf %55, %58 : vector<2x16x32xf32>
    %60 = arith.addf %54, %59 : vector<2x16x32xf32>
    %c0_33 = arith.constant 0 : index
    %c7 = arith.constant 7 : index
    %c0_34 = arith.constant 0 : index
    %61 = vector.load %arg15[%c0_33, %c7, %c0_34] : memref<2x46x32xf32, #tpu.memory_space<vmem>>, vector<2x16x32xf32>
    %62 = vector.extract_strided_slice %17 {offsets = [7, 0], sizes = [1, 32], strides = [1, 1]} : vector<31x32xf32> to vector<1x32xf32>
    %63 = vector.shape_cast %62 : vector<1x32xf32> to vector<1x1x32xf32>
    %64 = vector.broadcast %63 : vector<1x1x32xf32> to vector<2x16x32xf32>
    %65 = arith.mulf %61, %64 : vector<2x16x32xf32>
    %66 = arith.addf %60, %65 : vector<2x16x32xf32>
    %c0_35 = arith.constant 0 : index
    %c8 = arith.constant 8 : index
    %c0_36 = arith.constant 0 : index
    %67 = vector.load %arg15[%c0_35, %c8, %c0_36] : memref<2x46x32xf32, #tpu.memory_space<vmem>>, vector<2x16x32xf32>
    %68 = vector.extract_strided_slice %17 {offsets = [8, 0], sizes = [1, 32], strides = [1, 1]} : vector<31x32xf32> to vector<1x32xf32>
    %69 = vector.shape_cast %68 : vector<1x32xf32> to vector<1x1x32xf32>
    %70 = vector.broadcast %69 : vector<1x1x32xf32> to vector<2x16x32xf32>
    %71 = arith.mulf %67, %70 : vector<2x16x32xf32>
    %72 = arith.addf %66, %71 : vector<2x16x32xf32>
    %c0_37 = arith.constant 0 : index
    %c9 = arith.constant 9 : index
    %c0_38 = arith.constant 0 : index
    %73 = vector.load %arg15[%c0_37, %c9, %c0_38] : memref<2x46x32xf32, #tpu.memory_space<vmem>>, vector<2x16x32xf32>
    %74 = vector.extract_strided_slice %17 {offsets = [9, 0], sizes = [1, 32], strides = [1, 1]} : vector<31x32xf32> to vector<1x32xf32>
    %75 = vector.shape_cast %74 : vector<1x32xf32> to vector<1x1x32xf32>
    %76 = vector.broadcast %75 : vector<1x1x32xf32> to vector<2x16x32xf32>
    %77 = arith.mulf %73, %76 : vector<2x16x32xf32>
    %78 = arith.addf %72, %77 : vector<2x16x32xf32>
    %c0_39 = arith.constant 0 : index
    %c10 = arith.constant 10 : index
    %c0_40 = arith.constant 0 : index
    %79 = vector.load %arg15[%c0_39, %c10, %c0_40] : memref<2x46x32xf32, #tpu.memory_space<vmem>>, vector<2x16x32xf32>
    %80 = vector.extract_strided_slice %17 {offsets = [10, 0], sizes = [1, 32], strides = [1, 1]} : vector<31x32xf32> to vector<1x32xf32>
    %81 = vector.shape_cast %80 : vector<1x32xf32> to vector<1x1x32xf32>
    %82 = vector.broadcast %81 : vector<1x1x32xf32> to vector<2x16x32xf32>
    %83 = arith.mulf %79, %82 : vector<2x16x32xf32>
    %84 = arith.addf %78, %83 : vector<2x16x32xf32>
    %c0_41 = arith.constant 0 : index
    %c11 = arith.constant 11 : index
    %c0_42 = arith.constant 0 : index
    %85 = vector.load %arg15[%c0_41, %c11, %c0_42] : memref<2x46x32xf32, #tpu.memory_space<vmem>>, vector<2x16x32xf32>
    %86 = vector.extract_strided_slice %17 {offsets = [11, 0], sizes = [1, 32], strides = [1, 1]} : vector<31x32xf32> to vector<1x32xf32>
    %87 = vector.shape_cast %86 : vector<1x32xf32> to vector<1x1x32xf32>
    %88 = vector.broadcast %87 : vector<1x1x32xf32> to vector<2x16x32xf32>
    %89 = arith.mulf %85, %88 : vector<2x16x32xf32>
    %90 = arith.addf %84, %89 : vector<2x16x32xf32>
    %c0_43 = arith.constant 0 : index
    %c12 = arith.constant 12 : index
    %c0_44 = arith.constant 0 : index
    %91 = vector.load %arg15[%c0_43, %c12, %c0_44] : memref<2x46x32xf32, #tpu.memory_space<vmem>>, vector<2x16x32xf32>
    %92 = vector.extract_strided_slice %17 {offsets = [12, 0], sizes = [1, 32], strides = [1, 1]} : vector<31x32xf32> to vector<1x32xf32>
    %93 = vector.shape_cast %92 : vector<1x32xf32> to vector<1x1x32xf32>
    %94 = vector.broadcast %93 : vector<1x1x32xf32> to vector<2x16x32xf32>
    %95 = arith.mulf %91, %94 : vector<2x16x32xf32>
    %96 = arith.addf %90, %95 : vector<2x16x32xf32>
    %c0_45 = arith.constant 0 : index
    %c13 = arith.constant 13 : index
    %c0_46 = arith.constant 0 : index
    %97 = vector.load %arg15[%c0_45, %c13, %c0_46] : memref<2x46x32xf32, #tpu.memory_space<vmem>>, vector<2x16x32xf32>
    %98 = vector.extract_strided_slice %17 {offsets = [13, 0], sizes = [1, 32], strides = [1, 1]} : vector<31x32xf32> to vector<1x32xf32>
    %99 = vector.shape_cast %98 : vector<1x32xf32> to vector<1x1x32xf32>
    %100 = vector.broadcast %99 : vector<1x1x32xf32> to vector<2x16x32xf32>
    %101 = arith.mulf %97, %100 : vector<2x16x32xf32>
    %102 = arith.addf %96, %101 : vector<2x16x32xf32>
    %c0_47 = arith.constant 0 : index
    %c14 = arith.constant 14 : index
    %c0_48 = arith.constant 0 : index
    %103 = vector.load %arg15[%c0_47, %c14, %c0_48] : memref<2x46x32xf32, #tpu.memory_space<vmem>>, vector<2x16x32xf32>
    %104 = vector.extract_strided_slice %17 {offsets = [14, 0], sizes = [1, 32], strides = [1, 1]} : vector<31x32xf32> to vector<1x32xf32>
    %105 = vector.shape_cast %104 : vector<1x32xf32> to vector<1x1x32xf32>
    %106 = vector.broadcast %105 : vector<1x1x32xf32> to vector<2x16x32xf32>
    %107 = arith.mulf %103, %106 : vector<2x16x32xf32>
    %108 = arith.addf %102, %107 : vector<2x16x32xf32>
    %c0_49 = arith.constant 0 : index
    %c15_50 = arith.constant 15 : index
    %c0_51 = arith.constant 0 : index
    %109 = vector.load %arg15[%c0_49, %c15_50, %c0_51] : memref<2x46x32xf32, #tpu.memory_space<vmem>>, vector<2x16x32xf32>
    %110 = vector.extract_strided_slice %17 {offsets = [15, 0], sizes = [1, 32], strides = [1, 1]} : vector<31x32xf32> to vector<1x32xf32>
    %111 = vector.shape_cast %110 : vector<1x32xf32> to vector<1x1x32xf32>
    %112 = vector.broadcast %111 : vector<1x1x32xf32> to vector<2x16x32xf32>
    %113 = arith.mulf %109, %112 : vector<2x16x32xf32>
    %114 = arith.addf %108, %113 : vector<2x16x32xf32>
    %c0_52 = arith.constant 0 : index
    %c16 = arith.constant 16 : index
    %c0_53 = arith.constant 0 : index
    %115 = vector.load %arg15[%c0_52, %c16, %c0_53] : memref<2x46x32xf32, #tpu.memory_space<vmem>>, vector<2x16x32xf32>
    %116 = vector.extract_strided_slice %17 {offsets = [16, 0], sizes = [1, 32], strides = [1, 1]} : vector<31x32xf32> to vector<1x32xf32>
    %117 = vector.shape_cast %116 : vector<1x32xf32> to vector<1x1x32xf32>
    %118 = vector.broadcast %117 : vector<1x1x32xf32> to vector<2x16x32xf32>
    %119 = arith.mulf %115, %118 : vector<2x16x32xf32>
    %120 = arith.addf %114, %119 : vector<2x16x32xf32>
    %c0_54 = arith.constant 0 : index
    %c17 = arith.constant 17 : index
    %c0_55 = arith.constant 0 : index
    %121 = vector.load %arg15[%c0_54, %c17, %c0_55] : memref<2x46x32xf32, #tpu.memory_space<vmem>>, vector<2x16x32xf32>
    %122 = vector.extract_strided_slice %17 {offsets = [17, 0], sizes = [1, 32], strides = [1, 1]} : vector<31x32xf32> to vector<1x32xf32>
    %123 = vector.shape_cast %122 : vector<1x32xf32> to vector<1x1x32xf32>
    %124 = vector.broadcast %123 : vector<1x1x32xf32> to vector<2x16x32xf32>
    %125 = arith.mulf %121, %124 : vector<2x16x32xf32>
    %126 = arith.addf %120, %125 : vector<2x16x32xf32>
    %c0_56 = arith.constant 0 : index
    %c18 = arith.constant 18 : index
    %c0_57 = arith.constant 0 : index
    %127 = vector.load %arg15[%c0_56, %c18, %c0_57] : memref<2x46x32xf32, #tpu.memory_space<vmem>>, vector<2x16x32xf32>
    %128 = vector.extract_strided_slice %17 {offsets = [18, 0], sizes = [1, 32], strides = [1, 1]} : vector<31x32xf32> to vector<1x32xf32>
    %129 = vector.shape_cast %128 : vector<1x32xf32> to vector<1x1x32xf32>
    %130 = vector.broadcast %129 : vector<1x1x32xf32> to vector<2x16x32xf32>
    %131 = arith.mulf %127, %130 : vector<2x16x32xf32>
    %132 = arith.addf %126, %131 : vector<2x16x32xf32>
    %c0_58 = arith.constant 0 : index
    %c19 = arith.constant 19 : index
    %c0_59 = arith.constant 0 : index
    %133 = vector.load %arg15[%c0_58, %c19, %c0_59] : memref<2x46x32xf32, #tpu.memory_space<vmem>>, vector<2x16x32xf32>
    %134 = vector.extract_strided_slice %17 {offsets = [19, 0], sizes = [1, 32], strides = [1, 1]} : vector<31x32xf32> to vector<1x32xf32>
    %135 = vector.shape_cast %134 : vector<1x32xf32> to vector<1x1x32xf32>
    %136 = vector.broadcast %135 : vector<1x1x32xf32> to vector<2x16x32xf32>
    %137 = arith.mulf %133, %136 : vector<2x16x32xf32>
    %138 = arith.addf %132, %137 : vector<2x16x32xf32>
    %c0_60 = arith.constant 0 : index
    %c20 = arith.constant 20 : index
    %c0_61 = arith.constant 0 : index
    %139 = vector.load %arg15[%c0_60, %c20, %c0_61] : memref<2x46x32xf32, #tpu.memory_space<vmem>>, vector<2x16x32xf32>
    %140 = vector.extract_strided_slice %17 {offsets = [20, 0], sizes = [1, 32], strides = [1, 1]} : vector<31x32xf32> to vector<1x32xf32>
    %141 = vector.shape_cast %140 : vector<1x32xf32> to vector<1x1x32xf32>
    %142 = vector.broadcast %141 : vector<1x1x32xf32> to vector<2x16x32xf32>
    %143 = arith.mulf %139, %142 : vector<2x16x32xf32>
    %144 = arith.addf %138, %143 : vector<2x16x32xf32>
    %c0_62 = arith.constant 0 : index
    %c21 = arith.constant 21 : index
    %c0_63 = arith.constant 0 : index
    %145 = vector.load %arg15[%c0_62, %c21, %c0_63] : memref<2x46x32xf32, #tpu.memory_space<vmem>>, vector<2x16x32xf32>
    %146 = vector.extract_strided_slice %17 {offsets = [21, 0], sizes = [1, 32], strides = [1, 1]} : vector<31x32xf32> to vector<1x32xf32>
    %147 = vector.shape_cast %146 : vector<1x32xf32> to vector<1x1x32xf32>
    %148 = vector.broadcast %147 : vector<1x1x32xf32> to vector<2x16x32xf32>
    %149 = arith.mulf %145, %148 : vector<2x16x32xf32>
    %150 = arith.addf %144, %149 : vector<2x16x32xf32>
    %c0_64 = arith.constant 0 : index
    %c22 = arith.constant 22 : index
    %c0_65 = arith.constant 0 : index
    %151 = vector.load %arg15[%c0_64, %c22, %c0_65] : memref<2x46x32xf32, #tpu.memory_space<vmem>>, vector<2x16x32xf32>
    %152 = vector.extract_strided_slice %17 {offsets = [22, 0], sizes = [1, 32], strides = [1, 1]} : vector<31x32xf32> to vector<1x32xf32>
    %153 = vector.shape_cast %152 : vector<1x32xf32> to vector<1x1x32xf32>
    %154 = vector.broadcast %153 : vector<1x1x32xf32> to vector<2x16x32xf32>
    %155 = arith.mulf %151, %154 : vector<2x16x32xf32>
    %156 = arith.addf %150, %155 : vector<2x16x32xf32>
    %c0_66 = arith.constant 0 : index
    %c23 = arith.constant 23 : index
    %c0_67 = arith.constant 0 : index
    %157 = vector.load %arg15[%c0_66, %c23, %c0_67] : memref<2x46x32xf32, #tpu.memory_space<vmem>>, vector<2x16x32xf32>
    %158 = vector.extract_strided_slice %17 {offsets = [23, 0], sizes = [1, 32], strides = [1, 1]} : vector<31x32xf32> to vector<1x32xf32>
    %159 = vector.shape_cast %158 : vector<1x32xf32> to vector<1x1x32xf32>
    %160 = vector.broadcast %159 : vector<1x1x32xf32> to vector<2x16x32xf32>
    %161 = arith.mulf %157, %160 : vector<2x16x32xf32>
    %162 = arith.addf %156, %161 : vector<2x16x32xf32>
    %c0_68 = arith.constant 0 : index
    %c24 = arith.constant 24 : index
    %c0_69 = arith.constant 0 : index
    %163 = vector.load %arg15[%c0_68, %c24, %c0_69] : memref<2x46x32xf32, #tpu.memory_space<vmem>>, vector<2x16x32xf32>
    %164 = vector.extract_strided_slice %17 {offsets = [24, 0], sizes = [1, 32], strides = [1, 1]} : vector<31x32xf32> to vector<1x32xf32>
    %165 = vector.shape_cast %164 : vector<1x32xf32> to vector<1x1x32xf32>
    %166 = vector.broadcast %165 : vector<1x1x32xf32> to vector<2x16x32xf32>
    %167 = arith.mulf %163, %166 : vector<2x16x32xf32>
    %168 = arith.addf %162, %167 : vector<2x16x32xf32>
    %c0_70 = arith.constant 0 : index
    %c25 = arith.constant 25 : index
    %c0_71 = arith.constant 0 : index
    %169 = vector.load %arg15[%c0_70, %c25, %c0_71] : memref<2x46x32xf32, #tpu.memory_space<vmem>>, vector<2x16x32xf32>
    %170 = vector.extract_strided_slice %17 {offsets = [25, 0], sizes = [1, 32], strides = [1, 1]} : vector<31x32xf32> to vector<1x32xf32>
    %171 = vector.shape_cast %170 : vector<1x32xf32> to vector<1x1x32xf32>
    %172 = vector.broadcast %171 : vector<1x1x32xf32> to vector<2x16x32xf32>
    %173 = arith.mulf %169, %172 : vector<2x16x32xf32>
    %174 = arith.addf %168, %173 : vector<2x16x32xf32>
    %c0_72 = arith.constant 0 : index
    %c26 = arith.constant 26 : index
    %c0_73 = arith.constant 0 : index
    %175 = vector.load %arg15[%c0_72, %c26, %c0_73] : memref<2x46x32xf32, #tpu.memory_space<vmem>>, vector<2x16x32xf32>
    %176 = vector.extract_strided_slice %17 {offsets = [26, 0], sizes = [1, 32], strides = [1, 1]} : vector<31x32xf32> to vector<1x32xf32>
    %177 = vector.shape_cast %176 : vector<1x32xf32> to vector<1x1x32xf32>
    %178 = vector.broadcast %177 : vector<1x1x32xf32> to vector<2x16x32xf32>
    %179 = arith.mulf %175, %178 : vector<2x16x32xf32>
    %180 = arith.addf %174, %179 : vector<2x16x32xf32>
    %c0_74 = arith.constant 0 : index
    %c27 = arith.constant 27 : index
    %c0_75 = arith.constant 0 : index
    %181 = vector.load %arg15[%c0_74, %c27, %c0_75] : memref<2x46x32xf32, #tpu.memory_space<vmem>>, vector<2x16x32xf32>
    %182 = vector.extract_strided_slice %17 {offsets = [27, 0], sizes = [1, 32], strides = [1, 1]} : vector<31x32xf32> to vector<1x32xf32>
    %183 = vector.shape_cast %182 : vector<1x32xf32> to vector<1x1x32xf32>
    %184 = vector.broadcast %183 : vector<1x1x32xf32> to vector<2x16x32xf32>
    %185 = arith.mulf %181, %184 : vector<2x16x32xf32>
    %186 = arith.addf %180, %185 : vector<2x16x32xf32>
    %c0_76 = arith.constant 0 : index
    %c28 = arith.constant 28 : index
    %c0_77 = arith.constant 0 : index
    %187 = vector.load %arg15[%c0_76, %c28, %c0_77] : memref<2x46x32xf32, #tpu.memory_space<vmem>>, vector<2x16x32xf32>
    %188 = vector.extract_strided_slice %17 {offsets = [28, 0], sizes = [1, 32], strides = [1, 1]} : vector<31x32xf32> to vector<1x32xf32>
    %189 = vector.shape_cast %188 : vector<1x32xf32> to vector<1x1x32xf32>
    %190 = vector.broadcast %189 : vector<1x1x32xf32> to vector<2x16x32xf32>
    %191 = arith.mulf %187, %190 : vector<2x16x32xf32>
    %192 = arith.addf %186, %191 : vector<2x16x32xf32>
    %c0_78 = arith.constant 0 : index
    %c29 = arith.constant 29 : index
    %c0_79 = arith.constant 0 : index
    %193 = vector.load %arg15[%c0_78, %c29, %c0_79] : memref<2x46x32xf32, #tpu.memory_space<vmem>>, vector<2x16x32xf32>
    %194 = vector.extract_strided_slice %17 {offsets = [29, 0], sizes = [1, 32], strides = [1, 1]} : vector<31x32xf32> to vector<1x32xf32>
    %195 = vector.shape_cast %194 : vector<1x32xf32> to vector<1x1x32xf32>
    %196 = vector.broadcast %195 : vector<1x1x32xf32> to vector<2x16x32xf32>
    %197 = arith.mulf %193, %196 : vector<2x16x32xf32>
    %198 = arith.addf %192, %197 : vector<2x16x32xf32>
    %c0_80 = arith.constant 0 : index
    %c30 = arith.constant 30 : index
    %c0_81 = arith.constant 0 : index
    %199 = vector.load %arg15[%c0_80, %c30, %c0_81] : memref<2x46x32xf32, #tpu.memory_space<vmem>>, vector<2x16x32xf32>
    %200 = vector.extract_strided_slice %17 {offsets = [30, 0], sizes = [1, 32], strides = [1, 1]} : vector<31x32xf32> to vector<1x32xf32>
    %201 = vector.shape_cast %200 : vector<1x32xf32> to vector<1x1x32xf32>
    %202 = vector.broadcast %201 : vector<1x1x32xf32> to vector<2x16x32xf32>
    %203 = arith.mulf %199, %202 : vector<2x16x32xf32>
    %204 = arith.addf %198, %203 : vector<2x16x32xf32>
    %205 = vector.shape_cast %2 : vector<1x32xf32> to vector<1x1x32xf32>
    %206 = vector.broadcast %205 : vector<1x1x32xf32> to vector<2x16x32xf32>
    %207 = arith.addf %204, %206 : vector<2x16x32xf32>
    %cst_82 = arith.constant 5.000000e-01 : f32
    %208 = vector.broadcast %cst_82 : f32 to vector<2x16x32xf32>
    %209 = arith.mulf %208, %207 : vector<2x16x32xf32>
    %cst_83 = arith.constant 0.707106769 : f32
    %210 = vector.broadcast %cst_83 : f32 to vector<2x16x32xf32>
    %211 = arith.mulf %207, %210 : vector<2x16x32xf32>
    %212 = math.erf %211 : vector<2x16x32xf32>
    %cst_84 = arith.constant 1.000000e+00 : f32
    %213 = vector.broadcast %cst_84 : f32 to vector<2x16x32xf32>
    %214 = arith.addf %213, %212 : vector<2x16x32xf32>
    %215 = arith.mulf %209, %214 : vector<2x16x32xf32>
    %216 = arith.addf %11, %215 : vector<2x16x32xf32>
    %217 = vector.shape_cast %216 : vector<2x16x32xf32> to vector<32x32xf32>
    %218 = tpu.iota {dimensions = array<i32: 0>} : vector<16x16xi32>
    %219 = tpu.iota {dimensions = array<i32: 1>} : vector<16x16xi32>
    %220 = arith.subi %219, %218 : vector<16x16xi32>
    %221 = math.absi %220 : vector<16x16xi32>
    %222 = arith.sitofp %221 : vector<16x16xi32> to vector<16x16xf32>
    %cst_85 = arith.constant 0.000000e+00 : f32
    %223 = vector.broadcast %cst_85 : f32 to vector<16x16xf32>
    %224 = arith.subf %223, %222 : vector<16x16xf32>
    %c0_86 = arith.constant 0 : index
    %c0_87 = arith.constant 0 : index
    %c0_88 = arith.constant 0 : index
    %225 = vector.load %arg2[%c0_86, %c0_87, %c0_88] : memref<2x1x16xf32, #tpu.memory_space<vmem>>, vector<2x1x16xf32>
    %cst_89 = arith.constant 1.000000e+00 : f32
    %226 = vector.broadcast %cst_89 : f32 to vector<2x1x16xf32>
    %227 = arith.subf %225, %226 : vector<2x1x16xf32>
    %cst_90 = arith.constant 1.000000e+09 : f32
    %228 = vector.broadcast %cst_90 : f32 to vector<2x1x16xf32>
    %229 = arith.mulf %227, %228 : vector<2x1x16xf32>
    %cst_91 = arith.constant 2.500000e-01 : f32
    %230 = vector.broadcast %cst_91 : f32 to vector<16x16xf32>
    %231 = arith.mulf %230, %224 : vector<16x16xf32>
    %232 = vector.shape_cast %231 : vector<16x16xf32> to vector<1x16x16xf32>
    %233 = vector.broadcast %232 : vector<1x16x16xf32> to vector<2x16x16xf32>
    %234 = vector.broadcast %229 : vector<2x1x16xf32> to vector<2x16x16xf32>
    %235 = arith.addf %233, %234 : vector<2x16x16xf32>
    %cst_92 = arith.constant 6.250000e-02 : f32
    %236 = vector.broadcast %cst_92 : f32 to vector<16x16xf32>
    %237 = arith.mulf %236, %224 : vector<16x16xf32>
    %238 = vector.shape_cast %237 : vector<16x16xf32> to vector<1x16x16xf32>
    %239 = vector.broadcast %238 : vector<1x16x16xf32> to vector<2x16x16xf32>
    %240 = vector.broadcast %229 : vector<2x1x16xf32> to vector<2x16x16xf32>
    %241 = arith.addf %239, %240 : vector<2x16x16xf32>
    %cst_93 = arith.constant 1.562500e-02 : f32
    %242 = vector.broadcast %cst_93 : f32 to vector<16x16xf32>
    %243 = arith.mulf %242, %224 : vector<16x16xf32>
    %244 = vector.shape_cast %243 : vector<16x16xf32> to vector<1x16x16xf32>
    %245 = vector.broadcast %244 : vector<1x16x16xf32> to vector<2x16x16xf32>
    %246 = vector.broadcast %229 : vector<2x1x16xf32> to vector<2x16x16xf32>
    %247 = arith.addf %245, %246 : vector<2x16x16xf32>
    %cst_94 = arith.constant 3.906250e-03 : f32
    %248 = vector.broadcast %cst_94 : f32 to vector<16x16xf32>
    %249 = arith.mulf %248, %224 : vector<16x16xf32>
    %250 = vector.shape_cast %249 : vector<16x16xf32> to vector<1x16x16xf32>
    %251 = vector.broadcast %250 : vector<1x16x16xf32> to vector<2x16x16xf32>
    %252 = vector.broadcast %229 : vector<2x1x16xf32> to vector<2x16x16xf32>
    %253 = arith.addf %251, %252 : vector<2x16x16xf32>
    %c0_95 = arith.constant 0 : index
    %c0_96 = arith.constant 0 : index
    %c0_97 = arith.constant 0 : index
    %254 = vector.load %arg8[%c0_95, %c0_96, %c0_97] : memref<2x6x32xf32, #tpu.memory_space<vmem>>, vector<1x6x32xf32>
    %255 = vector.shape_cast %254 : vector<1x6x32xf32> to vector<6x32xf32>
    %256 = vector.extract_strided_slice %255 {offsets = [0, 0], sizes = [1, 32], strides = [1, 1]} : vector<6x32xf32> to vector<1x32xf32>
    %257 = vector.extract_strided_slice %255 {offsets = [1, 0], sizes = [1, 32], strides = [1, 1]} : vector<6x32xf32> to vector<1x32xf32>
    %258 = vector.extract_strided_slice %255 {offsets = [2, 0], sizes = [1, 32], strides = [1, 1]} : vector<6x32xf32> to vector<1x32xf32>
    %259 = vector.extract_strided_slice %255 {offsets = [3, 0], sizes = [1, 32], strides = [1, 1]} : vector<6x32xf32> to vector<1x32xf32>
    %260 = vector.extract_strided_slice %255 {offsets = [4, 0], sizes = [1, 32], strides = [1, 1]} : vector<6x32xf32> to vector<1x32xf32>
    %261 = vector.extract_strided_slice %255 {offsets = [5, 0], sizes = [1, 32], strides = [1, 1]} : vector<6x32xf32> to vector<1x32xf32>
    %cst_98 = arith.constant dense<0.000000e+00> : vector<32xf32>
    %262 = vector.multi_reduction <add>, %217, %cst_98 [1] : vector<32x32xf32> to vector<32xf32>
    %263 = vector.shape_cast %262 : vector<32xf32> to vector<32x1xf32>
    %cst_99 = arith.constant 3.200000e+01 : f32
    %264 = vector.broadcast %cst_99 : f32 to vector<32x1xf32>
    %265 = arith.divf %263, %264 : vector<32x1xf32>
    %266 = vector.broadcast %265 : vector<32x1xf32> to vector<32x32xf32>
    %267 = arith.subf %217, %266 : vector<32x32xf32>
    %268 = arith.mulf %267, %267 : vector<32x32xf32>
    %cst_100 = arith.constant dense<0.000000e+00> : vector<32xf32>
    %269 = vector.multi_reduction <add>, %268, %cst_100 [1] : vector<32x32xf32> to vector<32xf32>
    %270 = vector.shape_cast %269 : vector<32xf32> to vector<32x1xf32>
    %cst_101 = arith.constant 3.200000e+01 : f32
    %271 = vector.broadcast %cst_101 : f32 to vector<32x1xf32>
    %272 = arith.divf %270, %271 : vector<32x1xf32>
    %cst_102 = arith.constant 9.99999974E-6 : f32
    %273 = vector.broadcast %cst_102 : f32 to vector<32x1xf32>
    %274 = arith.addf %272, %273 : vector<32x1xf32>
    %275 = math.rsqrt %274 : vector<32x1xf32>
    %276 = vector.broadcast %275 : vector<32x1xf32> to vector<32x32xf32>
    %277 = arith.mulf %267, %276 : vector<32x32xf32>
    %278 = vector.broadcast %256 : vector<1x32xf32> to vector<32x32xf32>
    %279 = arith.mulf %277, %278 : vector<32x32xf32>
    %280 = vector.broadcast %257 : vector<1x32xf32> to vector<32x32xf32>
    %281 = arith.addf %279, %280 : vector<32x32xf32>
    %c0_103 = arith.constant 0 : index
    %c0_104 = arith.constant 0 : index
    %c0_105 = arith.constant 0 : index
    %282 = vector.load %arg6[%c0_103, %c0_104, %c0_105] : memref<2x32x96xf32, #tpu.memory_space<vmem>>, vector<1x32x96xf32>
    %283 = vector.shape_cast %282 : vector<1x32x96xf32> to vector<32x96xf32>
    %cst_106 = arith.constant dense<0.000000e+00> : vector<32x96xf32>
    %284 = tpu.matmul %281, %283, %cst_106 {dimension_numbers = #tpu.dot_dimension_numbers<[1], [0], [0], [1], [0, 0, 1, 1], [], []>} : vector<32x32xf32>, vector<32x96xf32>, vector<32x96xf32> -> vector<32x96xf32>
    %285 = vector.shape_cast %284 : vector<32x96xf32> to vector<2x16x96xf32>
    %286 = vector.extract_strided_slice %285 {offsets = [0, 0, 0], sizes = [2, 16, 8], strides = [1, 1, 1]} : vector<2x16x96xf32> to vector<2x16x8xf32>
    %287 = vector.extract_strided_slice %285 {offsets = [0, 0, 32], sizes = [2, 16, 8], strides = [1, 1, 1]} : vector<2x16x96xf32> to vector<2x16x8xf32>
    %288 = vector.extract_strided_slice %285 {offsets = [0, 0, 64], sizes = [2, 16, 8], strides = [1, 1, 1]} : vector<2x16x96xf32> to vector<2x16x8xf32>
    "tpu.trace_start"() <{level = 10 : i32, message = "bqe,bke->bqk"}> : () -> ()
    %cst_107 = arith.constant dense<0.000000e+00> : vector<2x16x16xf32>
    %289 = tpu.matmul %286, %287, %cst_107 {dimension_numbers = #tpu.dot_dimension_numbers<[2], [2], [1], [1], [0, 0, 0, 1, 1, 1], [0], [0]>} : vector<2x16x8xf32>, vector<2x16x8xf32>, vector<2x16x16xf32> -> vector<2x16x16xf32>
    "tpu.trace_stop"() : () -> ()
    %290 = arith.addf %289, %235 : vector<2x16x16xf32>
    %cst_108 = arith.constant dense<0xFF800000> : vector<2x16xf32>
    %291 = vector.multi_reduction <maximumf>, %290, %cst_108 [2] : vector<2x16x16xf32> to vector<2x16xf32>
    %292 = vector.shape_cast %291 : vector<2x16xf32> to vector<2x16x1xf32>
    %293 = vector.broadcast %292 : vector<2x16x1xf32> to vector<2x16x16xf32>
    %294 = arith.subf %290, %293 : vector<2x16x16xf32>
    %295 = math.exp %294 : vector<2x16x16xf32>
    %cst_109 = arith.constant dense<0.000000e+00> : vector<2x16xf32>
    %296 = vector.multi_reduction <add>, %295, %cst_109 [2] : vector<2x16x16xf32> to vector<2x16xf32>
    %297 = vector.shape_cast %296 : vector<2x16xf32> to vector<2x16x1xf32>
    %298 = vector.broadcast %297 : vector<2x16x1xf32> to vector<2x16x16xf32>
    %299 = arith.divf %295, %298 : vector<2x16x16xf32>
    "tpu.trace_start"() <{level = 10 : i32, message = "bqk,bke->bqe"}> : () -> ()
    %cst_110 = arith.constant dense<0.000000e+00> : vector<2x16x8xf32>
    %300 = tpu.matmul %299, %288, %cst_110 {dimension_numbers = #tpu.dot_dimension_numbers<[2], [1], [1], [2], [0, 0, 0, 1, 1, 2], [0], [0]>} : vector<2x16x16xf32>, vector<2x16x8xf32>, vector<2x16x8xf32> -> vector<2x16x8xf32>
    "tpu.trace_stop"() : () -> ()
    %301 = vector.extract_strided_slice %285 {offsets = [0, 0, 8], sizes = [2, 16, 8], strides = [1, 1, 1]} : vector<2x16x96xf32> to vector<2x16x8xf32>
    %302 = vector.extract_strided_slice %285 {offsets = [0, 0, 40], sizes = [2, 16, 8], strides = [1, 1, 1]} : vector<2x16x96xf32> to vector<2x16x8xf32>
    %303 = vector.extract_strided_slice %285 {offsets = [0, 0, 72], sizes = [2, 16, 8], strides = [1, 1, 1]} : vector<2x16x96xf32> to vector<2x16x8xf32>
    "tpu.trace_start"() <{level = 10 : i32, message = "bqe,bke->bqk"}> : () -> ()
    %cst_111 = arith.constant dense<0.000000e+00> : vector<2x16x16xf32>
    %304 = tpu.matmul %301, %302, %cst_111 {dimension_numbers = #tpu.dot_dimension_numbers<[2], [2], [1], [1], [0, 0, 0, 1, 1, 1], [0], [0]>} : vector<2x16x8xf32>, vector<2x16x8xf32>, vector<2x16x16xf32> -> vector<2x16x16xf32>
    "tpu.trace_stop"() : () -> ()
    %305 = arith.addf %304, %241 : vector<2x16x16xf32>
    %cst_112 = arith.constant dense<0xFF800000> : vector<2x16xf32>
    %306 = vector.multi_reduction <maximumf>, %305, %cst_112 [2] : vector<2x16x16xf32> to vector<2x16xf32>
    %307 = vector.shape_cast %306 : vector<2x16xf32> to vector<2x16x1xf32>
    %308 = vector.broadcast %307 : vector<2x16x1xf32> to vector<2x16x16xf32>
    %309 = arith.subf %305, %308 : vector<2x16x16xf32>
    %310 = math.exp %309 : vector<2x16x16xf32>
    %cst_113 = arith.constant dense<0.000000e+00> : vector<2x16xf32>
    %311 = vector.multi_reduction <add>, %310, %cst_113 [2] : vector<2x16x16xf32> to vector<2x16xf32>
    %312 = vector.shape_cast %311 : vector<2x16xf32> to vector<2x16x1xf32>
    %313 = vector.broadcast %312 : vector<2x16x1xf32> to vector<2x16x16xf32>
    %314 = arith.divf %310, %313 : vector<2x16x16xf32>
    "tpu.trace_start"() <{level = 10 : i32, message = "bqk,bke->bqe"}> : () -> ()
    %cst_114 = arith.constant dense<0.000000e+00> : vector<2x16x8xf32>
    %315 = tpu.matmul %314, %303, %cst_114 {dimension_numbers = #tpu.dot_dimension_numbers<[2], [1], [1], [2], [0, 0, 0, 1, 1, 2], [0], [0]>} : vector<2x16x16xf32>, vector<2x16x8xf32>, vector<2x16x8xf32> -> vector<2x16x8xf32>
    "tpu.trace_stop"() : () -> ()
    %316 = vector.extract_strided_slice %285 {offsets = [0, 0, 16], sizes = [2, 16, 8], strides = [1, 1, 1]} : vector<2x16x96xf32> to vector<2x16x8xf32>
    %317 = vector.extract_strided_slice %285 {offsets = [0, 0, 48], sizes = [2, 16, 8], strides = [1, 1, 1]} : vector<2x16x96xf32> to vector<2x16x8xf32>
    %318 = vector.extract_strided_slice %285 {offsets = [0, 0, 80], sizes = [2, 16, 8], strides = [1, 1, 1]} : vector<2x16x96xf32> to vector<2x16x8xf32>
    "tpu.trace_start"() <{level = 10 : i32, message = "bqe,bke->bqk"}> : () -> ()
    %cst_115 = arith.constant dense<0.000000e+00> : vector<2x16x16xf32>
    %319 = tpu.matmul %316, %317, %cst_115 {dimension_numbers = #tpu.dot_dimension_numbers<[2], [2], [1], [1], [0, 0, 0, 1, 1, 1], [0], [0]>} : vector<2x16x8xf32>, vector<2x16x8xf32>, vector<2x16x16xf32> -> vector<2x16x16xf32>
    "tpu.trace_stop"() : () -> ()
    %320 = arith.addf %319, %247 : vector<2x16x16xf32>
    %cst_116 = arith.constant dense<0xFF800000> : vector<2x16xf32>
    %321 = vector.multi_reduction <maximumf>, %320, %cst_116 [2] : vector<2x16x16xf32> to vector<2x16xf32>
    %322 = vector.shape_cast %321 : vector<2x16xf32> to vector<2x16x1xf32>
    %323 = vector.broadcast %322 : vector<2x16x1xf32> to vector<2x16x16xf32>
    %324 = arith.subf %320, %323 : vector<2x16x16xf32>
    %325 = math.exp %324 : vector<2x16x16xf32>
    %cst_117 = arith.constant dense<0.000000e+00> : vector<2x16xf32>
    %326 = vector.multi_reduction <add>, %325, %cst_117 [2] : vector<2x16x16xf32> to vector<2x16xf32>
    %327 = vector.shape_cast %326 : vector<2x16xf32> to vector<2x16x1xf32>
    %328 = vector.broadcast %327 : vector<2x16x1xf32> to vector<2x16x16xf32>
    %329 = arith.divf %325, %328 : vector<2x16x16xf32>
    "tpu.trace_start"() <{level = 10 : i32, message = "bqk,bke->bqe"}> : () -> ()
    %cst_118 = arith.constant dense<0.000000e+00> : vector<2x16x8xf32>
    %330 = tpu.matmul %329, %318, %cst_118 {dimension_numbers = #tpu.dot_dimension_numbers<[2], [1], [1], [2], [0, 0, 0, 1, 1, 2], [0], [0]>} : vector<2x16x16xf32>, vector<2x16x8xf32>, vector<2x16x8xf32> -> vector<2x16x8xf32>
    "tpu.trace_stop"() : () -> ()
    %331 = vector.extract_strided_slice %285 {offsets = [0, 0, 24], sizes = [2, 16, 8], strides = [1, 1, 1]} : vector<2x16x96xf32> to vector<2x16x8xf32>
    %332 = vector.extract_strided_slice %285 {offsets = [0, 0, 56], sizes = [2, 16, 8], strides = [1, 1, 1]} : vector<2x16x96xf32> to vector<2x16x8xf32>
    %333 = vector.extract_strided_slice %285 {offsets = [0, 0, 88], sizes = [2, 16, 8], strides = [1, 1, 1]} : vector<2x16x96xf32> to vector<2x16x8xf32>
    "tpu.trace_start"() <{level = 10 : i32, message = "bqe,bke->bqk"}> : () -> ()
    %cst_119 = arith.constant dense<0.000000e+00> : vector<2x16x16xf32>
    %334 = tpu.matmul %331, %332, %cst_119 {dimension_numbers = #tpu.dot_dimension_numbers<[2], [2], [1], [1], [0, 0, 0, 1, 1, 1], [0], [0]>} : vector<2x16x8xf32>, vector<2x16x8xf32>, vector<2x16x16xf32> -> vector<2x16x16xf32>
    "tpu.trace_stop"() : () -> ()
    %335 = arith.addf %334, %253 : vector<2x16x16xf32>
    %cst_120 = arith.constant dense<0xFF800000> : vector<2x16xf32>
    %336 = vector.multi_reduction <maximumf>, %335, %cst_120 [2] : vector<2x16x16xf32> to vector<2x16xf32>
    %337 = vector.shape_cast %336 : vector<2x16xf32> to vector<2x16x1xf32>
    %338 = vector.broadcast %337 : vector<2x16x1xf32> to vector<2x16x16xf32>
    %339 = arith.subf %335, %338 : vector<2x16x16xf32>
    %340 = math.exp %339 : vector<2x16x16xf32>
    %cst_121 = arith.constant dense<0.000000e+00> : vector<2x16xf32>
    %341 = vector.multi_reduction <add>, %340, %cst_121 [2] : vector<2x16x16xf32> to vector<2x16xf32>
    %342 = vector.shape_cast %341 : vector<2x16xf32> to vector<2x16x1xf32>
    %343 = vector.broadcast %342 : vector<2x16x1xf32> to vector<2x16x16xf32>
    %344 = arith.divf %340, %343 : vector<2x16x16xf32>
    "tpu.trace_start"() <{level = 10 : i32, message = "bqk,bke->bqe"}> : () -> ()
    %cst_122 = arith.constant dense<0.000000e+00> : vector<2x16x8xf32>
    %345 = tpu.matmul %344, %333, %cst_122 {dimension_numbers = #tpu.dot_dimension_numbers<[2], [1], [1], [2], [0, 0, 0, 1, 1, 2], [0], [0]>} : vector<2x16x16xf32>, vector<2x16x8xf32>, vector<2x16x8xf32> -> vector<2x16x8xf32>
    "tpu.trace_stop"() : () -> ()
    %346 = tpu.concatenate %300, %315, %330, %345 in 2 : vector<2x16x8xf32>, vector<2x16x8xf32>, vector<2x16x8xf32>, vector<2x16x8xf32> -> vector<2x16x32xf32>
    %347 = vector.shape_cast %346 : vector<2x16x32xf32> to vector<32x32xf32>
    %c0_123 = arith.constant 0 : index
    %c0_124 = arith.constant 0 : index
    %c0_125 = arith.constant 0 : index
    %348 = vector.load %arg7[%c0_123, %c0_124, %c0_125] : memref<2x32x32xf32, #tpu.memory_space<vmem>>, vector<1x32x32xf32>
    %349 = vector.shape_cast %348 : vector<1x32x32xf32> to vector<32x32xf32>
    %cst_126 = arith.constant dense<0.000000e+00> : vector<32x32xf32>
    %350 = tpu.matmul %347, %349, %cst_126 {dimension_numbers = #tpu.dot_dimension_numbers<[1], [0], [0], [1], [0, 0, 1, 1], [], []>} : vector<32x32xf32>, vector<32x32xf32>, vector<32x32xf32> -> vector<32x32xf32>
    %351 = arith.addf %217, %350 : vector<32x32xf32>
    %352 = vector.broadcast %260 : vector<1x32xf32> to vector<32x32xf32>
    %353 = arith.addf %351, %352 : vector<32x32xf32>
    %cst_127 = arith.constant dense<0.000000e+00> : vector<32xf32>
    %354 = vector.multi_reduction <add>, %353, %cst_127 [1] : vector<32x32xf32> to vector<32xf32>
    %355 = vector.shape_cast %354 : vector<32xf32> to vector<32x1xf32>
    %cst_128 = arith.constant 3.200000e+01 : f32
    %356 = vector.broadcast %cst_128 : f32 to vector<32x1xf32>
    %357 = arith.divf %355, %356 : vector<32x1xf32>
    %358 = vector.broadcast %357 : vector<32x1xf32> to vector<32x32xf32>
    %359 = arith.subf %353, %358 : vector<32x32xf32>
    %360 = arith.mulf %359, %359 : vector<32x32xf32>
    %cst_129 = arith.constant dense<0.000000e+00> : vector<32xf32>
    %361 = vector.multi_reduction <add>, %360, %cst_129 [1] : vector<32x32xf32> to vector<32xf32>
    %362 = vector.shape_cast %361 : vector<32xf32> to vector<32x1xf32>
    %cst_130 = arith.constant 3.200000e+01 : f32
    %363 = vector.broadcast %cst_130 : f32 to vector<32x1xf32>
    %364 = arith.divf %362, %363 : vector<32x1xf32>
    %cst_131 = arith.constant 9.99999974E-6 : f32
    %365 = vector.broadcast %cst_131 : f32 to vector<32x1xf32>
    %366 = arith.addf %364, %365 : vector<32x1xf32>
    %367 = math.rsqrt %366 : vector<32x1xf32>
    %368 = vector.broadcast %367 : vector<32x1xf32> to vector<32x32xf32>
    %369 = arith.mulf %359, %368 : vector<32x32xf32>
    %370 = vector.broadcast %258 : vector<1x32xf32> to vector<32x32xf32>
    %371 = arith.mulf %369, %370 : vector<32x32xf32>
    %372 = vector.broadcast %259 : vector<1x32xf32> to vector<32x32xf32>
    %373 = arith.addf %371, %372 : vector<32x32xf32>
    %c0_132 = arith.constant 0 : index
    %c0_133 = arith.constant 0 : index
    %c0_134 = arith.constant 0 : index
    %374 = vector.load %arg9[%c0_132, %c0_133, %c0_134] : memref<2x32x64xf32, #tpu.memory_space<vmem>>, vector<1x32x64xf32>
    %375 = vector.shape_cast %374 : vector<1x32x64xf32> to vector<32x64xf32>
    %cst_135 = arith.constant dense<0.000000e+00> : vector<32x64xf32>
    %376 = tpu.matmul %373, %375, %cst_135 {dimension_numbers = #tpu.dot_dimension_numbers<[1], [0], [0], [1], [0, 0, 1, 1], [], []>} : vector<32x32xf32>, vector<32x64xf32>, vector<32x64xf32> -> vector<32x64xf32>
    %c0_136 = arith.constant 0 : index
    %c0_137 = arith.constant 0 : index
    %c0_138 = arith.constant 0 : index
    %377 = vector.load %arg10[%c0_136, %c0_137, %c0_138] : memref<2x1x64xf32, #tpu.memory_space<vmem>>, vector<1x1x64xf32>
    %378 = vector.shape_cast %377 : vector<1x1x64xf32> to vector<1x64xf32>
    %379 = vector.broadcast %378 : vector<1x64xf32> to vector<32x64xf32>
    %380 = arith.addf %376, %379 : vector<32x64xf32>
    %cst_139 = arith.constant 5.000000e-01 : f32
    %381 = vector.broadcast %cst_139 : f32 to vector<32x64xf32>
    %382 = arith.mulf %381, %380 : vector<32x64xf32>
    %cst_140 = arith.constant 0.707106769 : f32
    %383 = vector.broadcast %cst_140 : f32 to vector<32x64xf32>
    %384 = arith.mulf %380, %383 : vector<32x64xf32>
    %385 = math.erf %384 : vector<32x64xf32>
    %cst_141 = arith.constant 1.000000e+00 : f32
    %386 = vector.broadcast %cst_141 : f32 to vector<32x64xf32>
    %387 = arith.addf %386, %385 : vector<32x64xf32>
    %388 = arith.mulf %382, %387 : vector<32x64xf32>
    %c0_142 = arith.constant 0 : index
    %c0_143 = arith.constant 0 : index
    %c0_144 = arith.constant 0 : index
    %389 = vector.load %arg11[%c0_142, %c0_143, %c0_144] : memref<2x64x32xf32, #tpu.memory_space<vmem>>, vector<1x64x32xf32>
    %390 = vector.shape_cast %389 : vector<1x64x32xf32> to vector<64x32xf32>
    %cst_145 = arith.constant dense<0.000000e+00> : vector<32x32xf32>
    %391 = tpu.matmul %388, %390, %cst_145 {dimension_numbers = #tpu.dot_dimension_numbers<[1], [0], [0], [1], [0, 0, 1, 1], [], []>} : vector<32x64xf32>, vector<64x32xf32>, vector<32x32xf32> -> vector<32x32xf32>
    %392 = arith.addf %353, %391 : vector<32x32xf32>
    %393 = vector.broadcast %261 : vector<1x32xf32> to vector<32x32xf32>
    %394 = arith.addf %392, %393 : vector<32x32xf32>
    %c1_146 = arith.constant 1 : index
    %c0_147 = arith.constant 0 : index
    %c0_148 = arith.constant 0 : index
    %395 = vector.load %arg8[%c1_146, %c0_147, %c0_148] : memref<2x6x32xf32, #tpu.memory_space<vmem>>, vector<1x6x32xf32>
    %396 = vector.shape_cast %395 : vector<1x6x32xf32> to vector<6x32xf32>
    %397 = vector.extract_strided_slice %396 {offsets = [0, 0], sizes = [1, 32], strides = [1, 1]} : vector<6x32xf32> to vector<1x32xf32>
    %398 = vector.extract_strided_slice %396 {offsets = [1, 0], sizes = [1, 32], strides = [1, 1]} : vector<6x32xf32> to vector<1x32xf32>
    %399 = vector.extract_strided_slice %396 {offsets = [2, 0], sizes = [1, 32], strides = [1, 1]} : vector<6x32xf32> to vector<1x32xf32>
    %400 = vector.extract_strided_slice %396 {offsets = [3, 0], sizes = [1, 32], strides = [1, 1]} : vector<6x32xf32> to vector<1x32xf32>
    %401 = vector.extract_strided_slice %396 {offsets = [4, 0], sizes = [1, 32], strides = [1, 1]} : vector<6x32xf32> to vector<1x32xf32>
    %402 = vector.extract_strided_slice %396 {offsets = [5, 0], sizes = [1, 32], strides = [1, 1]} : vector<6x32xf32> to vector<1x32xf32>
    %cst_149 = arith.constant dense<0.000000e+00> : vector<32xf32>
    %403 = vector.multi_reduction <add>, %394, %cst_149 [1] : vector<32x32xf32> to vector<32xf32>
    %404 = vector.shape_cast %403 : vector<32xf32> to vector<32x1xf32>
    %cst_150 = arith.constant 3.200000e+01 : f32
    %405 = vector.broadcast %cst_150 : f32 to vector<32x1xf32>
    %406 = arith.divf %404, %405 : vector<32x1xf32>
    %407 = vector.broadcast %406 : vector<32x1xf32> to vector<32x32xf32>
    %408 = arith.subf %394, %407 : vector<32x32xf32>
    %409 = arith.mulf %408, %408 : vector<32x32xf32>
    %cst_151 = arith.constant dense<0.000000e+00> : vector<32xf32>
    %410 = vector.multi_reduction <add>, %409, %cst_151 [1] : vector<32x32xf32> to vector<32xf32>
    %411 = vector.shape_cast %410 : vector<32xf32> to vector<32x1xf32>
    %cst_152 = arith.constant 3.200000e+01 : f32
    %412 = vector.broadcast %cst_152 : f32 to vector<32x1xf32>
    %413 = arith.divf %411, %412 : vector<32x1xf32>
    %cst_153 = arith.constant 9.99999974E-6 : f32
    %414 = vector.broadcast %cst_153 : f32 to vector<32x1xf32>
    %415 = arith.addf %413, %414 : vector<32x1xf32>
    %416 = math.rsqrt %415 : vector<32x1xf32>
    %417 = vector.broadcast %416 : vector<32x1xf32> to vector<32x32xf32>
    %418 = arith.mulf %408, %417 : vector<32x32xf32>
    %419 = vector.broadcast %397 : vector<1x32xf32> to vector<32x32xf32>
    %420 = arith.mulf %418, %419 : vector<32x32xf32>
    %421 = vector.broadcast %398 : vector<1x32xf32> to vector<32x32xf32>
    %422 = arith.addf %420, %421 : vector<32x32xf32>
    %c1_154 = arith.constant 1 : index
    %c0_155 = arith.constant 0 : index
    %c0_156 = arith.constant 0 : index
    %423 = vector.load %arg6[%c1_154, %c0_155, %c0_156] : memref<2x32x96xf32, #tpu.memory_space<vmem>>, vector<1x32x96xf32>
    %424 = vector.shape_cast %423 : vector<1x32x96xf32> to vector<32x96xf32>
    %cst_157 = arith.constant dense<0.000000e+00> : vector<32x96xf32>
    %425 = tpu.matmul %422, %424, %cst_157 {dimension_numbers = #tpu.dot_dimension_numbers<[1], [0], [0], [1], [0, 0, 1, 1], [], []>} : vector<32x32xf32>, vector<32x96xf32>, vector<32x96xf32> -> vector<32x96xf32>
    %426 = vector.shape_cast %425 : vector<32x96xf32> to vector<2x16x96xf32>
    %427 = vector.extract_strided_slice %426 {offsets = [0, 0, 0], sizes = [2, 16, 8], strides = [1, 1, 1]} : vector<2x16x96xf32> to vector<2x16x8xf32>
    %428 = vector.extract_strided_slice %426 {offsets = [0, 0, 32], sizes = [2, 16, 8], strides = [1, 1, 1]} : vector<2x16x96xf32> to vector<2x16x8xf32>
    %429 = vector.extract_strided_slice %426 {offsets = [0, 0, 64], sizes = [2, 16, 8], strides = [1, 1, 1]} : vector<2x16x96xf32> to vector<2x16x8xf32>
    "tpu.trace_start"() <{level = 10 : i32, message = "bqe,bke->bqk"}> : () -> ()
    %cst_158 = arith.constant dense<0.000000e+00> : vector<2x16x16xf32>
    %430 = tpu.matmul %427, %428, %cst_158 {dimension_numbers = #tpu.dot_dimension_numbers<[2], [2], [1], [1], [0, 0, 0, 1, 1, 1], [0], [0]>} : vector<2x16x8xf32>, vector<2x16x8xf32>, vector<2x16x16xf32> -> vector<2x16x16xf32>
    "tpu.trace_stop"() : () -> ()
    %431 = arith.addf %430, %235 : vector<2x16x16xf32>
    %cst_159 = arith.constant dense<0xFF800000> : vector<2x16xf32>
    %432 = vector.multi_reduction <maximumf>, %431, %cst_159 [2] : vector<2x16x16xf32> to vector<2x16xf32>
    %433 = vector.shape_cast %432 : vector<2x16xf32> to vector<2x16x1xf32>
    %434 = vector.broadcast %433 : vector<2x16x1xf32> to vector<2x16x16xf32>
    %435 = arith.subf %431, %434 : vector<2x16x16xf32>
    %436 = math.exp %435 : vector<2x16x16xf32>
    %cst_160 = arith.constant dense<0.000000e+00> : vector<2x16xf32>
    %437 = vector.multi_reduction <add>, %436, %cst_160 [2] : vector<2x16x16xf32> to vector<2x16xf32>
    %438 = vector.shape_cast %437 : vector<2x16xf32> to vector<2x16x1xf32>
    %439 = vector.broadcast %438 : vector<2x16x1xf32> to vector<2x16x16xf32>
    %440 = arith.divf %436, %439 : vector<2x16x16xf32>
    "tpu.trace_start"() <{level = 10 : i32, message = "bqk,bke->bqe"}> : () -> ()
    %cst_161 = arith.constant dense<0.000000e+00> : vector<2x16x8xf32>
    %441 = tpu.matmul %440, %429, %cst_161 {dimension_numbers = #tpu.dot_dimension_numbers<[2], [1], [1], [2], [0, 0, 0, 1, 1, 2], [0], [0]>} : vector<2x16x16xf32>, vector<2x16x8xf32>, vector<2x16x8xf32> -> vector<2x16x8xf32>
    "tpu.trace_stop"() : () -> ()
    %442 = vector.extract_strided_slice %426 {offsets = [0, 0, 8], sizes = [2, 16, 8], strides = [1, 1, 1]} : vector<2x16x96xf32> to vector<2x16x8xf32>
    %443 = vector.extract_strided_slice %426 {offsets = [0, 0, 40], sizes = [2, 16, 8], strides = [1, 1, 1]} : vector<2x16x96xf32> to vector<2x16x8xf32>
    %444 = vector.extract_strided_slice %426 {offsets = [0, 0, 72], sizes = [2, 16, 8], strides = [1, 1, 1]} : vector<2x16x96xf32> to vector<2x16x8xf32>
    "tpu.trace_start"() <{level = 10 : i32, message = "bqe,bke->bqk"}> : () -> ()
    %cst_162 = arith.constant dense<0.000000e+00> : vector<2x16x16xf32>
    %445 = tpu.matmul %442, %443, %cst_162 {dimension_numbers = #tpu.dot_dimension_numbers<[2], [2], [1], [1], [0, 0, 0, 1, 1, 1], [0], [0]>} : vector<2x16x8xf32>, vector<2x16x8xf32>, vector<2x16x16xf32> -> vector<2x16x16xf32>
    "tpu.trace_stop"() : () -> ()
    %446 = arith.addf %445, %241 : vector<2x16x16xf32>
    %cst_163 = arith.constant dense<0xFF800000> : vector<2x16xf32>
    %447 = vector.multi_reduction <maximumf>, %446, %cst_163 [2] : vector<2x16x16xf32> to vector<2x16xf32>
    %448 = vector.shape_cast %447 : vector<2x16xf32> to vector<2x16x1xf32>
    %449 = vector.broadcast %448 : vector<2x16x1xf32> to vector<2x16x16xf32>
    %450 = arith.subf %446, %449 : vector<2x16x16xf32>
    %451 = math.exp %450 : vector<2x16x16xf32>
    %cst_164 = arith.constant dense<0.000000e+00> : vector<2x16xf32>
    %452 = vector.multi_reduction <add>, %451, %cst_164 [2] : vector<2x16x16xf32> to vector<2x16xf32>
    %453 = vector.shape_cast %452 : vector<2x16xf32> to vector<2x16x1xf32>
    %454 = vector.broadcast %453 : vector<2x16x1xf32> to vector<2x16x16xf32>
    %455 = arith.divf %451, %454 : vector<2x16x16xf32>
    "tpu.trace_start"() <{level = 10 : i32, message = "bqk,bke->bqe"}> : () -> ()
    %cst_165 = arith.constant dense<0.000000e+00> : vector<2x16x8xf32>
    %456 = tpu.matmul %455, %444, %cst_165 {dimension_numbers = #tpu.dot_dimension_numbers<[2], [1], [1], [2], [0, 0, 0, 1, 1, 2], [0], [0]>} : vector<2x16x16xf32>, vector<2x16x8xf32>, vector<2x16x8xf32> -> vector<2x16x8xf32>
    "tpu.trace_stop"() : () -> ()
    %457 = vector.extract_strided_slice %426 {offsets = [0, 0, 16], sizes = [2, 16, 8], strides = [1, 1, 1]} : vector<2x16x96xf32> to vector<2x16x8xf32>
    %458 = vector.extract_strided_slice %426 {offsets = [0, 0, 48], sizes = [2, 16, 8], strides = [1, 1, 1]} : vector<2x16x96xf32> to vector<2x16x8xf32>
    %459 = vector.extract_strided_slice %426 {offsets = [0, 0, 80], sizes = [2, 16, 8], strides = [1, 1, 1]} : vector<2x16x96xf32> to vector<2x16x8xf32>
    "tpu.trace_start"() <{level = 10 : i32, message = "bqe,bke->bqk"}> : () -> ()
    %cst_166 = arith.constant dense<0.000000e+00> : vector<2x16x16xf32>
    %460 = tpu.matmul %457, %458, %cst_166 {dimension_numbers = #tpu.dot_dimension_numbers<[2], [2], [1], [1], [0, 0, 0, 1, 1, 1], [0], [0]>} : vector<2x16x8xf32>, vector<2x16x8xf32>, vector<2x16x16xf32> -> vector<2x16x16xf32>
    "tpu.trace_stop"() : () -> ()
    %461 = arith.addf %460, %247 : vector<2x16x16xf32>
    %cst_167 = arith.constant dense<0xFF800000> : vector<2x16xf32>
    %462 = vector.multi_reduction <maximumf>, %461, %cst_167 [2] : vector<2x16x16xf32> to vector<2x16xf32>
    %463 = vector.shape_cast %462 : vector<2x16xf32> to vector<2x16x1xf32>
    %464 = vector.broadcast %463 : vector<2x16x1xf32> to vector<2x16x16xf32>
    %465 = arith.subf %461, %464 : vector<2x16x16xf32>
    %466 = math.exp %465 : vector<2x16x16xf32>
    %cst_168 = arith.constant dense<0.000000e+00> : vector<2x16xf32>
    %467 = vector.multi_reduction <add>, %466, %cst_168 [2] : vector<2x16x16xf32> to vector<2x16xf32>
    %468 = vector.shape_cast %467 : vector<2x16xf32> to vector<2x16x1xf32>
    %469 = vector.broadcast %468 : vector<2x16x1xf32> to vector<2x16x16xf32>
    %470 = arith.divf %466, %469 : vector<2x16x16xf32>
    "tpu.trace_start"() <{level = 10 : i32, message = "bqk,bke->bqe"}> : () -> ()
    %cst_169 = arith.constant dense<0.000000e+00> : vector<2x16x8xf32>
    %471 = tpu.matmul %470, %459, %cst_169 {dimension_numbers = #tpu.dot_dimension_numbers<[2], [1], [1], [2], [0, 0, 0, 1, 1, 2], [0], [0]>} : vector<2x16x16xf32>, vector<2x16x8xf32>, vector<2x16x8xf32> -> vector<2x16x8xf32>
    "tpu.trace_stop"() : () -> ()
    %472 = vector.extract_strided_slice %426 {offsets = [0, 0, 24], sizes = [2, 16, 8], strides = [1, 1, 1]} : vector<2x16x96xf32> to vector<2x16x8xf32>
    %473 = vector.extract_strided_slice %426 {offsets = [0, 0, 56], sizes = [2, 16, 8], strides = [1, 1, 1]} : vector<2x16x96xf32> to vector<2x16x8xf32>
    %474 = vector.extract_strided_slice %426 {offsets = [0, 0, 88], sizes = [2, 16, 8], strides = [1, 1, 1]} : vector<2x16x96xf32> to vector<2x16x8xf32>
    "tpu.trace_start"() <{level = 10 : i32, message = "bqe,bke->bqk"}> : () -> ()
    %cst_170 = arith.constant dense<0.000000e+00> : vector<2x16x16xf32>
    %475 = tpu.matmul %472, %473, %cst_170 {dimension_numbers = #tpu.dot_dimension_numbers<[2], [2], [1], [1], [0, 0, 0, 1, 1, 1], [0], [0]>} : vector<2x16x8xf32>, vector<2x16x8xf32>, vector<2x16x16xf32> -> vector<2x16x16xf32>
    "tpu.trace_stop"() : () -> ()
    %476 = arith.addf %475, %253 : vector<2x16x16xf32>
    %cst_171 = arith.constant dense<0xFF800000> : vector<2x16xf32>
    %477 = vector.multi_reduction <maximumf>, %476, %cst_171 [2] : vector<2x16x16xf32> to vector<2x16xf32>
    %478 = vector.shape_cast %477 : vector<2x16xf32> to vector<2x16x1xf32>
    %479 = vector.broadcast %478 : vector<2x16x1xf32> to vector<2x16x16xf32>
    %480 = arith.subf %476, %479 : vector<2x16x16xf32>
    %481 = math.exp %480 : vector<2x16x16xf32>
    %cst_172 = arith.constant dense<0.000000e+00> : vector<2x16xf32>
    %482 = vector.multi_reduction <add>, %481, %cst_172 [2] : vector<2x16x16xf32> to vector<2x16xf32>
    %483 = vector.shape_cast %482 : vector<2x16xf32> to vector<2x16x1xf32>
    %484 = vector.broadcast %483 : vector<2x16x1xf32> to vector<2x16x16xf32>
    %485 = arith.divf %481, %484 : vector<2x16x16xf32>
    "tpu.trace_start"() <{level = 10 : i32, message = "bqk,bke->bqe"}> : () -> ()
    %cst_173 = arith.constant dense<0.000000e+00> : vector<2x16x8xf32>
    %486 = tpu.matmul %485, %474, %cst_173 {dimension_numbers = #tpu.dot_dimension_numbers<[2], [1], [1], [2], [0, 0, 0, 1, 1, 2], [0], [0]>} : vector<2x16x16xf32>, vector<2x16x8xf32>, vector<2x16x8xf32> -> vector<2x16x8xf32>
    "tpu.trace_stop"() : () -> ()
    %487 = tpu.concatenate %441, %456, %471, %486 in 2 : vector<2x16x8xf32>, vector<2x16x8xf32>, vector<2x16x8xf32>, vector<2x16x8xf32> -> vector<2x16x32xf32>
    %488 = vector.shape_cast %487 : vector<2x16x32xf32> to vector<32x32xf32>
    %c1_174 = arith.constant 1 : index
    %c0_175 = arith.constant 0 : index
    %c0_176 = arith.constant 0 : index
    %489 = vector.load %arg7[%c1_174, %c0_175, %c0_176] : memref<2x32x32xf32, #tpu.memory_space<vmem>>, vector<1x32x32xf32>
    %490 = vector.shape_cast %489 : vector<1x32x32xf32> to vector<32x32xf32>
    %cst_177 = arith.constant dense<0.000000e+00> : vector<32x32xf32>
    %491 = tpu.matmul %488, %490, %cst_177 {dimension_numbers = #tpu.dot_dimension_numbers<[1], [0], [0], [1], [0, 0, 1, 1], [], []>} : vector<32x32xf32>, vector<32x32xf32>, vector<32x32xf32> -> vector<32x32xf32>
    %492 = arith.addf %394, %491 : vector<32x32xf32>
    %493 = vector.broadcast %401 : vector<1x32xf32> to vector<32x32xf32>
    %494 = arith.addf %492, %493 : vector<32x32xf32>
    %cst_178 = arith.constant dense<0.000000e+00> : vector<32xf32>
    %495 = vector.multi_reduction <add>, %494, %cst_178 [1] : vector<32x32xf32> to vector<32xf32>
    %496 = vector.shape_cast %495 : vector<32xf32> to vector<32x1xf32>
    %cst_179 = arith.constant 3.200000e+01 : f32
    %497 = vector.broadcast %cst_179 : f32 to vector<32x1xf32>
    %498 = arith.divf %496, %497 : vector<32x1xf32>
    %499 = vector.broadcast %498 : vector<32x1xf32> to vector<32x32xf32>
    %500 = arith.subf %494, %499 : vector<32x32xf32>
    %501 = arith.mulf %500, %500 : vector<32x32xf32>
    %cst_180 = arith.constant dense<0.000000e+00> : vector<32xf32>
    %502 = vector.multi_reduction <add>, %501, %cst_180 [1] : vector<32x32xf32> to vector<32xf32>
    %503 = vector.shape_cast %502 : vector<32xf32> to vector<32x1xf32>
    %cst_181 = arith.constant 3.200000e+01 : f32
    %504 = vector.broadcast %cst_181 : f32 to vector<32x1xf32>
    %505 = arith.divf %503, %504 : vector<32x1xf32>
    %cst_182 = arith.constant 9.99999974E-6 : f32
    %506 = vector.broadcast %cst_182 : f32 to vector<32x1xf32>
    %507 = arith.addf %505, %506 : vector<32x1xf32>
    %508 = math.rsqrt %507 : vector<32x1xf32>
    %509 = vector.broadcast %508 : vector<32x1xf32> to vector<32x32xf32>
    %510 = arith.mulf %500, %509 : vector<32x32xf32>
    %511 = vector.broadcast %399 : vector<1x32xf32> to vector<32x32xf32>
    %512 = arith.mulf %510, %511 : vector<32x32xf32>
    %513 = vector.broadcast %400 : vector<1x32xf32> to vector<32x32xf32>
    %514 = arith.addf %512, %513 : vector<32x32xf32>
    %c1_183 = arith.constant 1 : index
    %c0_184 = arith.constant 0 : index
    %c0_185 = arith.constant 0 : index
    %515 = vector.load %arg9[%c1_183, %c0_184, %c0_185] : memref<2x32x64xf32, #tpu.memory_space<vmem>>, vector<1x32x64xf32>
    %516 = vector.shape_cast %515 : vector<1x32x64xf32> to vector<32x64xf32>
    %cst_186 = arith.constant dense<0.000000e+00> : vector<32x64xf32>
    %517 = tpu.matmul %514, %516, %cst_186 {dimension_numbers = #tpu.dot_dimension_numbers<[1], [0], [0], [1], [0, 0, 1, 1], [], []>} : vector<32x32xf32>, vector<32x64xf32>, vector<32x64xf32> -> vector<32x64xf32>
    %c1_187 = arith.constant 1 : index
    %c0_188 = arith.constant 0 : index
    %c0_189 = arith.constant 0 : index
    %518 = vector.load %arg10[%c1_187, %c0_188, %c0_189] : memref<2x1x64xf32, #tpu.memory_space<vmem>>, vector<1x1x64xf32>
    %519 = vector.shape_cast %518 : vector<1x1x64xf32> to vector<1x64xf32>
    %520 = vector.broadcast %519 : vector<1x64xf32> to vector<32x64xf32>
    %521 = arith.addf %517, %520 : vector<32x64xf32>
    %cst_190 = arith.constant 5.000000e-01 : f32
    %522 = vector.broadcast %cst_190 : f32 to vector<32x64xf32>
    %523 = arith.mulf %522, %521 : vector<32x64xf32>
    %cst_191 = arith.constant 0.707106769 : f32
    %524 = vector.broadcast %cst_191 : f32 to vector<32x64xf32>
    %525 = arith.mulf %521, %524 : vector<32x64xf32>
    %526 = math.erf %525 : vector<32x64xf32>
    %cst_192 = arith.constant 1.000000e+00 : f32
    %527 = vector.broadcast %cst_192 : f32 to vector<32x64xf32>
    %528 = arith.addf %527, %526 : vector<32x64xf32>
    %529 = arith.mulf %523, %528 : vector<32x64xf32>
    %c1_193 = arith.constant 1 : index
    %c0_194 = arith.constant 0 : index
    %c0_195 = arith.constant 0 : index
    %530 = vector.load %arg11[%c1_193, %c0_194, %c0_195] : memref<2x64x32xf32, #tpu.memory_space<vmem>>, vector<1x64x32xf32>
    %531 = vector.shape_cast %530 : vector<1x64x32xf32> to vector<64x32xf32>
    %cst_196 = arith.constant dense<0.000000e+00> : vector<32x32xf32>
    %532 = tpu.matmul %529, %531, %cst_196 {dimension_numbers = #tpu.dot_dimension_numbers<[1], [0], [0], [1], [0, 0, 1, 1], [], []>} : vector<32x64xf32>, vector<64x32xf32>, vector<32x32xf32> -> vector<32x32xf32>
    %533 = arith.addf %494, %532 : vector<32x32xf32>
    %534 = vector.broadcast %402 : vector<1x32xf32> to vector<32x32xf32>
    %535 = arith.addf %533, %534 : vector<32x32xf32>
    %cst_197 = arith.constant dense<0.000000e+00> : vector<32xf32>
    %536 = vector.multi_reduction <add>, %535, %cst_197 [1] : vector<32x32xf32> to vector<32xf32>
    %537 = vector.shape_cast %536 : vector<32xf32> to vector<32x1xf32>
    %cst_198 = arith.constant 3.200000e+01 : f32
    %538 = vector.broadcast %cst_198 : f32 to vector<32x1xf32>
    %539 = arith.divf %537, %538 : vector<32x1xf32>
    %540 = vector.broadcast %539 : vector<32x1xf32> to vector<32x32xf32>
    %541 = arith.subf %535, %540 : vector<32x32xf32>
    %542 = arith.mulf %541, %541 : vector<32x32xf32>
    %cst_199 = arith.constant dense<0.000000e+00> : vector<32xf32>
    %543 = vector.multi_reduction <add>, %542, %cst_199 [1] : vector<32x32xf32> to vector<32xf32>
    %544 = vector.shape_cast %543 : vector<32xf32> to vector<32x1xf32>
    %cst_200 = arith.constant 3.200000e+01 : f32
    %545 = vector.broadcast %cst_200 : f32 to vector<32x1xf32>
    %546 = arith.divf %544, %545 : vector<32x1xf32>
    %cst_201 = arith.constant 9.99999974E-6 : f32
    %547 = vector.broadcast %cst_201 : f32 to vector<32x1xf32>
    %548 = arith.addf %546, %547 : vector<32x1xf32>
    %549 = math.rsqrt %548 : vector<32x1xf32>
    %550 = vector.broadcast %549 : vector<32x1xf32> to vector<32x32xf32>
    %551 = arith.mulf %541, %550 : vector<32x32xf32>
    %552 = vector.broadcast %3 : vector<1x32xf32> to vector<32x32xf32>
    %553 = arith.mulf %551, %552 : vector<32x32xf32>
    %554 = vector.broadcast %4 : vector<1x32xf32> to vector<32x32xf32>
    %555 = arith.addf %553, %554 : vector<32x32xf32>
    %c0_202 = arith.constant 0 : index
    %c0_203 = arith.constant 0 : index
    %556 = vector.load %arg12[%c0_202, %c0_203] : memref<32x32xf32, #tpu.memory_space<vmem>>, vector<32x32xf32>
    %cst_204 = arith.constant dense<0.000000e+00> : vector<32x32xf32>
    %557 = tpu.matmul %555, %556, %cst_204 {dimension_numbers = #tpu.dot_dimension_numbers<[1], [0], [0], [1], [0, 0, 1, 1], [], []>} : vector<32x32xf32>, vector<32x32xf32>, vector<32x32xf32> -> vector<32x32xf32>
    %c0_205 = arith.constant 0 : index
    %c0_206 = arith.constant 0 : index
    %558 = vector.load %arg13[%c0_205, %c0_206] : memref<1x32xf32, #tpu.memory_space<vmem>>, vector<1x32xf32>
    %559 = vector.broadcast %558 : vector<1x32xf32> to vector<32x32xf32>
    %560 = arith.addf %557, %559 : vector<32x32xf32>
    %561 = vector.shape_cast %560 : vector<32x32xf32> to vector<2x16x32xf32>
    %c0_207 = arith.constant 0 : index
    %c0_208 = arith.constant 0 : index
    %c0_209 = arith.constant 0 : index
    %562 = vector.load %arg14[%c0_207, %c0_208, %c0_209] : memref<2x16x32xf32, #tpu.memory_space<vmem>>, vector<2x16x32xf32>
    tpu.vector_store %arg14[%c0_207, %c0_208, %c0_209], %561 {strides = array<i32>} : memref<2x16x32xf32, #tpu.memory_space<vmem>>, vector<2x16x32xf32>,
    return
  }
  func.func @transform_0(%arg0: i32) -> (i32, i32, i32) {
    %c0_i32 = arith.constant 0 : i32
    %c0_i32_0 = arith.constant 0 : i32
    %c0_i32_1 = arith.constant 0 : i32
    %c0_i32_2 = arith.constant 0 : i32
    return %c0_i32, %c0_i32_0, %c0_i32_1 : i32, i32, i32
  }
  func.func @transform_1(%arg0: i32) -> (i32, i32, i32) {
    %c0_i32 = arith.constant 0 : i32
    %c0_i32_0 = arith.constant 0 : i32
    %c0_i32_1 = arith.constant 0 : i32
    %c0_i32_2 = arith.constant 0 : i32
    return %c0_i32, %c0_i32_0, %c0_i32_1 : i32, i32, i32
  }
  func.func @transform_2(%arg0: i32) -> (i32, i32) {
    %c0_i32 = arith.constant 0 : i32
    %c0_i32_0 = arith.constant 0 : i32
    %c0_i32_1 = arith.constant 0 : i32
    return %c0_i32, %c0_i32_0 : i32, i32
  }
  func.func @transform_3(%arg0: i32) -> (i32, i32) {
    %c0_i32 = arith.constant 0 : i32
    %c0_i32_0 = arith.constant 0 : i32
    %c0_i32_1 = arith.constant 0 : i32
    return %c0_i32, %c0_i32_0 : i32, i32
  }
  func.func @transform_4(%arg0: i32) -> (i32, i32) {
    %c0_i32 = arith.constant 0 : i32
    %c0_i32_0 = arith.constant 0 : i32
    %c0_i32_1 = arith.constant 0 : i32
    return %c0_i32, %c0_i32_0 : i32, i32
  }
  func.func @transform_5(%arg0: i32) -> (i32, i32, i32) {
    %c0_i32 = arith.constant 0 : i32
    %c0_i32_0 = arith.constant 0 : i32
    %c0_i32_1 = arith.constant 0 : i32
    %c0_i32_2 = arith.constant 0 : i32
    return %c0_i32, %c0_i32_0, %c0_i32_1 : i32, i32, i32
  }
  func.func @transform_6(%arg0: i32) -> (i32, i32, i32) {
    %c0_i32 = arith.constant 0 : i32
    %c0_i32_0 = arith.constant 0 : i32
    %c0_i32_1 = arith.constant 0 : i32
    %c0_i32_2 = arith.constant 0 : i32
    return %c0_i32, %c0_i32_0, %c0_i32_1 : i32, i32, i32
  }
  func.func @transform_7(%arg0: i32) -> (i32, i32, i32) {
    %c0_i32 = arith.constant 0 : i32
    %c0_i32_0 = arith.constant 0 : i32
    %c0_i32_1 = arith.constant 0 : i32
    %c0_i32_2 = arith.constant 0 : i32
    return %c0_i32, %c0_i32_0, %c0_i32_1 : i32, i32, i32
  }
  func.func @transform_8(%arg0: i32) -> (i32, i32, i32) {
    %c0_i32 = arith.constant 0 : i32
    %c0_i32_0 = arith.constant 0 : i32
    %c0_i32_1 = arith.constant 0 : i32
    %c0_i32_2 = arith.constant 0 : i32
    return %c0_i32, %c0_i32_0, %c0_i32_1 : i32, i32, i32
  }
  func.func @transform_9(%arg0: i32) -> (i32, i32, i32) {
    %c0_i32 = arith.constant 0 : i32
    %c0_i32_0 = arith.constant 0 : i32
    %c0_i32_1 = arith.constant 0 : i32
    %c0_i32_2 = arith.constant 0 : i32
    return %c0_i32, %c0_i32_0, %c0_i32_1 : i32, i32, i32
  }
  func.func @transform_10(%arg0: i32) -> (i32, i32, i32) {
    %c0_i32 = arith.constant 0 : i32
    %c0_i32_0 = arith.constant 0 : i32
    %c0_i32_1 = arith.constant 0 : i32
    %c0_i32_2 = arith.constant 0 : i32
    return %c0_i32, %c0_i32_0, %c0_i32_1 : i32, i32, i32
  }
  func.func @transform_11(%arg0: i32) -> (i32, i32) {
    %c0_i32 = arith.constant 0 : i32
    %c0_i32_0 = arith.constant 0 : i32
    %c0_i32_1 = arith.constant 0 : i32
    return %c0_i32, %c0_i32_0 : i32, i32
  }
  func.func @transform_12(%arg0: i32) -> (i32, i32) {
    %c0_i32 = arith.constant 0 : i32
    %c0_i32_0 = arith.constant 0 : i32
    %c0_i32_1 = arith.constant 0 : i32
    return %c0_i32, %c0_i32_0 : i32, i32
  }
  func.func @transform_13(%arg0: i32) -> (i32, i32, i32) {
    %c0_i32 = arith.constant 0 : i32
    %c0_i32_0 = arith.constant 0 : i32
    %c0_i32_1 = arith.constant 0 : i32
    %c0_i32_2 = arith.constant 0 : i32
    return %c0_i32, %c0_i32_0, %c0_i32_1 : i32, i32, i32
  }
}

</mosaic_0001>

<llo_original>
// kernel: audio_encoder_forward.1
$region0: #{audio_encoder_forward.1}
  #allocation0 [shape = 'u32[]', space=smem, size = 0x4, offset = 0x4, fixed_abs, tag = 'smem constant byte address 0x4 - core index']
  #allocation1 [shape = 'u32[72,128]{1,0:T(1,128)}', space=vmem, size = 0x9000, scoped, tag = 'internal scratch']
  #allocation2 [shape = 'f32[2,46,32]{2,1,0:T(8,128)}', space=vmem, size = 0xc000, scoped, tag = 'scratch operand']
  %s0 = inlined_call_operand.hbm [shape: f32[2,16,16], index: 0, kind: input, shape index: {}]
  %s1 = inlined_call_operand.vmem [shape: f32[2,1,16], index: 1, kind: input, shape index: {}]
  %s2 = inlined_call_operand.vmem [shape: f32[16,32], index: 2, kind: input, shape index: {}]
  %s3 = inlined_call_operand.hbm [shape: f32[31,32], index: 3, kind: input, shape index: {}]
  %s4 = inlined_call_operand.vmem [shape: f32[4,32], index: 4, kind: input, shape index: {}]
  %s5 = inlined_call_operand.vmem [shape: f32[2,32,96], index: 5, kind: input, shape index: {}]
  %s6 = inlined_call_operand.vmem [shape: f32[2,32,32], index: 6, kind: input, shape index: {}]
  %s7 = inlined_call_operand.vmem [shape: f32[2,6,32], index: 7, kind: input, shape index: {}]
  %s8 = inlined_call_operand.vmem [shape: f32[2,32,64], index: 8, kind: input, shape index: {}]
  %s9 = inlined_call_operand.vmem [shape: f32[2,1,64], index: 9, kind: input, shape index: {}]
  %s10 = inlined_call_operand.vmem [shape: f32[2,64,32], index: 10, kind: input, shape index: {}]
  %s11 = inlined_call_operand.hbm [shape: f32[32,32], index: 11, kind: input, shape index: {}]
  %s12 = inlined_call_operand.vmem [shape: f32[1,32], index: 12, kind: input, shape index: {}]
  %s13 = inlined_call_operand.hbm [shape: f32[2,16,32], index: 13, kind: output, shape index: {}]
  %s14 = sld [smem:[#allocation0]]
  $region74: #{audio_encoder_forward.1} parent=0
    _
  %s16 = ssub.s32 1, %s14
  %s17 = scalar_select 0, %s16, %s14
  $region1: #{audio_encoder_forward.1} parent=0
    #allocation3 [shape = 'u8[16384]{0}', space=vmem, size = 0x4000, scoped, tag = 'input window, operand 0, single buffered']
    #allocation4 [shape = 's32[1]{0}', space=sflag, size = 0x4, scoped, tag = 'scoped memory for audio_encoder_forward.1']
    #allocation5 [shape = 's32[1]{0}', space=sflag, size = 0x4, scoped, tag = 'scoped memory for audio_encoder_forward.1']
    #allocation6 [shape = 'u8[16384]{0}', space=vmem, size = 0x4000, scoped, tag = 'input window, operand 3, single buffered']
    #allocation7 [shape = 's32[1]{0}', space=sflag, size = 0x4, scoped, tag = 'scoped memory for audio_encoder_forward.1']
    #allocation8 [shape = 'u8[16384]{0}', space=vmem, size = 0x4000, scoped, tag = 'input window, operand 11, single buffered']
    #allocation9 [shape = 'u8[16384]{0}', space=vmem, size = 0x4000, scoped, tag = 'output window, operand 0, single buffered']
    %18 = vsyncpa [#allocation4], 0
    %19 = vsyncpa [#allocation7], 0
    %20 = vsyncpa [#allocation5], 0
    // Predicated region
    $region2: #{audio_encoder_forward.1} parent=1 // pred_check
      _
    $region3: #{audio_encoder_forward.1} parent=1 // pred_check_branch
      %22 = sbr.rel (0) target = $region5
    $region4: #{audio_encoder_forward.1} parent=1 // pred_region
      %24 = vsyncadd [#allocation4], 0
      %s25 = sshll.u32 %s0, 4
      %s26 = int_to_ptr.hbm [resolvable:$true] %s25
      %s27 = sshll.u32 [#allocation3], 4
      %s28 = int_to_ptr.vmem [resolvable:$true] %s27
      %33 = dma.hbm_to_vmem [thread:$0]  %s26, 512, %s28, [#allocation4], 128, 128, 8
    $region5: #{audio_encoder_forward.1} parent=1 // pred_fallthru
      _
    // Predicated region
    $region6: #{audio_encoder_forward.1} parent=1 // pred_check
      _
    $region7: #{audio_encoder_forward.1} parent=1 // pred_check_branch
      %35 = sbr.rel (0) target = $region9
    $region8: #{audio_encoder_forward.1} parent=1 // pred_region
      _
    $region9: #{audio_encoder_forward.1} parent=1 // pred_fallthru
      _
    // Predicated region
    $region10: #{audio_encoder_forward.1} parent=1 // pred_check
      _
    $region11: #{audio_encoder_forward.1} parent=1 // pred_check_branch
      %37 = sbr.rel (0) target = $region13
    $region12: #{audio_encoder_forward.1} parent=1 // pred_region
      _
    $region13: #{audio_encoder_forward.1} parent=1 // pred_fallthru
      _
    // Predicated region
    $region14: #{audio_encoder_forward.1} parent=1 // pred_check
      _
    $region15: #{audio_encoder_forward.1} parent=1 // pred_check_branch
      %39 = sbr.rel (0) target = $region17
    $region16: #{audio_encoder_forward.1} parent=1 // pred_region
      %41 = vsyncadd [#allocation7], 0
      %s42 = sshll.u32 %s3, 4
      %s43 = int_to_ptr.hbm [resolvable:$true] %s42
      %s44 = sshll.u32 [#allocation6], 4
      %s45 = int_to_ptr.vmem [resolvable:$true] %s44
      %50 = dma.hbm_to_vmem [thread:$0]  %s43, 512, %s45, [#allocation7], 128, 128, 8
    $region17: #{audio_encoder_forward.1} parent=1 // pred_fallthru
      _
    // Predicated region
    $region18: #{audio_encoder_forward.1} parent=1 // pred_check
      _
    $region19: #{audio_encoder_forward.1} parent=1 // pred_check_branch
      %52 = sbr.rel (0) target = $region21
    $region20: #{audio_encoder_forward.1} parent=1 // pred_region
      _
    $region21: #{audio_encoder_forward.1} parent=1 // pred_fallthru
      _
    // Predicated region
    $region22: #{audio_encoder_forward.1} parent=1 // pred_check
      _
    $region23: #{audio_encoder_forward.1} parent=1 // pred_check_branch
      %54 = sbr.rel (0) target = $region25
    $region24: #{audio_encoder_forward.1} parent=1 // pred_region
      _
    $region25: #{audio_encoder_forward.1} parent=1 // pred_fallthru
      _
    // Predicated region
    $region26: #{audio_encoder_forward.1} parent=1 // pred_check
      _
    $region27: #{audio_encoder_forward.1} parent=1 // pred_check_branch
      %56 = sbr.rel (0) target = $region29
    $region28: #{audio_encoder_forward.1} parent=1 // pred_region
      _
    $region29: #{audio_encoder_forward.1} parent=1 // pred_fallthru
      _
    // Predicated region
    $region30: #{audio_encoder_forward.1} parent=1 // pred_check
      _
    $region31: #{audio_encoder_forward.1} parent=1 // pred_check_branch
      %58 = sbr.rel (0) target = $region33
    $region32: #{audio_encoder_forward.1} parent=1 // pred_region
      _
    $region33: #{audio_encoder_forward.1} parent=1 // pred_fallthru
      _
    // Predicated region
    $region34: #{audio_encoder_forward.1} parent=1 // pred_check
      _
    $region35: #{audio_encoder_forward.1} parent=1 // pred_check_branch
      %60 = sbr.rel (0) target = $region37
    $region36: #{audio_encoder_forward.1} parent=1 // pred_region
      _
    $region37: #{audio_encoder_forward.1} parent=1 // pred_fallthru
      _
    // Predicated region
    $region38: #{audio_encoder_forward.1} parent=1 // pred_check
      _
    $region39: #{audio_encoder_forward.1} parent=1 // pred_check_branch
      %62 = sbr.rel (0) target = $region41
    $region40: #{audio_encoder_forward.1} parent=1 // pred_region
      _
    $region41: #{audio_encoder_forward.1} parent=1 // pred_fallthru
      _
    // Predicated region
    $region42: #{audio_encoder_forward.1} parent=1 // pred_check
      _
    $region43: #{audio_encoder_forward.1} parent=1 // pred_check_branch
      %64 = sbr.rel (0) target = $region45
    $region44: #{audio_encoder_forward.1} parent=1 // pred_region
      _
    $region45: #{audio_encoder_forward.1} parent=1 // pred_fallthru
      _
    // Predicated region
    $region46: #{audio_encoder_forward.1} parent=1 // pred_check
      _
    $region47: #{audio_encoder_forward.1} parent=1 // pred_check_branch
      %66 = sbr.rel (0) target = $region49
    $region48: #{audio_encoder_forward.1} parent=1 // pred_region
      %68 = vsyncadd [#allocation7], 0
      %s69 = sshll.u32 %s11, 4
      %s70 = int_to_ptr.hbm [resolvable:$true] %s69
      %s71 = sshll.u32 [#allocation8], 4
      %s72 = int_to_ptr.vmem [resolvable:$true] %s71
      %77 = dma.hbm_to_vmem [thread:$0]  %s70, 512, %s72, [#allocation7], 128, 128, 8
    $region49: #{audio_encoder_forward.1} parent=1 // pred_fallthru
      _
    // Predicated region
    $region50: #{audio_encoder_forward.1} parent=1 // pred_check
      _
    $region51: #{audio_encoder_forward.1} parent=1 // pred_check_branch
      %79 = sbr.rel (0) target = $region53
    $region52: #{audio_encoder_forward.1} parent=1 // pred_region
      _
    $region53: #{audio_encoder_forward.1} parent=1 // pred_fallthru
      _
    // Predicated region
    $region54: #{audio_encoder_forward.1} parent=1 // pred_check
      _
    $region55: #{audio_encoder_forward.1} parent=1 // pred_check_branch
      %81 = sbr.rel (0) target = $region57
    $region56: #{audio_encoder_forward.1} parent=1 // pred_region
      %83 = dma.done [#allocation4], 512
    $region57: #{audio_encoder_forward.1} parent=1 // pred_fallthru
      _
    // Predicated region
    $region58: #{audio_encoder_forward.1} parent=1 // pred_check
      _
    $region59: #{audio_encoder_forward.1} parent=1 // pred_check_branch
      %85 = sbr.rel (0) target = $region61
    $region60: #{audio_encoder_forward.1} parent=1 // pred_region
      %87 = dma.done [#allocation7], 512
    $region61: #{audio_encoder_forward.1} parent=1 // pred_fallthru
      _
    // Predicated region
    $region62: #{audio_encoder_forward.1} parent=1 // pred_check
      _
    $region63: #{audio_encoder_forward.1} parent=1 // pred_check_branch
      %89 = sbr.rel (0) target = $region65
    $region64: #{audio_encoder_forward.1} parent=1 // pred_region
      %91 = dma.done [#allocation7], 512
    $region65: #{audio_encoder_forward.1} parent=1 // pred_fallthru
      _
    %v92 = vld [vmem:[%s4] sm:$0xf]
    %v93 = vld [vmem:[#allocation3] sm:$0xff]
    %v94 = vld [vmem:[#allocation3 + $0x8] sm:$0xff]
    %v95 = vld [vmem:[#allocation3 + $0x10] sm:$0xff]
    %v96 = vld [vmem:[#allocation3 + $0x18] sm:$0xff]
    %v97 = vld [vmem:[%s2] sm:$0xff]
    %v98 = vld [vmem:[%s2 + $0x8] sm:$0xff]
    %v99 = vperm.slane %v92, 0
    %vm100 = vcmask 130048
    %v102 = vsel %vm100, %v93, 0
    %v105 = vsel %vm100, %v94, 0
    %v108 = vsel %vm100, %v95, 0
    %v111 = vsel %vm100, %v96, 0
    %113 = vmatpush.msra.mxu0 0.0
    %114 = vmatpush.msra.mxu0 0.0
    %115 = vmatpush.msra.mxu0 0.0
    %116 = vmatpush.msra.mxu0 0.0
    %117 = vmatpush.msra.mxu0 0.0
    %118 = vmatpush.msra.mxu0 0.0
    %119 = vmatpush.msra.mxu0 0.0
    %120 = vmatpush.msra.mxu0 0.0
    %121 = vmatpush.msra.mxu0 0.0
    %122 = vmatpush.msra.mxu0 0.0
    %123 = vmatpush.msra.mxu0 0.0
    %124 = vmatpush.msra.mxu0 0.0
    %125 = vmatpush.msra.mxu0 0.0
    %126 = vmatpush.msra.mxu0 0.0
    %127 = vmatpush.msra.mxu0 %v98
    %128 = vmatpush.msra.mxu0 %v97
    %129 = vmatmul.f32.gmra.mxu0 %v102
    %v130 = vpop.f32.mrf.mxu0
    %v131 = vadd.f32 %v99, %v130
    %132 = vmatmul.f32.gmra.mxu0 %v105
    %v133 = vpop.f32.mrf.mxu0
    %v134 = vadd.f32 %v99, %v133
    %135 = vmatmul.f32.gmra.mxu0 %v108
    %v136 = vpop.f32.mrf.mxu0
    %v137 = vadd.f32 %v99, %v136
    %138 = vmatmul.f32.gmra.mxu0 %v111
    %v139 = vpop.f32.mrf.mxu0
    %v140 = vadd.f32 %v99, %v139
    %141 = vdwg.mxu0
    %vm142 = vcmask 261120
    %143 = vst.msk [vmem:[#allocation2] sm:$0xff] %vm142, 0.0
    %vm144 = vcmask 260096
    %145 = vst.msk [vmem:[#allocation2 + $0x8] sm:$0x7f] %vm144, 0.0
    %146 = vst.msk [vmem:[#allocation2 + $0x30] sm:$0xff] %vm142, 0.0
    %147 = vst.msk [vmem:[#allocation2 + $0x38] sm:$0x7f] %vm144, 0.0
    %148 = vst.msk [vmem:[#allocation2 + $0x1f] sm:$0xff] %vm142, 0.0
    %149 = vst.msk [vmem:[#allocation2 + $0x27] sm:$0x7f] %vm144, 0.0
    %150 = vst.msk [vmem:[#allocation2 + $0x4f] sm:$0xff] %vm142, 0.0
    %151 = vst.msk [vmem:[#allocation2 + $0x57] sm:$0x7f] %vm144, 0.0
    %152 = vst.msk [vmem:[#allocation2 + $0xf] sm:$0xff] %vm142, %v131
    %153 = vst.msk [vmem:[#allocation2 + $0x17] sm:$0xff] %vm142, %v134
    %154 = vst.msk [vmem:[#allocation2 + $0x3f] sm:$0xff] %vm142, %v137
    %155 = vst.msk [vmem:[#allocation2 + $0x47] sm:$0xff] %vm142, %v140
    %v156 = vld [vmem:[#allocation6] sm:$0xff]
    %v157 = vld [vmem:[#allocation6 + $0x8] sm:$0xff]
    %v158 = vld [vmem:[#allocation6 + $0x10] sm:$0xff]
    %v159 = vld [vmem:[#allocation6 + $0x18] sm:$0x7f]
    %v160 = vld [vmem:[#allocation2] sm:$0xff]
    %v161 = vld [vmem:[#allocation2 + $0x8] sm:$0xff]
    %v162 = vld [vmem:[#allocation2 + $0x30] sm:$0xff]
    %v163 = vld [vmem:[#allocation2 + $0x38] sm:$0xff]
    %v164 = vperm.slane %v156, 0
    %v165 = vmul.f32 %v160, %v164
    %v166 = vmul.f32 %v161, %v164
    %v167 = vmul.f32 %v162, %v164
    %v168 = vmul.f32 %v163, %v164
    %v169 = vadd.f32 %v165, 0.0
    %v170 = vadd.f32 %v166, 0.0
    %v171 = vadd.f32 %v167, 0.0
    %v172 = vadd.f32 %v168, 0.0
    %v173 = vld [vmem:[#allocation2 + $0x1] sm:$0xff]
    %v174 = vld [vmem:[#allocation2 + $0x9] sm:$0xff]
    %v175 = vld [vmem:[#allocation2 + $0x31] sm:$0xff]
    %v176 = vld [vmem:[#allocation2 + $0x39] sm:$0xff]
    %v177 = vperm.slane %v156, 1
    %v178 = vmul.f32 %v173, %v177
    %v179 = vmul.f32 %v174, %v177
    %v180 = vmul.f32 %v175, %v177
    %v181 = vmul.f32 %v176, %v177
    %v182 = vadd.f32 %v169, %v178
    %v183 = vadd.f32 %v170, %v179
    %v184 = vadd.f32 %v171, %v180
    %v185 = vadd.f32 %v172, %v181
    %v186 = vld [vmem:[#allocation2 + $0x2] sm:$0xff]
    %v187 = vld [vmem:[#allocation2 + $0xa] sm:$0xff]
    %v188 = vld [vmem:[#allocation2 + $0x32] sm:$0xff]
    %v189 = vld [vmem:[#allocation2 + $0x3a] sm:$0xff]
    %v190 = vperm.slane %v156, 2
    %v191 = vmul.f32 %v186, %v190
    %v192 = vmul.f32 %v187, %v190
    %v193 = vmul.f32 %v188, %v190
    %v194 = vmul.f32 %v189, %v190
    %v195 = vadd.f32 %v182, %v191
    %v196 = vadd.f32 %v183, %v192
    %v197 = vadd.f32 %v184, %v193
    %v198 = vadd.f32 %v185, %v194
    %v199 = vld [vmem:[#allocation2 + $0x3] sm:$0xff]
    %v200 = vld [vmem:[#allocation2 + $0xb] sm:$0xff]
    %v201 = vld [vmem:[#allocation2 + $0x33] sm:$0xff]
    %v202 = vld [vmem:[#allocation2 + $0x3b] sm:$0xff]
    %v203 = vperm.slane %v156, 3
    %v204 = vmul.f32 %v199, %v203
    %v205 = vmul.f32 %v200, %v203
    %v206 = vmul.f32 %v201, %v203
    %v207 = vmul.f32 %v202, %v203
    %v208 = vadd.f32 %v195, %v204
    %v209 = vadd.f32 %v196, %v205
    %v210 = vadd.f32 %v197, %v206
    %v211 = vadd.f32 %v198, %v207
    %v212 = vld [vmem:[#allocation2 + $0x4] sm:$0xff]
    %v213 = vld [vmem:[#allocation2 + $0xc] sm:$0xff]
    %v214 = vld [vmem:[#allocation2 + $0x34] sm:$0xff]
    %v215 = vld [vmem:[#allocation2 + $0x3c] sm:$0xff]
    %v216 = vperm.slane %v156, 4
    %v217 = vmul.f32 %v212, %v216
    %v218 = vmul.f32 %v213, %v216
    %v219 = vmul.f32 %v214, %v216
    %v220 = vmul.f32 %v215, %v216
    %v221 = vadd.f32 %v208, %v217
    %v222 = vadd.f32 %v209, %v218
    %v223 = vadd.f32 %v210, %v219
    %v224 = vadd.f32 %v211, %v220
    %v225 = vld [vmem:[#allocation2 + $0x5] sm:$0xff]
    %v226 = vld [vmem:[#allocation2 + $0xd] sm:$0xff]
    %v227 = vld [vmem:[#allocation2 + $0x35] sm:$0xff]
    %v228 = vld [vmem:[#allocation2 + $0x3d] sm:$0xff]
    %v229 = vperm.slane %v156, 5
    %v230 = vmul.f32 %v225, %v229
    %v231 = vmul.f32 %v226, %v229
    %v232 = vmul.f32 %v227, %v229
    %v233 = vmul.f32 %v228, %v229
    %v234 = vadd.f32 %v221, %v230
    %v235 = vadd.f32 %v222, %v231
    %v236 = vadd.f32 %v223, %v232
    %v237 = vadd.f32 %v224, %v233
    %v238 = vld [vmem:[#allocation2 + $0x6] sm:$0xff]
    %v239 = vld [vmem:[#allocation2 + $0xe] sm:$0xff]
    %v240 = vld [vmem:[#allocation2 + $0x36] sm:$0xff]
    %v241 = vld [vmem:[#allocation2 + $0x3e] sm:$0xff]
    %v242 = vperm.slane %v156, 6
    %v243 = vmul.f32 %v238, %v242
    %v244 = vmul.f32 %v239, %v242
    %v245 = vmul.f32 %v240, %v242
    %v246 = vmul.f32 %v241, %v242
    %v247 = vadd.f32 %v234, %v243
    %v248 = vadd.f32 %v235, %v244
    %v249 = vadd.f32 %v236, %v245
    %v250 = vadd.f32 %v237, %v246
    %v251 = vld [vmem:[#allocation2 + $0x7] sm:$0xff]
    %v252 = vld [vmem:[#allocation2 + $0xf] sm:$0xff]
    %v253 = vld [vmem:[#allocation2 + $0x37] sm:$0xff]
    %v254 = vld [vmem:[#allocation2 + $0x3f] sm:$0xff]
    %v255 = vperm.slane %v156, 7
    %v256 = vmul.f32 %v251, %v255
    %v257 = vmul.f32 %v252, %v255
    %v258 = vmul.f32 %v253, %v255
    %v259 = vmul.f32 %v254, %v255
    %v260 = vadd.f32 %v247, %v256
    %v261 = vadd.f32 %v248, %v257
    %v262 = vadd.f32 %v249, %v258
    %v263 = vadd.f32 %v250, %v259
    %v264 = vld [vmem:[#allocation2 + $0x10] sm:$0xff]
    %v265 = vld [vmem:[#allocation2 + $0x40] sm:$0xff]
    %v266 = vperm.slane %v157, 0
    %v267 = vmul.f32 %v161, %v266
    %v268 = vmul.f32 %v264, %v266
    %v269 = vmul.f32 %v163, %v266
    %v270 = vmul.f32 %v265, %v266
    %v271 = vadd.f32 %v260, %v267
    %v272 = vadd.f32 %v261, %v268
    %v273 = vadd.f32 %v262, %v269
    %v274 = vadd.f32 %v263, %v270
    %v275 = vld [vmem:[#allocation2 + $0x11] sm:$0xff]
    %v276 = vld [vmem:[#allocation2 + $0x41] sm:$0xff]
    %v277 = vperm.slane %v157, 1
    %v278 = vmul.f32 %v174, %v277
    %v279 = vmul.f32 %v275, %v277
    %v280 = vmul.f32 %v176, %v277
    %v281 = vmul.f32 %v276, %v277
    %v282 = vadd.f32 %v271, %v278
    %v283 = vadd.f32 %v272, %v279
    %v284 = vadd.f32 %v273, %v280
    %v285 = vadd.f32 %v274, %v281
    %v286 = vld [vmem:[#allocation2 + $0x12] sm:$0xff]
    %v287 = vld [vmem:[#allocation2 + $0x42] sm:$0xff]
    %v288 = vperm.slane %v157, 2
    %v289 = vmul.f32 %v187, %v288
    %v290 = vmul.f32 %v286, %v288
    %v291 = vmul.f32 %v189, %v288
    %v292 = vmul.f32 %v287, %v288
    %v293 = vadd.f32 %v282, %v289
    %v294 = vadd.f32 %v283, %v290
    %v295 = vadd.f32 %v284, %v291
    %v296 = vadd.f32 %v285, %v292
    %v297 = vld [vmem:[#allocation2 + $0x13] sm:$0xff]
    %v298 = vld [vmem:[#allocation2 + $0x43] sm:$0xff]
    %v299 = vperm.slane %v157, 3
    %v300 = vmul.f32 %v200, %v299
    %v301 = vmul.f32 %v297, %v299
    %v302 = vmul.f32 %v202, %v299
    %v303 = vmul.f32 %v298, %v299
    %v304 = vadd.f32 %v293, %v300
    %v305 = vadd.f32 %v294, %v301
    %v306 = vadd.f32 %v295, %v302
    %v307 = vadd.f32 %v296, %v303
    %v308 = vld [vmem:[#allocation2 + $0x14] sm:$0xff]
    %v309 = vld [vmem:[#allocation2 + $0x44] sm:$0xff]
    %v310 = vperm.slane %v157, 4
    %v311 = vmul.f32 %v213, %v310
    %v312 = vmul.f32 %v308, %v310
    %v313 = vmul.f32 %v215, %v310
    %v314 = vmul.f32 %v309, %v310
    %v315 = vadd.f32 %v304, %v311
    %v316 = vadd.f32 %v305, %v312
    %v317 = vadd.f32 %v306, %v313
    %v318 = vadd.f32 %v307, %v314
    %v319 = vld [vmem:[#allocation2 + $0x15] sm:$0xff]
    %v320 = vld [vmem:[#allocation2 + $0x45] sm:$0xff]
    %v321 = vperm.slane %v157, 5
    %v322 = vmul.f32 %v226, %v321
    %v323 = vmul.f32 %v319, %v321
    %v324 = vmul.f32 %v228, %v321
    %v325 = vmul.f32 %v320, %v321
    %v326 = vadd.f32 %v315, %v322
    %v327 = vadd.f32 %v316, %v323
    %v328 = vadd.f32 %v317, %v324
    %v329 = vadd.f32 %v318, %v325
    %v330 = vld [vmem:[#allocation2 + $0x16] sm:$0xff]
    %v331 = vld [vmem:[#allocation2 + $0x46] sm:$0xff]
    %v332 = vperm.slane %v157, 6
    %v333 = vmul.f32 %v239, %v332
    %v334 = vmul.f32 %v330, %v332
    %v335 = vmul.f32 %v241, %v332
    %v336 = vmul.f32 %v331, %v332
    %v337 = vadd.f32 %v326, %v333
    %v338 = vadd.f32 %v327, %v334
    %v339 = vadd.f32 %v328, %v335
    %v340 = vadd.f32 %v329, %v336
    %v341 = vld [vmem:[#allocation2 + $0x17] sm:$0xff]
    %v342 = vld [vmem:[#allocation2 + $0x47] sm:$0xff]
    %v343 = vperm.slane %v157, 7
    %v344 = vmul.f32 %v252, %v343
    %v345 = vmul.f32 %v341, %v343
    %v346 = vmul.f32 %v254, %v343
    %v347 = vmul.f32 %v342, %v343
    %v348 = vadd.f32 %v337, %v344
    %v349 = vadd.f32 %v338, %v345
    %v350 = vadd.f32 %v339, %v346
    %v351 = vadd.f32 %v340, %v347
    %v352 = vld [vmem:[#allocation2 + $0x18] sm:$0xff]
    %v353 = vld [vmem:[#allocation2 + $0x48] sm:$0xff]
    %v354 = vperm.slane %v158, 0
    %v355 = vmul.f32 %v264, %v354
    %v356 = vmul.f32 %v352, %v354
    %v357 = vmul.f32 %v265, %v354
    %v358 = vmul.f32 %v353, %v354
    %v359 = vadd.f32 %v348, %v355
    %v360 = vadd.f32 %v349, %v356
    %v361 = vadd.f32 %v350, %v357
    %v362 = vadd.f32 %v351, %v358
    %v363 = vld [vmem:[#allocation2 + $0x19] sm:$0xff]
    %v364 = vld [vmem:[#allocation2 + $0x49] sm:$0xff]
    %v365 = vperm.slane %v158, 1
    %v366 = vmul.f32 %v275, %v365
    %v367 = vmul.f32 %v363, %v365
    %v368 = vmul.f32 %v276, %v365
    %v369 = vmul.f32 %v364, %v365
    %v370 = vadd.f32 %v359, %v366
    %v371 = vadd.f32 %v360, %v367
    %v372 = vadd.f32 %v361, %v368
    %v373 = vadd.f32 %v362, %v369
    %v374 = vld [vmem:[#allocation2 + $0x1a] sm:$0xff]
    %v375 = vld [vmem:[#allocation2 + $0x4a] sm:$0xff]
    %v376 = vperm.slane %v158, 2
    %v377 = vmul.f32 %v286, %v376
    %v378 = vmul.f32 %v374, %v376
    %v379 = vmul.f32 %v287, %v376
    %v380 = vmul.f32 %v375, %v376
    %v381 = vadd.f32 %v370, %v377
    %v382 = vadd.f32 %v371, %v378
    %v383 = vadd.f32 %v372, %v379
    %v384 = vadd.f32 %v373, %v380
    %v385 = vld [vmem:[#allocation2 + $0x1b] sm:$0xff]
    %v386 = vld [vmem:[#allocation2 + $0x4b] sm:$0xff]
    %v387 = vperm.slane %v158, 3
    %v388 = vmul.f32 %v297, %v387
    %v389 = vmul.f32 %v385, %v387
    %v390 = vmul.f32 %v298, %v387
    %v391 = vmul.f32 %v386, %v387
    %v392 = vadd.f32 %v381, %v388
    %v393 = vadd.f32 %v382, %v389
    %v394 = vadd.f32 %v383, %v390
    %v395 = vadd.f32 %v384, %v391
    %v396 = vld [vmem:[#allocation2 + $0x1c] sm:$0xff]
    %v397 = vld [vmem:[#allocation2 + $0x4c] sm:$0xff]
    %v398 = vperm.slane %v158, 4
    %v399 = vmul.f32 %v308, %v398
    %v400 = vmul.f32 %v396, %v398
    %v401 = vmul.f32 %v309, %v398
    %v402 = vmul.f32 %v397, %v398
    %v403 = vadd.f32 %v392, %v399
    %v404 = vadd.f32 %v393, %v400
    %v405 = vadd.f32 %v394, %v401
    %v406 = vadd.f32 %v395, %v402
    %v407 = vld [vmem:[#allocation2 + $0x1d] sm:$0xff]
    %v408 = vld [vmem:[#allocation2 + $0x4d] sm:$0xff]
    %v409 = vperm.slane %v158, 5
    %v410 = vmul.f32 %v319, %v409
    %v411 = vmul.f32 %v407, %v409
    %v412 = vmul.f32 %v320, %v409
    %v413 = vmul.f32 %v408, %v409
    %v414 = vadd.f32 %v403, %v410
    %v415 = vadd.f32 %v404, %v411
    %v416 = vadd.f32 %v405, %v412
    %v417 = vadd.f32 %v406, %v413
    %v418 = vld [vmem:[#allocation2 + $0x1e] sm:$0xff]
    %v419 = vld [vmem:[#allocation2 + $0x4e] sm:$0xff]
    %v420 = vperm.slane %v158, 6
    %v421 = vmul.f32 %v330, %v420
    %v422 = vmul.f32 %v418, %v420
    %v423 = vmul.f32 %v331, %v420
    %v424 = vmul.f32 %v419, %v420
    %v425 = vadd.f32 %v414, %v421
    %v426 = vadd.f32 %v415, %v422
    %v427 = vadd.f32 %v416, %v423
    %v428 = vadd.f32 %v417, %v424
    %v429 = vld [vmem:[#allocation2 + $0x1f] sm:$0xff]
    %v430 = vld [vmem:[#allocation2 + $0x4f] sm:$0xff]
    %v431 = vperm.slane %v158, 7
    %v432 = vmul.f32 %v341, %v431
    %v433 = vmul.f32 %v429, %v431
    %v434 = vmul.f32 %v342, %v431
    %v435 = vmul.f32 %v430, %v431
    %v436 = vadd.f32 %v425, %v432
    %v437 = vadd.f32 %v426, %v433
    %v438 = vadd.f32 %v427, %v434
    %v439 = vadd.f32 %v428, %v435
    %v440 = vld [vmem:[#allocation2 + $0x20] sm:$0xff]
    %v441 = vld [vmem:[#allocation2 + $0x50] sm:$0xff]
    %v442 = vperm.slane %v159, 0
    %v443 = vmul.f32 %v352, %v442
    %v444 = vmul.f32 %v440, %v442
    %v445 = vmul.f32 %v353, %v442
    %v446 = vmul.f32 %v441, %v442
    %v447 = vadd.f32 %v436, %v443
    %v448 = vadd.f32 %v437, %v444
    %v449 = vadd.f32 %v438, %v445
    %v450 = vadd.f32 %v439, %v446
    %v451 = vld [vmem:[#allocation2 + $0x21] sm:$0xff]
    %v452 = vld [vmem:[#allocation2 + $0x51] sm:$0xff]
    %v453 = vperm.slane %v159, 1
    %v454 = vmul.f32 %v363, %v453
    %v455 = vmul.f32 %v451, %v453
    %v456 = vmul.f32 %v364, %v453
    %v457 = vmul.f32 %v452, %v453
    %v458 = vadd.f32 %v447, %v454
    %v459 = vadd.f32 %v448, %v455
    %v460 = vadd.f32 %v449, %v456
    %v461 = vadd.f32 %v450, %v457
    %v462 = vld [vmem:[#allocation2 + $0x22] sm:$0xff]
    %v463 = vld [vmem:[#allocation2 + $0x52] sm:$0xff]
    %v464 = vperm.slane %v159, 2
    %v465 = vmul.f32 %v374, %v464
    %v466 = vmul.f32 %v462, %v464
    %v467 = vmul.f32 %v375, %v464
    %v468 = vmul.f32 %v463, %v464
    %v469 = vadd.f32 %v458, %v465
    %v470 = vadd.f32 %v459, %v466
    %v471 = vadd.f32 %v460, %v467
    %v472 = vadd.f32 %v461, %v468
    %v473 = vld [vmem:[#allocation2 + $0x23] sm:$0xff]
    %v474 = vld [vmem:[#allocation2 + $0x53] sm:$0xff]
    %v475 = vperm.slane %v159, 3
    %v476 = vmul.f32 %v385, %v475
    %v477 = vmul.f32 %v473, %v475
    %v478 = vmul.f32 %v386, %v475
    %v479 = vmul.f32 %v474, %v475
    %v480 = vadd.f32 %v469, %v476
    %v481 = vadd.f32 %v470, %v477
    %v482 = vadd.f32 %v471, %v478
    %v483 = vadd.f32 %v472, %v479
    %v484 = vld [vmem:[#allocation2 + $0x24] sm:$0xff]
    %v485 = vld [vmem:[#allocation2 + $0x54] sm:$0xff]
    %v486 = vperm.slane %v159, 4
    %v487 = vmul.f32 %v396, %v486
    %v488 = vmul.f32 %v484, %v486
    %v489 = vmul.f32 %v397, %v486
    %v490 = vmul.f32 %v485, %v486
    %v491 = vadd.f32 %v480, %v487
    %v492 = vadd.f32 %v481, %v488
    %v493 = vadd.f32 %v482, %v489
    %v494 = vadd.f32 %v483, %v490
    %v495 = vld [vmem:[#allocation2 + $0x25] sm:$0xff]
    %v496 = vld [vmem:[#allocation2 + $0x55] sm:$0xff]
    %v497 = vperm.slane %v159, 5
    %v498 = vmul.f32 %v407, %v497
    %v499 = vmul.f32 %v495, %v497
    %v500 = vmul.f32 %v408, %v497
    %v501 = vmul.f32 %v496, %v497
    %v502 = vadd.f32 %v491, %v498
    %v503 = vadd.f32 %v492, %v499
    %v504 = vadd.f32 %v493, %v500
    %v505 = vadd.f32 %v494, %v501
    %v506 = vld [vmem:[#allocation2 + $0x26] sm:$0xff]
    %v507 = vld [vmem:[#allocation2 + $0x56] sm:$0xff]
    %v508 = vperm.slane %v159, 6
    %v509 = vmul.f32 %v418, %v508
    %v510 = vmul.f32 %v506, %v508
    %v511 = vmul.f32 %v419, %v508
    %v512 = vmul.f32 %v507, %v508
    %v513 = vadd.f32 %v502, %v509
    %v514 = vadd.f32 %v503, %v510
    %v515 = vadd.f32 %v504, %v511
    %v516 = vadd.f32 %v505, %v512
    %v517 = vperm.slane %v92, 1
    %v518 = vadd.f32 %v513, %v517
    %v519 = vadd.f32 %v514, %v517
    %v520 = vadd.f32 %v515, %v517
    %v521 = vadd.f32 %v516, %v517
    %v522 = vmul.f32 %v518, 0.5
    %v523 = vmul.f32 %v519, 0.5
    %v524 = vmul.f32 %v520, 0.5
    %v525 = vmul.f32 %v521, 0.5
    %v526 = vmul.f32 %v518, 0.70710677
    %v527 = vmul.f32 %v519, 0.70710677
    %v528 = vmul.f32 %v520, 0.70710677
    %v529 = vmul.f32 %v521, 0.70710677
    %v530 = vmul.f32 %v526, %v526
    %v531 = vmin.f32 16.0, %v530
    %v532 = vmul.f32 %v531, 2.1237322e-06
    %v533 = vadd.f32 %v532, 0.00028619796
    %v534 = vmul.f32 %v531, %v533
    %v535 = vadd.f32 %v534, 0.0036580483
    %v536 = vmul.f32 %v531, %v535
    %v537 = vadd.f32 %v536, 0.05243302
    %v538 = vmul.f32 %v531, %v537
    %v539 = vadd.f32 %v538, 0.18741608
    %v540 = vmul.f32 %v531, %v539
    %v541 = vadd.f32 %v540, 1.1283791
    %v542 = vmul.f32 %v526, %v541
    %v543 = vmul.f32 %v531, 3.8918573e-05
    %v544 = vadd.f32 %v543, 0.001143296
    %v545 = vmul.f32 %v531, %v544
    %v546 = vadd.f32 %v545, 0.014752088
    %v547 = vmul.f32 %v531, %v546
    %v548 = vadd.f32 %v547, 0.112945676
    %v549 = vmul.f32 %v531, %v548
    %v550 = vadd.f32 %v549, 0.4994258
    %v551 = vmul.f32 %v531, %v550
    %v552 = vadd.f32 %v551, 1.0
    %v553 = vrcp.pop %v552
    %v554 = vmul.f32 %v552, %v553
    %v555 = vsub.f32 1.0, %v554
    %v556 = vmul.f32 %v553, %v555
    %v557 = vadd.f32 %v553, %v556
    %vm558 = vweird.f32 %v552
    %vm559 = vweird.f32 %v553
    %vm560 = vmor %vm558, %vm559
    %v561 = vsel %vm560, %v553, %v557
    %v562 = vand.u32 2147483647, %v552
    %vm563 = vcmp.eq.f32.partialorder %v562, 8.507059e+37
    %v564 = vand.u32 %v552, 2147483648
    %v565 = vor.u32 1.1754944e-38, %v564
    %v566 = vsel %vm563, %v565, %v561
    %v567 = vmul.f32 %v542, %v566
    %v568 = vmin.f32 %v567, 1.0
    %v569 = vmax.f32 %v568, -1.0
    %v570 = vmul.f32 %v527, %v527
    %v571 = vmin.f32 16.0, %v570
    %v572 = vmul.f32 %v571, 2.1237322e-06
    %v573 = vadd.f32 %v572, 0.00028619796
    %v574 = vmul.f32 %v571, %v573
    %v575 = vadd.f32 %v574, 0.0036580483
    %v576 = vmul.f32 %v571, %v575
    %v577 = vadd.f32 %v576, 0.05243302
    %v578 = vmul.f32 %v571, %v577
    %v579 = vadd.f32 %v578, 0.18741608
    %v580 = vmul.f32 %v571, %v579
    %v581 = vadd.f32 %v580, 1.1283791
    %v582 = vmul.f32 %v527, %v581
    %v583 = vmul.f32 %v571, 3.8918573e-05
    %v584 = vadd.f32 %v583, 0.001143296
    %v585 = vmul.f32 %v571, %v584
    %v586 = vadd.f32 %v585, 0.014752088
    %v587 = vmul.f32 %v571, %v586
    %v588 = vadd.f32 %v587, 0.112945676
    %v589 = vmul.f32 %v571, %v588
    %v590 = vadd.f32 %v589, 0.4994258
    %v591 = vmul.f32 %v571, %v590
    %v592 = vadd.f32 %v591, 1.0
    %v593 = vrcp.pop %v592
    %v594 = vmul.f32 %v592, %v593
    %v595 = vsub.f32 1.0, %v594
    %v596 = vmul.f32 %v593, %v595
    %v597 = vadd.f32 %v593, %v596
    %vm598 = vweird.f32 %v592
    %vm599 = vweird.f32 %v593
    %vm600 = vmor %vm598, %vm599
    %v601 = vsel %vm600, %v593, %v597
    %v602 = vand.u32 2147483647, %v592
    %vm603 = vcmp.eq.f32.partialorder %v602, 8.507059e+37
    %v604 = vand.u32 %v592, 2147483648
    %v605 = vor.u32 1.1754944e-38, %v604
    %v606 = vsel %vm603, %v605, %v601
    %v607 = vmul.f32 %v582, %v606
    %v608 = vmin.f32 %v607, 1.0
    %v609 = vmax.f32 %v608, -1.0
    %v610 = vmul.f32 %v528, %v528
    %v611 = vmin.f32 16.0, %v610
    %v612 = vmul.f32 %v611, 2.1237322e-06
    %v613 = vadd.f32 %v612, 0.00028619796
    %v614 = vmul.f32 %v611, %v613
    %v615 = vadd.f32 %v614, 0.0036580483
    %v616 = vmul.f32 %v611, %v615
    %v617 = vadd.f32 %v616, 0.05243302
    %v618 = vmul.f32 %v611, %v617
    %v619 = vadd.f32 %v618, 0.18741608
    %v620 = vmul.f32 %v611, %v619
    %v621 = vadd.f32 %v620, 1.1283791
    %v622 = vmul.f32 %v528, %v621
    %v623 = vmul.f32 %v611, 3.8918573e-05
    %v624 = vadd.f32 %v623, 0.001143296
    %v625 = vmul.f32 %v611, %v624
    %v626 = vadd.f32 %v625, 0.014752088
    %v627 = vmul.f32 %v611, %v626
    %v628 = vadd.f32 %v627, 0.112945676
    %v629 = vmul.f32 %v611, %v628
    %v630 = vadd.f32 %v629, 0.4994258
    %v631 = vmul.f32 %v611, %v630
    %v632 = vadd.f32 %v631, 1.0
    %v633 = vrcp.pop %v632
    %v634 = vmul.f32 %v632, %v633
    %v635 = vsub.f32 1.0, %v634
    %v636 = vmul.f32 %v633, %v635
    %v637 = vadd.f32 %v633, %v636
    %vm638 = vweird.f32 %v632
    %vm639 = vweird.f32 %v633
    %vm640 = vmor %vm638, %vm639
    %v641 = vsel %vm640, %v633, %v637
    %v642 = vand.u32 2147483647, %v632
    %vm643 = vcmp.eq.f32.partialorder %v642, 8.507059e+37
    %v644 = vand.u32 %v632, 2147483648
    %v645 = vor.u32 1.1754944e-38, %v644
    %v646 = vsel %vm643, %v645, %v641
    %v647 = vmul.f32 %v622, %v646
    %v648 = vmin.f32 %v647, 1.0
    %v649 = vmax.f32 %v648, -1.0
    %v650 = vmul.f32 %v529, %v529
    %v651 = vmin.f32 16.0, %v650
    %v652 = vmul.f32 %v651, 2.1237322e-06
    %v653 = vadd.f32 %v652, 0.00028619796
    %v654 = vmul.f32 %v651, %v653
    %v655 = vadd.f32 %v654, 0.0036580483
    %v656 = vmul.f32 %v651, %v655
    %v657 = vadd.f32 %v656, 0.05243302
    %v658 = vmul.f32 %v651, %v657
    %v659 = vadd.f32 %v658, 0.18741608
    %v660 = vmul.f32 %v651, %v659
    %v661 = vadd.f32 %v660, 1.1283791
    %v662 = vmul.f32 %v529, %v661
    %v663 = vmul.f32 %v651, 3.8918573e-05
    %v664 = vadd.f32 %v663, 0.001143296
    %v665 = vmul.f32 %v651, %v664
    %v666 = vadd.f32 %v665, 0.014752088
    %v667 = vmul.f32 %v651, %v666
    %v668 = vadd.f32 %v667, 0.112945676
    %v669 = vmul.f32 %v651, %v668
    %v670 = vadd.f32 %v669, 0.4994258
    %v671 = vmul.f32 %v651, %v670
    %v672 = vadd.f32 %v671, 1.0
    %v673 = vrcp.pop %v672
    %v674 = vmul.f32 %v672, %v673
    %v675 = vsub.f32 1.0, %v674
    %v676 = vmul.f32 %v673, %v675
    %v677 = vadd.f32 %v673, %v676
    %vm678 = vweird.f32 %v672
    %vm679 = vweird.f32 %v673
    %vm680 = vmor %vm678, %vm679
    %v681 = vsel %vm680, %v673, %v677
    %v682 = vand.u32 2147483647, %v672
    %vm683 = vcmp.eq.f32.partialorder %v682, 8.507059e+37
    %v684 = vand.u32 %v672, 2147483648
    %v685 = vor.u32 1.1754944e-38, %v684
    %v686 = vsel %vm683, %v685, %v681
    %v687 = vmul.f32 %v662, %v686
    %v688 = vmin.f32 %v687, 1.0
    %v689 = vmax.f32 %v688, -1.0
    %v690 = vadd.f32 %v569, 1.0
    %v691 = vadd.f32 %v609, 1.0
    %v692 = vadd.f32 %v649, 1.0
    %v693 = vadd.f32 %v689, 1.0
    %v694 = vmul.f32 %v522, %v690
    %v695 = vmul.f32 %v523, %v691
    %v696 = vmul.f32 %v524, %v692
    %v697 = vmul.f32 %v525, %v693
    %v698 = vadd.f32 %v131, %v694
    %v699 = vadd.f32 %v134, %v695
    %v700 = vadd.f32 %v137, %v696
    %v701 = vadd.f32 %v140, %v697
    %v702 = vlaneseq
    %v703 = vshrl.u32 %v702, 7
    %v704 = vadd.s32 %v703, 8
    %v705 = vlaneseq
    %v706 = vand.u32 %v705, 127
    %v707 = vsub.s32 %v706, %v703
    %v708 = vsub.s32 %v706, %v704
    %vm709 = vcmp.lt.s32.totalorder %v707, 0
    %v710 = vsub.s32 0, %v707
    %v711 = vsel %vm709, %v710, %v707
    %vm712 = vcmp.lt.s32.totalorder %v708, 0
    %v713 = vsub.s32 0, %v708
    %v714 = vsel %vm712, %v713, %v708
    %v715 = vcvt.s32.f32 %v711
    %v716 = vcvt.s32.f32 %v714
    %v717 = vsub.f32 0.0, %v715
    %v718 = vsub.f32 0.0, %v716
    %v719 = vld [vmem:[%s1] sm:$0x1]
    %v720 = vld [vmem:[%s1 + $0x1] sm:$0x1]
    %v721 = vsub.f32 %v719, 1.0
    %v722 = vsub.f32 %v720, 1.0
    %v723 = vmul.f32 %v721, 1e+09
    %v724 = vmul.f32 %v722, 1e+09
    %v725 = vmul.f32 %v717, 0.25
    %v726 = vmul.f32 %v718, 0.25
    %v729 = vperm.slane %v723, 0
    %v730 = vperm.slane %v724, 0
    %v733 = vadd.f32 %v725, %v729
    %v734 = vadd.f32 %v726, %v729
    %v735 = vadd.f32 %v725, %v730
    %v736 = vadd.f32 %v726, %v730
    %v737 = vmul.f32 %v717, 0.0625
    %v738 = vmul.f32 %v718, 0.0625
    %v739 = vadd.f32 %v737, %v729
    %v740 = vadd.f32 %v738, %v729
    %v741 = vadd.f32 %v737, %v730
    %v742 = vadd.f32 %v738, %v730
    %v743 = vmul.f32 %v717, 0.015625
    %v744 = vmul.f32 %v718, 0.015625
    %v745 = vadd.f32 %v743, %v729
    %v746 = vadd.f32 %v744, %v729
    %v747 = vadd.f32 %v743, %v730
    %v748 = vadd.f32 %v744, %v730
    %v749 = vmul.f32 %v717, 0.00390625
    %v750 = vmul.f32 %v718, 0.00390625
    %v751 = vadd.f32 %v749, %v729
    %v752 = vadd.f32 %v750, %v729
    %v753 = vadd.f32 %v749, %v730
    %v754 = vadd.f32 %v750, %v730
    %v755 = vld [vmem:[%s7] sm:$0x3f]
    %v756 = vsel %vm142, %v698, 0.0
    %757 = vadd.xlane.f32.xlu0 %v756
    %v758 = vpop.xlane.xlu0 %757
    %v759 = vsel %vm142, %v699, 0.0
    %760 = vadd.xlane.f32.xlu0 %v759
    %v761 = vpop.xlane.xlu0 %760
    %v762 = vsel %vm142, %v700, 0.0
    %763 = vadd.xlane.f32.xlu0 %v762
    %v764 = vpop.xlane.xlu0 %763
    %v765 = vsel %vm142, %v701, 0.0
    %766 = vadd.xlane.f32.xlu0 %v765
    %v767 = vpop.xlane.xlu0 %766
    %v768 = vrcp.pop 32.0
    %v769 = vmul.f32 32.0, %v768
    %v770 = vsub.f32 1.0, %v769
    %v771 = vmul.f32 %v768, %v770
    %v772 = vadd.f32 %v768, %v771
    %vm773 = vweird.f32 %v768
    %v774 = vsel %vm773, %v768, %v772
    %v775 = vmul.f32 %v758, %v774
    %v776 = vmul.f32 %v761, %v774
    %v777 = vmul.f32 %v764, %v774
    %v778 = vmul.f32 %v767, %v774
    %v779 = vsub.f32 %v698, %v775
    %v780 = vsub.f32 %v699, %v776
    %v781 = vsub.f32 %v700, %v777
    %v782 = vsub.f32 %v701, %v778
    %v783 = vmul.f32 %v779, %v779
    %v784 = vmul.f32 %v780, %v780
    %v785 = vmul.f32 %v781, %v781
    %v786 = vmul.f32 %v782, %v782
    %v787 = vsel %vm142, %v783, 0.0
    %788 = vadd.xlane.f32.xlu0 %v787
    %v789 = vpop.xlane.xlu0 %788
    %v790 = vsel %vm142, %v784, 0.0
    %791 = vadd.xlane.f32.xlu0 %v790
    %v792 = vpop.xlane.xlu0 %791
    %v793 = vsel %vm142, %v785, 0.0
    %794 = vadd.xlane.f32.xlu0 %v793
    %v795 = vpop.xlane.xlu0 %794
    %v796 = vsel %vm142, %v786, 0.0
    %797 = vadd.xlane.f32.xlu0 %v796
    %v798 = vpop.xlane.xlu0 %797
    %v799 = vmul.f32 %v789, %v774
    %v800 = vmul.f32 %v792, %v774
    %v801 = vmul.f32 %v795, %v774
    %v802 = vmul.f32 %v798, %v774
    %v803 = vadd.f32 %v799, 1e-05
    %v804 = vadd.f32 %v800, 1e-05
    %v805 = vadd.f32 %v801, 1e-05
    %v806 = vadd.f32 %v802, 1e-05
    %v807 = vrsqrt.pop %v803
    %v808 = vmul.f32 %v807, %v803
    %v809 = vmul.f32 %v808, %v807
    %v810 = vmul.f32 0.5, %v809
    %v811 = vsub.f32 1.5, %v810
    %v812 = vmul.f32 %v807, %v811
    %vm813 = vweird.f32 %v803
    %vm814 = vweird.f32 %v807
    %vm815 = vmor %vm813, %vm814
    %v816 = vsel %vm815, %v807, %v812
    %v817 = vrsqrt.pop %v804
    %v818 = vmul.f32 %v817, %v804
    %v819 = vmul.f32 %v818, %v817
    %v820 = vmul.f32 0.5, %v819
    %v821 = vsub.f32 1.5, %v820
    %v822 = vmul.f32 %v817, %v821
    %vm823 = vweird.f32 %v804
    %vm824 = vweird.f32 %v817
    %vm825 = vmor %vm823, %vm824
    %v826 = vsel %vm825, %v817, %v822
    %v827 = vrsqrt.pop %v805
    %v828 = vmul.f32 %v827, %v805
    %v829 = vmul.f32 %v828, %v827
    %v830 = vmul.f32 0.5, %v829
    %v831 = vsub.f32 1.5, %v830
    %v832 = vmul.f32 %v827, %v831
    %vm833 = vweird.f32 %v805
    %vm834 = vweird.f32 %v827
    %vm835 = vmor %vm833, %vm834
    %v836 = vsel %vm835, %v827, %v832
    %v837 = vrsqrt.pop %v806
    %v838 = vmul.f32 %v837, %v806
    %v839 = vmul.f32 %v838, %v837
    %v840 = vmul.f32 0.5, %v839
    %v841 = vsub.f32 1.5, %v840
    %v842 = vmul.f32 %v837, %v841
    %vm843 = vweird.f32 %v806
    %vm844 = vweird.f32 %v837
    %vm845 = vmor %vm843, %vm844
    %v846 = vsel %vm845, %v837, %v842
    %v847 = vmul.f32 %v779, %v816
    %v848 = vmul.f32 %v780, %v826
    %v849 = vmul.f32 %v781, %v836
    %v850 = vmul.f32 %v782, %v846
    %v851 = vperm.slane %v755, 0
    %v852 = vmul.f32 %v847, %v851
    %v853 = vmul.f32 %v848, %v851
    %v854 = vmul.f32 %v849, %v851
    %v855 = vmul.f32 %v850, %v851
    %v856 = vperm.slane %v755, 1
    %v857 = vadd.f32 %v852, %v856
    %v858 = vadd.f32 %v853, %v856
    %v859 = vadd.f32 %v854, %v856
    %v860 = vadd.f32 %v855, %v856
    %v861 = vld [vmem:[%s5] sm:$0xff]
    %v862 = vld [vmem:[%s5 + $0x8] sm:$0xff]
    %v863 = vld [vmem:[%s5 + $0x10] sm:$0xff]
    %v864 = vld [vmem:[%s5 + $0x18] sm:$0xff]
    %v866 = vsel %vm142, %v857, 0
    %v869 = vsel %vm142, %v858, 0
    %v872 = vsel %vm142, %v859, 0
    %v875 = vsel %vm142, %v860, 0
    %877 = vmatpush.msra.mxu0 0.0
    %878 = vmatpush.msra.mxu0 0.0
    %879 = vmatpush.msra.mxu0 0.0
    %880 = vmatpush.msra.mxu0 0.0
    %881 = vmatpush.msra.mxu0 0.0
    %882 = vmatpush.msra.mxu0 0.0
    %883 = vmatpush.msra.mxu0 0.0
    %884 = vmatpush.msra.mxu0 0.0
    %885 = vmatpush.msra.mxu0 0.0
    %886 = vmatpush.msra.mxu0 0.0
    %887 = vmatpush.msra.mxu0 0.0
    %888 = vmatpush.msra.mxu0 0.0
    %889 = vmatpush.msra.mxu0 %v864
    %890 = vmatpush.msra.mxu0 %v863
    %891 = vmatpush.msra.mxu0 %v862
    %892 = vmatpush.msra.mxu0 %v861
    %893 = vmatmul.f32.gmra.mxu0 %v866
    %v894 = vpop.f32.mrf.mxu0
    %v895 = vadd.f32 0.0, %v894
    %896 = vmatmul.f32.gmra.mxu0 %v869
    %v897 = vpop.f32.mrf.mxu0
    %v898 = vadd.f32 0.0, %v897
    %899 = vmatmul.f32.gmra.mxu0 %v872
    %v900 = vpop.f32.mrf.mxu0
    %v901 = vadd.f32 0.0, %v900
    %902 = vmatmul.f32.gmra.mxu0 %v875
    %v903 = vpop.f32.mrf.mxu0
    %v904 = vadd.f32 0.0, %v903
    %905 = vdwg.mxu0
    %908 = vrot.lane.b32.xlu0 %v895, 96
    %v909 = vpop.permute.xlu0 %908
    %910 = vrot.lane.b32.xlu0 %v898, 96
    %v911 = vpop.permute.xlu0 %910
    %vm912 = vcmask 64512
    %v913 = vsel %vm912, %v895, 0
    %v915 = vsel %vm912, %v898, 0
    %v917 = vsel %vm912, %v909, 0
    %v919 = vsel %vm912, %v911, 0
    %921 = vmatpush.xpose.msra.mxu0 0.0
    %922 = vmatpush.xpose.msra.mxu0 0.0
    %923 = vmatpush.xpose.msra.mxu0 0.0
    %924 = vmatpush.xpose.msra.mxu0 0.0
    %925 = vmatpush.xpose.msra.mxu0 0.0
    %926 = vmatpush.xpose.msra.mxu0 0.0
    %927 = vmatpush.xpose.msra.mxu0 0.0
    %928 = vmatpush.xpose.msra.mxu0 0.0
    %929 = vmatpush.xpose.msra.mxu0 0.0
    %930 = vmatpush.xpose.msra.mxu0 0.0
    %931 = vmatpush.xpose.msra.mxu0 0.0
    %932 = vmatpush.xpose.msra.mxu0 0.0
    %933 = vmatpush.xpose.msra.mxu0 0.0
    %934 = vmatpush.xpose.msra.mxu0 0.0
    %935 = vmatpush.xpose.msra.mxu0 %v919
    %936 = vmatpush.xpose.msra.mxu0 %v917
    %937 = vmatmul.f32.gmra.mxu0 %v913
    %v938 = vpop.f32.mrf.mxu0
    %v939 = vadd.f32 %v733, %v938
    %940 = vmatmul.f32.gmra.mxu0 %v915
    %v941 = vpop.f32.mrf.mxu0
    %v942 = vadd.f32 %v734, %v941
    %943 = vdwg.mxu0
    %946 = vrot.lane.b32.xlu0 %v901, 96
    %v947 = vpop.permute.xlu0 %946
    %948 = vrot.lane.b32.xlu0 %v904, 96
    %v949 = vpop.permute.xlu0 %948
    %v950 = vsel %vm912, %v901, 0
    %v952 = vsel %vm912, %v904, 0
    %v954 = vsel %vm912, %v947, 0
    %v956 = vsel %vm912, %v949, 0
    %958 = vmatpush.xpose.msra.mxu0 0.0
    %959 = vmatpush.xpose.msra.mxu0 0.0
    %960 = vmatpush.xpose.msra.mxu0 0.0
    %961 = vmatpush.xpose.msra.mxu0 0.0
    %962 = vmatpush.xpose.msra.mxu0 0.0
    %963 = vmatpush.xpose.msra.mxu0 0.0
    %964 = vmatpush.xpose.msra.mxu0 0.0
    %965 = vmatpush.xpose.msra.mxu0 0.0
    %966 = vmatpush.xpose.msra.mxu0 0.0
    %967 = vmatpush.xpose.msra.mxu0 0.0
    %968 = vmatpush.xpose.msra.mxu0 0.0
    %969 = vmatpush.xpose.msra.mxu0 0.0
    %970 = vmatpush.xpose.msra.mxu0 0.0
    %971 = vmatpush.xpose.msra.mxu0 0.0
    %972 = vmatpush.xpose.msra.mxu0 %v956
    %973 = vmatpush.xpose.msra.mxu0 %v954
    %974 = vmatmul.f32.gmra.mxu0 %v950
    %v975 = vpop.f32.mrf.mxu0
    %v976 = vadd.f32 %v735, %v975
    %977 = vmatmul.f32.gmra.mxu0 %v952
    %v978 = vpop.f32.mrf.mxu0
    %v979 = vadd.f32 %v736, %v978
    %980 = vdwg.mxu0
    %v981 = vsel %vm100, %v939, -inf
    %982 = vmax.xlane.f32.xlu0 %v981
    %v983 = vpop.xlane.xlu0 %982
    %v984 = vsel %vm100, %v942, -inf
    %985 = vmax.xlane.f32.xlu0 %v984
    %v986 = vpop.xlane.xlu0 %985
    %v987 = vsel %vm100, %v976, -inf
    %988 = vmax.xlane.f32.xlu0 %v987
    %v989 = vpop.xlane.xlu0 %988
    %v990 = vsel %vm100, %v979, -inf
    %991 = vmax.xlane.f32.xlu0 %v990
    %v992 = vpop.xlane.xlu0 %991
    %v993 = vsub.f32 %v939, %v983
    %v994 = vsub.f32 %v942, %v986
    %v995 = vsub.f32 %v976, %v989
    %v996 = vsub.f32 %v979, %v992
    %v997 = vmul.f32 %v993, 1.442695
    %v998 = vpow.pop %v997
    %v999 = vmul.f32 %v994, 1.442695
    %v1000 = vpow.pop %v999
    %v1001 = vmul.f32 %v995, 1.442695
    %v1002 = vpow.pop %v1001
    %v1003 = vmul.f32 %v996, 1.442695
    %v1004 = vpow.pop %v1003
    %v1005 = vsel %vm100, %v998, 0.0
    %1006 = vadd.xlane.f32.xlu0 %v1005
    %v1007 = vpop.xlane.xlu0 %1006
    %v1008 = vsel %vm100, %v1000, 0.0
    %1009 = vadd.xlane.f32.xlu0 %v1008
    %v1010 = vpop.xlane.xlu0 %1009
    %v1011 = vsel %vm100, %v1002, 0.0
    %1012 = vadd.xlane.f32.xlu0 %v1011
    %v1013 = vpop.xlane.xlu0 %1012
    %v1014 = vsel %vm100, %v1004, 0.0
    %1015 = vadd.xlane.f32.xlu0 %v1014
    %v1016 = vpop.xlane.xlu0 %1015
    %v1017 = vrcp.pop %v1007
    %v1018 = vmul.f32 %v1007, %v1017
    %v1019 = vsub.f32 1.0, %v1018
    %v1020 = vmul.f32 %v1017, %v1019
    %v1021 = vadd.f32 %v1017, %v1020
    %vm1022 = vweird.f32 %v1007
    %vm1023 = vweird.f32 %v1017
    %vm1024 = vmor %vm1022, %vm1023
    %v1025 = vsel %vm1024, %v1017, %v1021
    %v1026 = vand.u32 2147483647, %v1007
    %vm1027 = vcmp.eq.f32.partialorder %v1026, 8.507059e+37
    %v1028 = vand.u32 %v1007, 2147483648
    %v1029 = vor.u32 1.1754944e-38, %v1028
    %v1030 = vsel %vm1027, %v1029, %v1025
    %v1031 = vmul.f32 %v998, %v1030
    %v1032 = vrcp.pop %v1010
    %v1033 = vmul.f32 %v1010, %v1032
    %v1034 = vsub.f32 1.0, %v1033
    %v1035 = vmul.f32 %v1032, %v1034
    %v1036 = vadd.f32 %v1032, %v1035
    %vm1037 = vweird.f32 %v1010
    %vm1038 = vweird.f32 %v1032
    %vm1039 = vmor %vm1037, %vm1038
    %v1040 = vsel %vm1039, %v1032, %v1036
    %v1041 = vand.u32 2147483647, %v1010
    %vm1042 = vcmp.eq.f32.partialorder %v1041, 8.507059e+37
    %v1043 = vand.u32 %v1010, 2147483648
    %v1044 = vor.u32 1.1754944e-38, %v1043
    %v1045 = vsel %vm1042, %v1044, %v1040
    %v1046 = vmul.f32 %v1000, %v1045
    %v1047 = vrcp.pop %v1013
    %v1048 = vmul.f32 %v1013, %v1047
    %v1049 = vsub.f32 1.0, %v1048
    %v1050 = vmul.f32 %v1047, %v1049
    %v1051 = vadd.f32 %v1047, %v1050
    %vm1052 = vweird.f32 %v1013
    %vm1053 = vweird.f32 %v1047
    %vm1054 = vmor %vm1052, %vm1053
    %v1055 = vsel %vm1054, %v1047, %v1051
    %v1056 = vand.u32 2147483647, %v1013
    %vm1057 = vcmp.eq.f32.partialorder %v1056, 8.507059e+37
    %v1058 = vand.u32 %v1013, 2147483648
    %v1059 = vor.u32 1.1754944e-38, %v1058
    %v1060 = vsel %vm1057, %v1059, %v1055
    %v1061 = vmul.f32 %v1002, %v1060
    %v1062 = vrcp.pop %v1016
    %v1063 = vmul.f32 %v1016, %v1062
    %v1064 = vsub.f32 1.0, %v1063
    %v1065 = vmul.f32 %v1062, %v1064
    %v1066 = vadd.f32 %v1062, %v1065
    %vm1067 = vweird.f32 %v1016
    %vm1068 = vweird.f32 %v1062
    %vm1069 = vmor %vm1067, %vm1068
    %v1070 = vsel %vm1069, %v1062, %v1066
    %v1071 = vand.u32 2147483647, %v1016
    %vm1072 = vcmp.eq.f32.partialorder %v1071, 8.507059e+37
    %v1073 = vand.u32 %v1016, 2147483648
    %v1074 = vor.u32 1.1754944e-38, %v1073
    %v1075 = vsel %vm1072, %v1074, %v1070
    %v1076 = vmul.f32 %v1004, %v1075
    %1077 = vrot.lane.b32.xlu0 %v895, 64
    %v1078 = vpop.permute.xlu0 %1077
    %1079 = vrot.lane.b32.xlu0 %v898, 64
    %v1080 = vpop.permute.xlu0 %1079
    %v1084 = vsel %vm100, %v1031, 0
    %v1087 = vsel %vm100, %v1046, 0
    %1089 = vmatpush.msra.mxu0 0.0
    %1090 = vmatpush.msra.mxu0 0.0
    %1091 = vmatpush.msra.mxu0 0.0
    %1092 = vmatpush.msra.mxu0 0.0
    %1093 = vmatpush.msra.mxu0 0.0
    %1094 = vmatpush.msra.mxu0 0.0
    %1095 = vmatpush.msra.mxu0 0.0
    %1096 = vmatpush.msra.mxu0 0.0
    %1097 = vmatpush.msra.mxu0 0.0
    %1098 = vmatpush.msra.mxu0 0.0
    %1099 = vmatpush.msra.mxu0 0.0
    %1100 = vmatpush.msra.mxu0 0.0
    %1101 = vmatpush.msra.mxu0 0.0
    %1102 = vmatpush.msra.mxu0 0.0
    %1103 = vmatpush.msra.mxu0 %v1080
    %1104 = vmatpush.msra.mxu0 %v1078
    %1105 = vmatmul.f32.gmra.mxu0 %v1084
    %v1106 = vpop.f32.mrf.mxu0
    %v1107 = vadd.f32 0.0, %v1106
    %1108 = vmatmul.f32.gmra.mxu0 %v1087
    %v1109 = vpop.f32.mrf.mxu0
    %v1110 = vadd.f32 0.0, %v1109
    %1111 = vdwg.mxu0
    %1112 = vrot.lane.b32.xlu0 %v901, 64
    %v1113 = vpop.permute.xlu0 %1112
    %1114 = vrot.lane.b32.xlu0 %v904, 64
    %v1115 = vpop.permute.xlu0 %1114
    %v1119 = vsel %vm100, %v1061, 0
    %v1122 = vsel %vm100, %v1076, 0
    %1124 = vmatpush.msra.mxu0 0.0
    %1125 = vmatpush.msra.mxu0 0.0
    %1126 = vmatpush.msra.mxu0 0.0
    %1127 = vmatpush.msra.mxu0 0.0
    %1128 = vmatpush.msra.mxu0 0.0
    %1129 = vmatpush.msra.mxu0 0.0
    %1130 = vmatpush.msra.mxu0 0.0
    %1131 = vmatpush.msra.mxu0 0.0
    %1132 = vmatpush.msra.mxu0 0.0
    %1133 = vmatpush.msra.mxu0 0.0
    %1134 = vmatpush.msra.mxu0 0.0
    %1135 = vmatpush.msra.mxu0 0.0
    %1136 = vmatpush.msra.mxu0 0.0
    %1137 = vmatpush.msra.mxu0 0.0
    %1138 = vmatpush.msra.mxu0 %v1115
    %1139 = vmatpush.msra.mxu0 %v1113
    %1140 = vmatmul.f32.gmra.mxu0 %v1119
    %v1141 = vpop.f32.mrf.mxu0
    %v1142 = vadd.f32 0.0, %v1141
    %1143 = vmatmul.f32.gmra.mxu0 %v1122
    %v1144 = vpop.f32.mrf.mxu0
    %v1145 = vadd.f32 0.0, %v1144
    %1146 = vdwg.mxu0
    %1147 = vrot.lane.b32.xlu0 %v895, 120
    %v1148 = vpop.permute.xlu0 %1147
    %1149 = vrot.lane.b32.xlu0 %v898, 120
    %v1150 = vpop.permute.xlu0 %1149
    %1151 = vrot.lane.b32.xlu0 %v895, 88
    %v1152 = vpop.permute.xlu0 %1151
    %1153 = vrot.lane.b32.xlu0 %v898, 88
    %v1154 = vpop.permute.xlu0 %1153
    %v1155 = vsel %vm912, %v1148, 0
    %v1157 = vsel %vm912, %v1150, 0
    %v1159 = vsel %vm912, %v1152, 0
    %v1161 = vsel %vm912, %v1154, 0
    %1163 = vmatpush.xpose.msra.mxu0 0.0
    %1164 = vmatpush.xpose.msra.mxu0 0.0
    %1165 = vmatpush.xpose.msra.mxu0 0.0
    %1166 = vmatpush.xpose.msra.mxu0 0.0
    %1167 = vmatpush.xpose.msra.mxu0 0.0
    %1168 = vmatpush.xpose.msra.mxu0 0.0
    %1169 = vmatpush.xpose.msra.mxu0 0.0
    %1170 = vmatpush.xpose.msra.mxu0 0.0
    %1171 = vmatpush.xpose.msra.mxu0 0.0
    %1172 = vmatpush.xpose.msra.mxu0 0.0
    %1173 = vmatpush.xpose.msra.mxu0 0.0
    %1174 = vmatpush.xpose.msra.mxu0 0.0
    %1175 = vmatpush.xpose.msra.mxu0 0.0
    %1176 = vmatpush.xpose.msra.mxu0 0.0
    %1177 = vmatpush.xpose.msra.mxu0 %v1161
    %1178 = vmatpush.xpose.msra.mxu0 %v1159
    %1179 = vmatmul.f32.gmra.mxu0 %v1155
    %v1180 = vpop.f32.mrf.mxu0
    %v1181 = vadd.f32 %v739, %v1180
    %1182 = vmatmul.f32.gmra.mxu0 %v1157
    %v1183 = vpop.f32.mrf.mxu0
    %v1184 = vadd.f32 %v740, %v1183
    %1185 = vdwg.mxu0
    %1186 = vrot.lane.b32.xlu0 %v901, 120
    %v1187 = vpop.permute.xlu0 %1186
    %1188 = vrot.lane.b32.xlu0 %v904, 120
    %v1189 = vpop.permute.xlu0 %1188
    %1190 = vrot.lane.b32.xlu0 %v901, 88
    %v1191 = vpop.permute.xlu0 %1190
    %1192 = vrot.lane.b32.xlu0 %v904, 88
    %v1193 = vpop.permute.xlu0 %1192
    %v1194 = vsel %vm912, %v1187, 0
    %v1196 = vsel %vm912, %v1189, 0
    %v1198 = vsel %vm912, %v1191, 0
    %v1200 = vsel %vm912, %v1193, 0
    %1202 = vmatpush.xpose.msra.mxu0 0.0
    %1203 = vmatpush.xpose.msra.mxu0 0.0
    %1204 = vmatpush.xpose.msra.mxu0 0.0
    %1205 = vmatpush.xpose.msra.mxu0 0.0
    %1206 = vmatpush.xpose.msra.mxu0 0.0
    %1207 = vmatpush.xpose.msra.mxu0 0.0
    %1208 = vmatpush.xpose.msra.mxu0 0.0
    %1209 = vmatpush.xpose.msra.mxu0 0.0
    %1210 = vmatpush.xpose.msra.mxu0 0.0
    %1211 = vmatpush.xpose.msra.mxu0 0.0
    %1212 = vmatpush.xpose.msra.mxu0 0.0
    %1213 = vmatpush.xpose.msra.mxu0 0.0
    %1214 = vmatpush.xpose.msra.mxu0 0.0
    %1215 = vmatpush.xpose.msra.mxu0 0.0
    %1216 = vmatpush.xpose.msra.mxu0 %v1200
    %1217 = vmatpush.xpose.msra.mxu0 %v1198
    %1218 = vmatmul.f32.gmra.mxu0 %v1194
    %v1219 = vpop.f32.mrf.mxu0
    %v1220 = vadd.f32 %v741, %v1219
    %1221 = vmatmul.f32.gmra.mxu0 %v1196
    %v1222 = vpop.f32.mrf.mxu0
    %v1223 = vadd.f32 %v742, %v1222
    %1224 = vdwg.mxu0
    %v1225 = vsel %vm100, %v1181, -inf
    %1226 = vmax.xlane.f32.xlu0 %v1225
    %v1227 = vpop.xlane.xlu0 %1226
    %v1228 = vsel %vm100, %v1184, -inf
    %1229 = vmax.xlane.f32.xlu0 %v1228
    %v1230 = vpop.xlane.xlu0 %1229
    %v1231 = vsel %vm100, %v1220, -inf
    %1232 = vmax.xlane.f32.xlu0 %v1231
    %v1233 = vpop.xlane.xlu0 %1232
    %v1234 = vsel %vm100, %v1223, -inf
    %1235 = vmax.xlane.f32.xlu0 %v1234
    %v1236 = vpop.xlane.xlu0 %1235
    %v1237 = vsub.f32 %v1181, %v1227
    %v1238 = vsub.f32 %v1184, %v1230
    %v1239 = vsub.f32 %v1220, %v1233
    %v1240 = vsub.f32 %v1223, %v1236
    %v1241 = vmul.f32 %v1237, 1.442695
    %v1242 = vpow.pop %v1241
    %v1243 = vmul.f32 %v1238, 1.442695
    %v1244 = vpow.pop %v1243
    %v1245 = vmul.f32 %v1239, 1.442695
    %v1246 = vpow.pop %v1245
    %v1247 = vmul.f32 %v1240, 1.442695
    %v1248 = vpow.pop %v1247
    %v1249 = vsel %vm100, %v1242, 0.0
    %1250 = vadd.xlane.f32.xlu0 %v1249
    %v1251 = vpop.xlane.xlu0 %1250
    %v1252 = vsel %vm100, %v1244, 0.0
    %1253 = vadd.xlane.f32.xlu0 %v1252
    %v1254 = vpop.xlane.xlu0 %1253
    %v1255 = vsel %vm100, %v1246, 0.0
    %1256 = vadd.xlane.f32.xlu0 %v1255
    %v1257 = vpop.xlane.xlu0 %1256
    %v1258 = vsel %vm100, %v1248, 0.0
    %1259 = vadd.xlane.f32.xlu0 %v1258
    %v1260 = vpop.xlane.xlu0 %1259
    %v1261 = vrcp.pop %v1251
    %v1262 = vmul.f32 %v1251, %v1261
    %v1263 = vsub.f32 1.0, %v1262
    %v1264 = vmul.f32 %v1261, %v1263
    %v1265 = vadd.f32 %v1261, %v1264
    %vm1266 = vweird.f32 %v1251
    %vm1267 = vweird.f32 %v1261
    %vm1268 = vmor %vm1266, %vm1267
    %v1269 = vsel %vm1268, %v1261, %v1265
    %v1270 = vand.u32 2147483647, %v1251
    %vm1271 = vcmp.eq.f32.partialorder %v1270, 8.507059e+37
    %v1272 = vand.u32 %v1251, 2147483648
    %v1273 = vor.u32 1.1754944e-38, %v1272
    %v1274 = vsel %vm1271, %v1273, %v1269
    %v1275 = vmul.f32 %v1242, %v1274
    %v1276 = vrcp.pop %v1254
    %v1277 = vmul.f32 %v1254, %v1276
    %v1278 = vsub.f32 1.0, %v1277
    %v1279 = vmul.f32 %v1276, %v1278
    %v1280 = vadd.f32 %v1276, %v1279
    %vm1281 = vweird.f32 %v1254
    %vm1282 = vweird.f32 %v1276
    %vm1283 = vmor %vm1281, %vm1282
    %v1284 = vsel %vm1283, %v1276, %v1280
    %v1285 = vand.u32 2147483647, %v1254
    %vm1286 = vcmp.eq.f32.partialorder %v1285, 8.507059e+37
    %v1287 = vand.u32 %v1254, 2147483648
    %v1288 = vor.u32 1.1754944e-38, %v1287
    %v1289 = vsel %vm1286, %v1288, %v1284
    %v1290 = vmul.f32 %v1244, %v1289
    %v1291 = vrcp.pop %v1257
    %v1292 = vmul.f32 %v1257, %v1291
    %v1293 = vsub.f32 1.0, %v1292
    %v1294 = vmul.f32 %v1291, %v1293
    %v1295 = vadd.f32 %v1291, %v1294
    %vm1296 = vweird.f32 %v1257
    %vm1297 = vweird.f32 %v1291
    %vm1298 = vmor %vm1296, %vm1297
    %v1299 = vsel %vm1298, %v1291, %v1295
    %v1300 = vand.u32 2147483647, %v1257
    %vm1301 = vcmp.eq.f32.partialorder %v1300, 8.507059e+37
    %v1302 = vand.u32 %v1257, 2147483648
    %v1303 = vor.u32 1.1754944e-38, %v1302
    %v1304 = vsel %vm1301, %v1303, %v1299
    %v1305 = vmul.f32 %v1246, %v1304
    %v1306 = vrcp.pop %v1260
    %v1307 = vmul.f32 %v1260, %v1306
    %v1308 = vsub.f32 1.0, %v1307
    %v1309 = vmul.f32 %v1306, %v1308
    %v1310 = vadd.f32 %v1306, %v1309
    %vm1311 = vweird.f32 %v1260
    %vm1312 = vweird.f32 %v1306
    %vm1313 = vmor %vm1311, %vm1312
    %v1314 = vsel %vm1313, %v1306, %v1310
    %v1315 = vand.u32 2147483647, %v1260
    %vm1316 = vcmp.eq.f32.partialorder %v1315, 8.507059e+37
    %v1317 = vand.u32 %v1260, 2147483648
    %v1318 = vor.u32 1.1754944e-38, %v1317
    %v1319 = vsel %vm1316, %v1318, %v1314
    %v1320 = vmul.f32 %v1248, %v1319
    %1321 = vrot.lane.b32.xlu0 %v895, 56
    %v1322 = vpop.permute.xlu0 %1321
    %1323 = vrot.lane.b32.xlu0 %v898, 56
    %v1324 = vpop.permute.xlu0 %1323
    %v1328 = vsel %vm100, %v1275, 0
    %v1331 = vsel %vm100, %v1290, 0
    %1333 = vmatpush.msra.mxu0 0.0
    %1334 = vmatpush.msra.mxu0 0.0
    %1335 = vmatpush.msra.mxu0 0.0
    %1336 = vmatpush.msra.mxu0 0.0
    %1337 = vmatpush.msra.mxu0 0.0
    %1338 = vmatpush.msra.mxu0 0.0
    %1339 = vmatpush.msra.mxu0 0.0
    %1340 = vmatpush.msra.mxu0 0.0
    %1341 = vmatpush.msra.mxu0 0.0
    %1342 = vmatpush.msra.mxu0 0.0
    %1343 = vmatpush.msra.mxu0 0.0
    %1344 = vmatpush.msra.mxu0 0.0
    %1345 = vmatpush.msra.mxu0 0.0
    %1346 = vmatpush.msra.mxu0 0.0
    %1347 = vmatpush.msra.mxu0 %v1324
    %1348 = vmatpush.msra.mxu0 %v1322
    %1349 = vmatmul.f32.gmra.mxu0 %v1328
    %v1350 = vpop.f32.mrf.mxu0
    %v1351 = vadd.f32 0.0, %v1350
    %1352 = vmatmul.f32.gmra.mxu0 %v1331
    %v1353 = vpop.f32.mrf.mxu0
    %v1354 = vadd.f32 0.0, %v1353
    %1355 = vdwg.mxu0
    %1356 = vrot.lane.b32.xlu0 %v901, 56
    %v1357 = vpop.permute.xlu0 %1356
    %1358 = vrot.lane.b32.xlu0 %v904, 56
    %v1359 = vpop.permute.xlu0 %1358
    %v1363 = vsel %vm100, %v1305, 0
    %v1366 = vsel %vm100, %v1320, 0
    %1368 = vmatpush.msra.mxu0 0.0
    %1369 = vmatpush.msra.mxu0 0.0
    %1370 = vmatpush.msra.mxu0 0.0
    %1371 = vmatpush.msra.mxu0 0.0
    %1372 = vmatpush.msra.mxu0 0.0
    %1373 = vmatpush.msra.mxu0 0.0
    %1374 = vmatpush.msra.mxu0 0.0
    %1375 = vmatpush.msra.mxu0 0.0
    %1376 = vmatpush.msra.mxu0 0.0
    %1377 = vmatpush.msra.mxu0 0.0
    %1378 = vmatpush.msra.mxu0 0.0
    %1379 = vmatpush.msra.mxu0 0.0
    %1380 = vmatpush.msra.mxu0 0.0
    %1381 = vmatpush.msra.mxu0 0.0
    %1382 = vmatpush.msra.mxu0 %v1359
    %1383 = vmatpush.msra.mxu0 %v1357
    %1384 = vmatmul.f32.gmra.mxu0 %v1363
    %v1385 = vpop.f32.mrf.mxu0
    %v1386 = vadd.f32 0.0, %v1385
    %1387 = vmatmul.f32.gmra.mxu0 %v1366
    %v1388 = vpop.f32.mrf.mxu0
    %v1389 = vadd.f32 0.0, %v1388
    %1390 = vdwg.mxu0
    %1391 = vrot.lane.b32.xlu0 %v895, 112
    %v1392 = vpop.permute.xlu0 %1391
    %1393 = vrot.lane.b32.xlu0 %v898, 112
    %v1394 = vpop.permute.xlu0 %1393
    %1395 = vrot.lane.b32.xlu0 %v895, 80
    %v1396 = vpop.permute.xlu0 %1395
    %1397 = vrot.lane.b32.xlu0 %v898, 80
    %v1398 = vpop.permute.xlu0 %1397
    %v1399 = vsel %vm912, %v1392, 0
    %v1401 = vsel %vm912, %v1394, 0
    %v1403 = vsel %vm912, %v1396, 0
    %v1405 = vsel %vm912, %v1398, 0
    %1407 = vmatpush.xpose.msra.mxu0 0.0
    %1408 = vmatpush.xpose.msra.mxu0 0.0
    %1409 = vmatpush.xpose.msra.mxu0 0.0
    %1410 = vmatpush.xpose.msra.mxu0 0.0
    %1411 = vmatpush.xpose.msra.mxu0 0.0
    %1412 = vmatpush.xpose.msra.mxu0 0.0
    %1413 = vmatpush.xpose.msra.mxu0 0.0
    %1414 = vmatpush.xpose.msra.mxu0 0.0
    %1415 = vmatpush.xpose.msra.mxu0 0.0
    %1416 = vmatpush.xpose.msra.mxu0 0.0
    %1417 = vmatpush.xpose.msra.mxu0 0.0
    %1418 = vmatpush.xpose.msra.mxu0 0.0
    %1419 = vmatpush.xpose.msra.mxu0 0.0
    %1420 = vmatpush.xpose.msra.mxu0 0.0
    %1421 = vmatpush.xpose.msra.mxu0 %v1405
    %1422 = vmatpush.xpose.msra.mxu0 %v1403
    %1423 = vmatmul.f32.gmra.mxu0 %v1399
    %v1424 = vpop.f32.mrf.mxu0
    %v1425 = vadd.f32 %v745, %v1424
    %1426 = vmatmul.f32.gmra.mxu0 %v1401
    %v1427 = vpop.f32.mrf.mxu0
    %v1428 = vadd.f32 %v746, %v1427
    %1429 = vdwg.mxu0
    %1430 = vrot.lane.b32.xlu0 %v901, 112
    %v1431 = vpop.permute.xlu0 %1430
    %1432 = vrot.lane.b32.xlu0 %v904, 112
    %v1433 = vpop.permute.xlu0 %1432
    %1434 = vrot.lane.b32.xlu0 %v901, 80
    %v1435 = vpop.permute.xlu0 %1434
    %1436 = vrot.lane.b32.xlu0 %v904, 80
    %v1437 = vpop.permute.xlu0 %1436
    %v1438 = vsel %vm912, %v1431, 0
    %v1440 = vsel %vm912, %v1433, 0
    %v1442 = vsel %vm912, %v1435, 0
    %v1444 = vsel %vm912, %v1437, 0
    %1446 = vmatpush.xpose.msra.mxu0 0.0
    %1447 = vmatpush.xpose.msra.mxu0 0.0
    %1448 = vmatpush.xpose.msra.mxu0 0.0
    %1449 = vmatpush.xpose.msra.mxu0 0.0
    %1450 = vmatpush.xpose.msra.mxu0 0.0
    %1451 = vmatpush.xpose.msra.mxu0 0.0
    %1452 = vmatpush.xpose.msra.mxu0 0.0
    %1453 = vmatpush.xpose.msra.mxu0 0.0
    %1454 = vmatpush.xpose.msra.mxu0 0.0
    %1455 = vmatpush.xpose.msra.mxu0 0.0
    %1456 = vmatpush.xpose.msra.mxu0 0.0
    %1457 = vmatpush.xpose.msra.mxu0 0.0
    %1458 = vmatpush.xpose.msra.mxu0 0.0
    %1459 = vmatpush.xpose.msra.mxu0 0.0
    %1460 = vmatpush.xpose.msra.mxu0 %v1444
    %1461 = vmatpush.xpose.msra.mxu0 %v1442
    %1462 = vmatmul.f32.gmra.mxu0 %v1438
    %v1463 = vpop.f32.mrf.mxu0
    %v1464 = vadd.f32 %v747, %v1463
    %1465 = vmatmul.f32.gmra.mxu0 %v1440
    %v1466 = vpop.f32.mrf.mxu0
    %v1467 = vadd.f32 %v748, %v1466
    %1468 = vdwg.mxu0
    %v1469 = vsel %vm100, %v1425, -inf
    %1470 = vmax.xlane.f32.xlu0 %v1469
    %v1471 = vpop.xlane.xlu0 %1470
    %v1472 = vsel %vm100, %v1428, -inf
    %1473 = vmax.xlane.f32.xlu0 %v1472
    %v1474 = vpop.xlane.xlu0 %1473
    %v1475 = vsel %vm100, %v1464, -inf
    %1476 = vmax.xlane.f32.xlu0 %v1475
    %v1477 = vpop.xlane.xlu0 %1476
    %v1478 = vsel %vm100, %v1467, -inf
    %1479 = vmax.xlane.f32.xlu0 %v1478
    %v1480 = vpop.xlane.xlu0 %1479
    %v1481 = vsub.f32 %v1425, %v1471
    %v1482 = vsub.f32 %v1428, %v1474
    %v1483 = vsub.f32 %v1464, %v1477
    %v1484 = vsub.f32 %v1467, %v1480
    %v1485 = vmul.f32 %v1481, 1.442695
    %v1486 = vpow.pop %v1485
    %v1487 = vmul.f32 %v1482, 1.442695
    %v1488 = vpow.pop %v1487
    %v1489 = vmul.f32 %v1483, 1.442695
    %v1490 = vpow.pop %v1489
    %v1491 = vmul.f32 %v1484, 1.442695
    %v1492 = vpow.pop %v1491
    %v1493 = vsel %vm100, %v1486, 0.0
    %1494 = vadd.xlane.f32.xlu0 %v1493
    %v1495 = vpop.xlane.xlu0 %1494
    %v1496 = vsel %vm100, %v1488, 0.0
    %1497 = vadd.xlane.f32.xlu0 %v1496
    %v1498 = vpop.xlane.xlu0 %1497
    %v1499 = vsel %vm100, %v1490, 0.0
    %1500 = vadd.xlane.f32.xlu0 %v1499
    %v1501 = vpop.xlane.xlu0 %1500
    %v1502 = vsel %vm100, %v1492, 0.0
    %1503 = vadd.xlane.f32.xlu0 %v1502
    %v1504 = vpop.xlane.xlu0 %1503
    %v1505 = vrcp.pop %v1495
    %v1506 = vmul.f32 %v1495, %v1505
    %v1507 = vsub.f32 1.0, %v1506
    %v1508 = vmul.f32 %v1505, %v1507
    %v1509 = vadd.f32 %v1505, %v1508
    %vm1510 = vweird.f32 %v1495
    %vm1511 = vweird.f32 %v1505
    %vm1512 = vmor %vm1510, %vm1511
    %v1513 = vsel %vm1512, %v1505, %v1509
    %v1514 = vand.u32 2147483647, %v1495
    %vm1515 = vcmp.eq.f32.partialorder %v1514, 8.507059e+37
    %v1516 = vand.u32 %v1495, 2147483648
    %v1517 = vor.u32 1.1754944e-38, %v1516
    %v1518 = vsel %vm1515, %v1517, %v1513
    %v1519 = vmul.f32 %v1486, %v1518
    %v1520 = vrcp.pop %v1498
    %v1521 = vmul.f32 %v1498, %v1520
    %v1522 = vsub.f32 1.0, %v1521
    %v1523 = vmul.f32 %v1520, %v1522
    %v1524 = vadd.f32 %v1520, %v1523
    %vm1525 = vweird.f32 %v1498
    %vm1526 = vweird.f32 %v1520
    %vm1527 = vmor %vm1525, %vm1526
    %v1528 = vsel %vm1527, %v1520, %v1524
    %v1529 = vand.u32 2147483647, %v1498
    %vm1530 = vcmp.eq.f32.partialorder %v1529, 8.507059e+37
    %v1531 = vand.u32 %v1498, 2147483648
    %v1532 = vor.u32 1.1754944e-38, %v1531
    %v1533 = vsel %vm1530, %v1532, %v1528
    %v1534 = vmul.f32 %v1488, %v1533
    %v1535 = vrcp.pop %v1501
    %v1536 = vmul.f32 %v1501, %v1535
    %v1537 = vsub.f32 1.0, %v1536
    %v1538 = vmul.f32 %v1535, %v1537
    %v1539 = vadd.f32 %v1535, %v1538
    %vm1540 = vweird.f32 %v1501
    %vm1541 = vweird.f32 %v1535
    %vm1542 = vmor %vm1540, %vm1541
    %v1543 = vsel %vm1542, %v1535, %v1539
    %v1544 = vand.u32 2147483647, %v1501
    %vm1545 = vcmp.eq.f32.partialorder %v1544, 8.507059e+37
    %v1546 = vand.u32 %v1501, 2147483648
    %v1547 = vor.u32 1.1754944e-38, %v1546
    %v1548 = vsel %vm1545, %v1547, %v1543
    %v1549 = vmul.f32 %v1490, %v1548
    %v1550 = vrcp.pop %v1504
    %v1551 = vmul.f32 %v1504, %v1550
    %v1552 = vsub.f32 1.0, %v1551
    %v1553 = vmul.f32 %v1550, %v1552
    %v1554 = vadd.f32 %v1550, %v1553
    %vm1555 = vweird.f32 %v1504
    %vm1556 = vweird.f32 %v1550
    %vm1557 = vmor %vm1555, %vm1556
    %v1558 = vsel %vm1557, %v1550, %v1554
    %v1559 = vand.u32 2147483647, %v1504
    %vm1560 = vcmp.eq.f32.partialorder %v1559, 8.507059e+37
    %v1561 = vand.u32 %v1504, 2147483648
    %v1562 = vor.u32 1.1754944e-38, %v1561
    %v1563 = vsel %vm1560, %v1562, %v1558
    %v1564 = vmul.f32 %v1492, %v1563
    %1565 = vrot.lane.b32.xlu0 %v895, 48
    %v1566 = vpop.permute.xlu0 %1565
    %1567 = vrot.lane.b32.xlu0 %v898, 48
    %v1568 = vpop.permute.xlu0 %1567
    %v1572 = vsel %vm100, %v1519, 0
    %v1575 = vsel %vm100, %v1534, 0
    %1577 = vmatpush.msra.mxu0 0.0
    %1578 = vmatpush.msra.mxu0 0.0
    %1579 = vmatpush.msra.mxu0 0.0
    %1580 = vmatpush.msra.mxu0 0.0
    %1581 = vmatpush.msra.mxu0 0.0
    %1582 = vmatpush.msra.mxu0 0.0
    %1583 = vmatpush.msra.mxu0 0.0
    %1584 = vmatpush.msra.mxu0 0.0
    %1585 = vmatpush.msra.mxu0 0.0
    %1586 = vmatpush.msra.mxu0 0.0
    %1587 = vmatpush.msra.mxu0 0.0
    %1588 = vmatpush.msra.mxu0 0.0
    %1589 = vmatpush.msra.mxu0 0.0
    %1590 = vmatpush.msra.mxu0 0.0
    %1591 = vmatpush.msra.mxu0 %v1568
    %1592 = vmatpush.msra.mxu0 %v1566
    %1593 = vmatmul.f32.gmra.mxu0 %v1572
    %v1594 = vpop.f32.mrf.mxu0
    %v1595 = vadd.f32 0.0, %v1594
    %1596 = vmatmul.f32.gmra.mxu0 %v1575
    %v1597 = vpop.f32.mrf.mxu0
    %v1598 = vadd.f32 0.0, %v1597
    %1599 = vdwg.mxu0
    %1600 = vrot.lane.b32.xlu0 %v901, 48
    %v1601 = vpop.permute.xlu0 %1600
    %1602 = vrot.lane.b32.xlu0 %v904, 48
    %v1603 = vpop.permute.xlu0 %1602
    %v1607 = vsel %vm100, %v1549, 0
    %v1610 = vsel %vm100, %v1564, 0
    %1612 = vmatpush.msra.mxu0 0.0
    %1613 = vmatpush.msra.mxu0 0.0
    %1614 = vmatpush.msra.mxu0 0.0
    %1615 = vmatpush.msra.mxu0 0.0
    %1616 = vmatpush.msra.mxu0 0.0
    %1617 = vmatpush.msra.mxu0 0.0
    %1618 = vmatpush.msra.mxu0 0.0
    %1619 = vmatpush.msra.mxu0 0.0
    %1620 = vmatpush.msra.mxu0 0.0
    %1621 = vmatpush.msra.mxu0 0.0
    %1622 = vmatpush.msra.mxu0 0.0
    %1623 = vmatpush.msra.mxu0 0.0
    %1624 = vmatpush.msra.mxu0 0.0
    %1625 = vmatpush.msra.mxu0 0.0
    %1626 = vmatpush.msra.mxu0 %v1603
    %1627 = vmatpush.msra.mxu0 %v1601
    %1628 = vmatmul.f32.gmra.mxu0 %v1607
    %v1629 = vpop.f32.mrf.mxu0
    %v1630 = vadd.f32 0.0, %v1629
    %1631 = vmatmul.f32.gmra.mxu0 %v1610
    %v1632 = vpop.f32.mrf.mxu0
    %v1633 = vadd.f32 0.0, %v1632
    %1634 = vdwg.mxu0
    %1635 = vrot.lane.b32.xlu0 %v895, 104
    %v1636 = vpop.permute.xlu0 %1635
    %1637 = vrot.lane.b32.xlu0 %v898, 104
    %v1638 = vpop.permute.xlu0 %1637
    %1639 = vrot.lane.b32.xlu0 %v895, 72
    %v1640 = vpop.permute.xlu0 %1639
    %1641 = vrot.lane.b32.xlu0 %v898, 72
    %v1642 = vpop.permute.xlu0 %1641
    %v1643 = vsel %vm912, %v1636, 0
    %v1645 = vsel %vm912, %v1638, 0
    %v1647 = vsel %vm912, %v1640, 0
    %v1649 = vsel %vm912, %v1642, 0
    %1651 = vmatpush.xpose.msra.mxu0 0.0
    %1652 = vmatpush.xpose.msra.mxu0 0.0
    %1653 = vmatpush.xpose.msra.mxu0 0.0
    %1654 = vmatpush.xpose.msra.mxu0 0.0
    %1655 = vmatpush.xpose.msra.mxu0 0.0
    %1656 = vmatpush.xpose.msra.mxu0 0.0
    %1657 = vmatpush.xpose.msra.mxu0 0.0
    %1658 = vmatpush.xpose.msra.mxu0 0.0
    %1659 = vmatpush.xpose.msra.mxu0 0.0
    %1660 = vmatpush.xpose.msra.mxu0 0.0
    %1661 = vmatpush.xpose.msra.mxu0 0.0
    %1662 = vmatpush.xpose.msra.mxu0 0.0
    %1663 = vmatpush.xpose.msra.mxu0 0.0
    %1664 = vmatpush.xpose.msra.mxu0 0.0
    %1665 = vmatpush.xpose.msra.mxu0 %v1649
    %1666 = vmatpush.xpose.msra.mxu0 %v1647
    %1667 = vmatmul.f32.gmra.mxu0 %v1643
    %v1668 = vpop.f32.mrf.mxu0
    %v1669 = vadd.f32 %v751, %v1668
    %1670 = vmatmul.f32.gmra.mxu0 %v1645
    %v1671 = vpop.f32.mrf.mxu0
    %v1672 = vadd.f32 %v752, %v1671
    %1673 = vdwg.mxu0
    %1674 = vrot.lane.b32.xlu0 %v901, 104
    %v1675 = vpop.permute.xlu0 %1674
    %1676 = vrot.lane.b32.xlu0 %v904, 104
    %v1677 = vpop.permute.xlu0 %1676
    %1678 = vrot.lane.b32.xlu0 %v901, 72
    %v1679 = vpop.permute.xlu0 %1678
    %1680 = vrot.lane.b32.xlu0 %v904, 72
    %v1681 = vpop.permute.xlu0 %1680
    %v1682 = vsel %vm912, %v1675, 0
    %v1684 = vsel %vm912, %v1677, 0
    %v1686 = vsel %vm912, %v1679, 0
    %v1688 = vsel %vm912, %v1681, 0
    %1690 = vmatpush.xpose.msra.mxu0 0.0
    %1691 = vmatpush.xpose.msra.mxu0 0.0
    %1692 = vmatpush.xpose.msra.mxu0 0.0
    %1693 = vmatpush.xpose.msra.mxu0 0.0
    %1694 = vmatpush.xpose.msra.mxu0 0.0
    %1695 = vmatpush.xpose.msra.mxu0 0.0
    %1696 = vmatpush.xpose.msra.mxu0 0.0
    %1697 = vmatpush.xpose.msra.mxu0 0.0
    %1698 = vmatpush.xpose.msra.mxu0 0.0
    %1699 = vmatpush.xpose.msra.mxu0 0.0
    %1700 = vmatpush.xpose.msra.mxu0 0.0
    %1701 = vmatpush.xpose.msra.mxu0 0.0
    %1702 = vmatpush.xpose.msra.mxu0 0.0
    %1703 = vmatpush.xpose.msra.mxu0 0.0
    %1704 = vmatpush.xpose.msra.mxu0 %v1688
    %1705 = vmatpush.xpose.msra.mxu0 %v1686
    %1706 = vmatmul.f32.gmra.mxu0 %v1682
    %v1707 = vpop.f32.mrf.mxu0
    %v1708 = vadd.f32 %v753, %v1707
    %1709 = vmatmul.f32.gmra.mxu0 %v1684
    %v1710 = vpop.f32.mrf.mxu0
    %v1711 = vadd.f32 %v754, %v1710
    %1712 = vdwg.mxu0
    %v1713 = vsel %vm100, %v1669, -inf
    %1714 = vmax.xlane.f32.xlu0 %v1713
    %v1715 = vpop.xlane.xlu0 %1714
    %v1716 = vsel %vm100, %v1672, -inf
    %1717 = vmax.xlane.f32.xlu0 %v1716
    %v1718 = vpop.xlane.xlu0 %1717
    %v1719 = vsel %vm100, %v1708, -inf
    %1720 = vmax.xlane.f32.xlu0 %v1719
    %v1721 = vpop.xlane.xlu0 %1720
    %v1722 = vsel %vm100, %v1711, -inf
    %1723 = vmax.xlane.f32.xlu0 %v1722
    %v1724 = vpop.xlane.xlu0 %1723
    %v1725 = vsub.f32 %v1669, %v1715
    %v1726 = vsub.f32 %v1672, %v1718
    %v1727 = vsub.f32 %v1708, %v1721
    %v1728 = vsub.f32 %v1711, %v1724
    %v1729 = vmul.f32 %v1725, 1.442695
    %v1730 = vpow.pop %v1729
    %v1731 = vmul.f32 %v1726, 1.442695
    %v1732 = vpow.pop %v1731
    %v1733 = vmul.f32 %v1727, 1.442695
    %v1734 = vpow.pop %v1733
    %v1735 = vmul.f32 %v1728, 1.442695
    %v1736 = vpow.pop %v1735
    %v1737 = vsel %vm100, %v1730, 0.0
    %1738 = vadd.xlane.f32.xlu0 %v1737
    %v1739 = vpop.xlane.xlu0 %1738
    %v1740 = vsel %vm100, %v1732, 0.0
    %1741 = vadd.xlane.f32.xlu0 %v1740
    %v1742 = vpop.xlane.xlu0 %1741
    %v1743 = vsel %vm100, %v1734, 0.0
    %1744 = vadd.xlane.f32.xlu0 %v1743
    %v1745 = vpop.xlane.xlu0 %1744
    %v1746 = vsel %vm100, %v1736, 0.0
    %1747 = vadd.xlane.f32.xlu0 %v1746
    %v1748 = vpop.xlane.xlu0 %1747
    %v1749 = vrcp.pop %v1739
    %v1750 = vmul.f32 %v1739, %v1749
    %v1751 = vsub.f32 1.0, %v1750
    %v1752 = vmul.f32 %v1749, %v1751
    %v1753 = vadd.f32 %v1749, %v1752
    %vm1754 = vweird.f32 %v1739
    %vm1755 = vweird.f32 %v1749
    %vm1756 = vmor %vm1754, %vm1755
    %v1757 = vsel %vm1756, %v1749, %v1753
    %v1758 = vand.u32 2147483647, %v1739
    %vm1759 = vcmp.eq.f32.partialorder %v1758, 8.507059e+37
    %v1760 = vand.u32 %v1739, 2147483648
    %v1761 = vor.u32 1.1754944e-38, %v1760
    %v1762 = vsel %vm1759, %v1761, %v1757
    %v1763 = vmul.f32 %v1730, %v1762
    %v1764 = vrcp.pop %v1742
    %v1765 = vmul.f32 %v1742, %v1764
    %v1766 = vsub.f32 1.0, %v1765
    %v1767 = vmul.f32 %v1764, %v1766
    %v1768 = vadd.f32 %v1764, %v1767
    %vm1769 = vweird.f32 %v1742
    %vm1770 = vweird.f32 %v1764
    %vm1771 = vmor %vm1769, %vm1770
    %v1772 = vsel %vm1771, %v1764, %v1768
    %v1773 = vand.u32 2147483647, %v1742
    %vm1774 = vcmp.eq.f32.partialorder %v1773, 8.507059e+37
    %v1775 = vand.u32 %v1742, 2147483648
    %v1776 = vor.u32 1.1754944e-38, %v1775
    %v1777 = vsel %vm1774, %v1776, %v1772
    %v1778 = vmul.f32 %v1732, %v1777
    %v1779 = vrcp.pop %v1745
    %v1780 = vmul.f32 %v1745, %v1779
    %v1781 = vsub.f32 1.0, %v1780
    %v1782 = vmul.f32 %v1779, %v1781
    %v1783 = vadd.f32 %v1779, %v1782
    %vm1784 = vweird.f32 %v1745
    %vm1785 = vweird.f32 %v1779
    %vm1786 = vmor %vm1784, %vm1785
    %v1787 = vsel %vm1786, %v1779, %v1783
    %v1788 = vand.u32 2147483647, %v1745
    %vm1789 = vcmp.eq.f32.partialorder %v1788, 8.507059e+37
    %v1790 = vand.u32 %v1745, 2147483648
    %v1791 = vor.u32 1.1754944e-38, %v1790
    %v1792 = vsel %vm1789, %v1791, %v1787
    %v1793 = vmul.f32 %v1734, %v1792
    %v1794 = vrcp.pop %v1748
    %v1795 = vmul.f32 %v1748, %v1794
    %v1796 = vsub.f32 1.0, %v1795
    %v1797 = vmul.f32 %v1794, %v1796
    %v1798 = vadd.f32 %v1794, %v1797
    %vm1799 = vweird.f32 %v1748
    %vm1800 = vweird.f32 %v1794
    %vm1801 = vmor %vm1799, %vm1800
    %v1802 = vsel %vm1801, %v1794, %v1798
    %v1803 = vand.u32 2147483647, %v1748
    %vm1804 = vcmp.eq.f32.partialorder %v1803, 8.507059e+37
    %v1805 = vand.u32 %v1748, 2147483648
    %v1806 = vor.u32 1.1754944e-38, %v1805
    %v1807 = vsel %vm1804, %v1806, %v1802
    %v1808 = vmul.f32 %v1736, %v1807
    %1809 = vrot.lane.b32.xlu0 %v895, 40
    %v1810 = vpop.permute.xlu0 %1809
    %1811 = vrot.lane.b32.xlu0 %v898, 40
    %v1812 = vpop.permute.xlu0 %1811
    %v1816 = vsel %vm100, %v1763, 0
    %v1819 = vsel %vm100, %v1778, 0
    %1821 = vmatpush.msra.mxu0 0.0
    %1822 = vmatpush.msra.mxu0 0.0
    %1823 = vmatpush.msra.mxu0 0.0
    %1824 = vmatpush.msra.mxu0 0.0
    %1825 = vmatpush.msra.mxu0 0.0
    %1826 = vmatpush.msra.mxu0 0.0
    %1827 = vmatpush.msra.mxu0 0.0
    %1828 = vmatpush.msra.mxu0 0.0
    %1829 = vmatpush.msra.mxu0 0.0
    %1830 = vmatpush.msra.mxu0 0.0
    %1831 = vmatpush.msra.mxu0 0.0
    %1832 = vmatpush.msra.mxu0 0.0
    %1833 = vmatpush.msra.mxu0 0.0
    %1834 = vmatpush.msra.mxu0 0.0
    %1835 = vmatpush.msra.mxu0 %v1812
    %1836 = vmatpush.msra.mxu0 %v1810
    %1837 = vmatmul.f32.gmra.mxu0 %v1816
    %v1838 = vpop.f32.mrf.mxu0
    %v1839 = vadd.f32 0.0, %v1838
    %1840 = vmatmul.f32.gmra.mxu0 %v1819
    %v1841 = vpop.f32.mrf.mxu0
    %v1842 = vadd.f32 0.0, %v1841
    %1843 = vdwg.mxu0
    %1844 = vrot.lane.b32.xlu0 %v901, 40
    %v1845 = vpop.permute.xlu0 %1844
    %1846 = vrot.lane.b32.xlu0 %v904, 40
    %v1847 = vpop.permute.xlu0 %1846
    %v1851 = vsel %vm100, %v1793, 0
    %v1854 = vsel %vm100, %v1808, 0
    %1856 = vmatpush.msra.mxu0 0.0
    %1857 = vmatpush.msra.mxu0 0.0
    %1858 = vmatpush.msra.mxu0 0.0
    %1859 = vmatpush.msra.mxu0 0.0
    %1860 = vmatpush.msra.mxu0 0.0
    %1861 = vmatpush.msra.mxu0 0.0
    %1862 = vmatpush.msra.mxu0 0.0
    %1863 = vmatpush.msra.mxu0 0.0
    %1864 = vmatpush.msra.mxu0 0.0
    %1865 = vmatpush.msra.mxu0 0.0
    %1866 = vmatpush.msra.mxu0 0.0
    %1867 = vmatpush.msra.mxu0 0.0
    %1868 = vmatpush.msra.mxu0 0.0
    %1869 = vmatpush.msra.mxu0 0.0
    %1870 = vmatpush.msra.mxu0 %v1847
    %1871 = vmatpush.msra.mxu0 %v1845
    %1872 = vmatmul.f32.gmra.mxu0 %v1851
    %v1873 = vpop.f32.mrf.mxu0
    %v1874 = vadd.f32 0.0, %v1873
    %1875 = vmatmul.f32.gmra.mxu0 %v1854
    %v1876 = vpop.f32.mrf.mxu0
    %v1877 = vadd.f32 0.0, %v1876
    %1878 = vdwg.mxu0
    %1883 = vrot.lane.b32.xlu0 %v1351, 8
    %v1884 = vpop.permute.xlu0 %1883
    %1885 = vrot.lane.b32.xlu0 %v1354, 8
    %v1886 = vpop.permute.xlu0 %1885
    %1887 = vrot.lane.b32.xlu0 %v1386, 8
    %v1888 = vpop.permute.xlu0 %1887
    %1889 = vrot.lane.b32.xlu0 %v1389, 8
    %v1890 = vpop.permute.xlu0 %1889
    %1899 = vrot.lane.b32.xlu0 %v1595, 16
    %v1900 = vpop.permute.xlu0 %1899
    %1901 = vrot.lane.b32.xlu0 %v1598, 16
    %v1902 = vpop.permute.xlu0 %1901
    %1903 = vrot.lane.b32.xlu0 %v1630, 16
    %v1904 = vpop.permute.xlu0 %1903
    %1905 = vrot.lane.b32.xlu0 %v1633, 16
    %v1906 = vpop.permute.xlu0 %1905
    %1915 = vrot.lane.b32.xlu0 %v1839, 24
    %v1916 = vpop.permute.xlu0 %1915
    %1917 = vrot.lane.b32.xlu0 %v1842, 24
    %v1918 = vpop.permute.xlu0 %1917
    %1919 = vrot.lane.b32.xlu0 %v1874, 24
    %v1920 = vpop.permute.xlu0 %1919
    %1921 = vrot.lane.b32.xlu0 %v1877, 24
    %v1922 = vpop.permute.xlu0 %1921
    %v1927 = vsel %vm912, %v1107, %v1884
    %v1928 = vsel %vm912, %v1110, %v1886
    %v1929 = vsel %vm912, %v1142, %v1888
    %v1930 = vsel %vm912, %v1145, %v1890
    %v1931 = vsel %vm100, %v1927, %v1900
    %v1932 = vsel %vm100, %v1928, %v1902
    %v1933 = vsel %vm100, %v1929, %v1904
    %v1934 = vsel %vm100, %v1930, %v1906
    %vm1935 = vcmask 195584
    %v1936 = vsel %vm1935, %v1931, %v1916
    %v1937 = vsel %vm1935, %v1932, %v1918
    %v1938 = vsel %vm1935, %v1933, %v1920
    %v1939 = vsel %vm1935, %v1934, %v1922
    %v1940 = vld [vmem:[%s6] sm:$0xff]
    %v1941 = vld [vmem:[%s6 + $0x8] sm:$0xff]
    %v1942 = vld [vmem:[%s6 + $0x10] sm:$0xff]
    %v1943 = vld [vmem:[%s6 + $0x18] sm:$0xff]
    %v1945 = vsel %vm142, %v1936, 0
    %v1948 = vsel %vm142, %v1937, 0
    %v1951 = vsel %vm142, %v1938, 0
    %v1954 = vsel %vm142, %v1939, 0
    %1956 = vmatpush.msra.mxu0 0.0
    %1957 = vmatpush.msra.mxu0 0.0
    %1958 = vmatpush.msra.mxu0 0.0
    %1959 = vmatpush.msra.mxu0 0.0
    %1960 = vmatpush.msra.mxu0 0.0
    %1961 = vmatpush.msra.mxu0 0.0
    %1962 = vmatpush.msra.mxu0 0.0
    %1963 = vmatpush.msra.mxu0 0.0
    %1964 = vmatpush.msra.mxu0 0.0
    %1965 = vmatpush.msra.mxu0 0.0
    %1966 = vmatpush.msra.mxu0 0.0
    %1967 = vmatpush.msra.mxu0 0.0
    %1968 = vmatpush.msra.mxu0 %v1943
    %1969 = vmatpush.msra.mxu0 %v1942
    %1970 = vmatpush.msra.mxu0 %v1941
    %1971 = vmatpush.msra.mxu0 %v1940
    %1972 = vmatmul.f32.gmra.mxu0 %v1945
    %v1973 = vpop.f32.mrf.mxu0
    %v1974 = vadd.f32 0.0, %v1973
    %1975 = vmatmul.f32.gmra.mxu0 %v1948
    %v1976 = vpop.f32.mrf.mxu0
    %v1977 = vadd.f32 0.0, %v1976
    %1978 = vmatmul.f32.gmra.mxu0 %v1951
    %v1979 = vpop.f32.mrf.mxu0
    %v1980 = vadd.f32 0.0, %v1979
    %1981 = vmatmul.f32.gmra.mxu0 %v1954
    %v1982 = vpop.f32.mrf.mxu0
    %v1983 = vadd.f32 0.0, %v1982
    %1984 = vdwg.mxu0
    %v1985 = vadd.f32 %v698, %v1974
    %v1986 = vadd.f32 %v699, %v1977
    %v1987 = vadd.f32 %v700, %v1980
    %v1988 = vadd.f32 %v701, %v1983
    %v1989 = vperm.slane %v755, 4
    %v1990 = vadd.f32 %v1985, %v1989
    %v1991 = vadd.f32 %v1986, %v1989
    %v1992 = vadd.f32 %v1987, %v1989
    %v1993 = vadd.f32 %v1988, %v1989
    %v1994 = vsel %vm142, %v1990, 0.0
    %1995 = vadd.xlane.f32.xlu0 %v1994
    %v1996 = vpop.xlane.xlu0 %1995
    %v1997 = vsel %vm142, %v1991, 0.0
    %1998 = vadd.xlane.f32.xlu0 %v1997
    %v1999 = vpop.xlane.xlu0 %1998
    %v2000 = vsel %vm142, %v1992, 0.0
    %2001 = vadd.xlane.f32.xlu0 %v2000
    %v2002 = vpop.xlane.xlu0 %2001
    %v2003 = vsel %vm142, %v1993, 0.0
    %2004 = vadd.xlane.f32.xlu0 %v2003
    %v2005 = vpop.xlane.xlu0 %2004
    %v2006 = vmul.f32 %v1996, %v774
    %v2007 = vmul.f32 %v1999, %v774
    %v2008 = vmul.f32 %v2002, %v774
    %v2009 = vmul.f32 %v2005, %v774
    %v2010 = vsub.f32 %v1990, %v2006
    %v2011 = vsub.f32 %v1991, %v2007
    %v2012 = vsub.f32 %v1992, %v2008
    %v2013 = vsub.f32 %v1993, %v2009
    %v2014 = vmul.f32 %v2010, %v2010
    %v2015 = vmul.f32 %v2011, %v2011
    %v2016 = vmul.f32 %v2012, %v2012
    %v2017 = vmul.f32 %v2013, %v2013
    %v2018 = vsel %vm142, %v2014, 0.0
    %2019 = vadd.xlane.f32.xlu0 %v2018
    %v2020 = vpop.xlane.xlu0 %2019
    %v2021 = vsel %vm142, %v2015, 0.0
    %2022 = vadd.xlane.f32.xlu0 %v2021
    %v2023 = vpop.xlane.xlu0 %2022
    %v2024 = vsel %vm142, %v2016, 0.0
    %2025 = vadd.xlane.f32.xlu0 %v2024
    %v2026 = vpop.xlane.xlu0 %2025
    %v2027 = vsel %vm142, %v2017, 0.0
    %2028 = vadd.xlane.f32.xlu0 %v2027
    %v2029 = vpop.xlane.xlu0 %2028
    %v2030 = vmul.f32 %v2020, %v774
    %v2031 = vmul.f32 %v2023, %v774
    %v2032 = vmul.f32 %v2026, %v774
    %v2033 = vmul.f32 %v2029, %v774
    %v2034 = vadd.f32 %v2030, 1e-05
    %v2035 = vadd.f32 %v2031, 1e-05
    %v2036 = vadd.f32 %v2032, 1e-05
    %v2037 = vadd.f32 %v2033, 1e-05
    %v2038 = vrsqrt.pop %v2034
    %v2039 = vmul.f32 %v2038, %v2034
    %v2040 = vmul.f32 %v2039, %v2038
    %v2041 = vmul.f32 0.5, %v2040
    %v2042 = vsub.f32 1.5, %v2041
    %v2043 = vmul.f32 %v2038, %v2042
    %vm2044 = vweird.f32 %v2034
    %vm2045 = vweird.f32 %v2038
    %vm2046 = vmor %vm2044, %vm2045
    %v2047 = vsel %vm2046, %v2038, %v2043
    %v2048 = vrsqrt.pop %v2035
    %v2049 = vmul.f32 %v2048, %v2035
    %v2050 = vmul.f32 %v2049, %v2048
    %v2051 = vmul.f32 0.5, %v2050
    %v2052 = vsub.f32 1.5, %v2051
    %v2053 = vmul.f32 %v2048, %v2052
    %vm2054 = vweird.f32 %v2035
    %vm2055 = vweird.f32 %v2048
    %vm2056 = vmor %vm2054, %vm2055
    %v2057 = vsel %vm2056, %v2048, %v2053
    %v2058 = vrsqrt.pop %v2036
    %v2059 = vmul.f32 %v2058, %v2036
    %v2060 = vmul.f32 %v2059, %v2058
    %v2061 = vmul.f32 0.5, %v2060
    %v2062 = vsub.f32 1.5, %v2061
    %v2063 = vmul.f32 %v2058, %v2062
    %vm2064 = vweird.f32 %v2036
    %vm2065 = vweird.f32 %v2058
    %vm2066 = vmor %vm2064, %vm2065
    %v2067 = vsel %vm2066, %v2058, %v2063
    %v2068 = vrsqrt.pop %v2037
    %v2069 = vmul.f32 %v2068, %v2037
    %v2070 = vmul.f32 %v2069, %v2068
    %v2071 = vmul.f32 0.5, %v2070
    %v2072 = vsub.f32 1.5, %v2071
    %v2073 = vmul.f32 %v2068, %v2072
    %vm2074 = vweird.f32 %v2037
    %vm2075 = vweird.f32 %v2068
    %vm2076 = vmor %vm2074, %vm2075
    %v2077 = vsel %vm2076, %v2068, %v2073
    %v2078 = vmul.f32 %v2010, %v2047
    %v2079 = vmul.f32 %v2011, %v2057
    %v2080 = vmul.f32 %v2012, %v2067
    %v2081 = vmul.f32 %v2013, %v2077
    %v2082 = vperm.slane %v755, 2
    %v2083 = vmul.f32 %v2078, %v2082
    %v2084 = vmul.f32 %v2079, %v2082
    %v2085 = vmul.f32 %v2080, %v2082
    %v2086 = vmul.f32 %v2081, %v2082
    %v2087 = vperm.slane %v755, 3
    %v2088 = vadd.f32 %v2083, %v2087
    %v2089 = vadd.f32 %v2084, %v2087
    %v2090 = vadd.f32 %v2085, %v2087
    %v2091 = vadd.f32 %v2086, %v2087
    %v2092 = vld [vmem:[%s8] sm:$0xff]
    %v2093 = vld [vmem:[%s8 + $0x8] sm:$0xff]
    %v2094 = vld [vmem:[%s8 + $0x10] sm:$0xff]
    %v2095 = vld [vmem:[%s8 + $0x18] sm:$0xff]
    %v2096 = vld [vmem:[%s9] sm:$0x1]
    %v2098 = vperm.slane %v2096, 0
    %v2101 = vsel %vm142, %v2088, 0
    %v2104 = vsel %vm142, %v2089, 0
    %v2107 = vsel %vm142, %v2090, 0
    %v2110 = vsel %vm142, %v2091, 0
    %2112 = vmatpush.msra.mxu0 0.0
    %2113 = vmatpush.msra.mxu0 0.0
    %2114 = vmatpush.msra.mxu0 0.0
    %2115 = vmatpush.msra.mxu0 0.0
    %2116 = vmatpush.msra.mxu0 0.0
    %2117 = vmatpush.msra.mxu0 0.0
    %2118 = vmatpush.msra.mxu0 0.0
    %2119 = vmatpush.msra.mxu0 0.0
    %2120 = vmatpush.msra.mxu0 0.0
    %2121 = vmatpush.msra.mxu0 0.0
    %2122 = vmatpush.msra.mxu0 0.0
    %2123 = vmatpush.msra.mxu0 0.0
    %2124 = vmatpush.msra.mxu0 %v2095
    %2125 = vmatpush.msra.mxu0 %v2094
    %2126 = vmatpush.msra.mxu0 %v2093
    %2127 = vmatpush.msra.mxu0 %v2092
    %2128 = vmatmul.f32.gmra.mxu0 %v2101
    %v2129 = vpop.f32.mrf.mxu0
    %v2130 = vadd.f32 %v2098, %v2129
    %2131 = vmatmul.f32.gmra.mxu0 %v2104
    %v2132 = vpop.f32.mrf.mxu0
    %v2133 = vadd.f32 %v2098, %v2132
    %2134 = vmatmul.f32.gmra.mxu0 %v2107
    %v2135 = vpop.f32.mrf.mxu0
    %v2136 = vadd.f32 %v2098, %v2135
    %2137 = vmatmul.f32.gmra.mxu0 %v2110
    %v2138 = vpop.f32.mrf.mxu0
    %v2139 = vadd.f32 %v2098, %v2138
    %2140 = vdwg.mxu0
    %v2141 = vmul.f32 %v2130, 0.5
    %v2142 = vmul.f32 %v2133, 0.5
    %v2143 = vmul.f32 %v2136, 0.5
    %v2144 = vmul.f32 %v2139, 0.5
    %v2145 = vmul.f32 %v2130, 0.70710677
    %v2146 = vmul.f32 %v2133, 0.70710677
    %v2147 = vmul.f32 %v2136, 0.70710677
    %v2148 = vmul.f32 %v2139, 0.70710677
    %v2149 = vmul.f32 %v2145, %v2145
    %v2150 = vmin.f32 16.0, %v2149
    %v2151 = vmul.f32 %v2150, 2.1237322e-06
    %v2152 = vadd.f32 %v2151, 0.00028619796
    %v2153 = vmul.f32 %v2150, %v2152
    %v2154 = vadd.f32 %v2153, 0.0036580483
    %v2155 = vmul.f32 %v2150, %v2154
    %v2156 = vadd.f32 %v2155, 0.05243302
    %v2157 = vmul.f32 %v2150, %v2156
    %v2158 = vadd.f32 %v2157, 0.18741608
    %v2159 = vmul.f32 %v2150, %v2158
    %v2160 = vadd.f32 %v2159, 1.1283791
    %v2161 = vmul.f32 %v2145, %v2160
    %v2162 = vmul.f32 %v2150, 3.8918573e-05
    %v2163 = vadd.f32 %v2162, 0.001143296
    %v2164 = vmul.f32 %v2150, %v2163
    %v2165 = vadd.f32 %v2164, 0.014752088
    %v2166 = vmul.f32 %v2150, %v2165
    %v2167 = vadd.f32 %v2166, 0.112945676
    %v2168 = vmul.f32 %v2150, %v2167
    %v2169 = vadd.f32 %v2168, 0.4994258
    %v2170 = vmul.f32 %v2150, %v2169
    %v2171 = vadd.f32 %v2170, 1.0
    %v2172 = vrcp.pop %v2171
    %v2173 = vmul.f32 %v2171, %v2172
    %v2174 = vsub.f32 1.0, %v2173
    %v2175 = vmul.f32 %v2172, %v2174
    %v2176 = vadd.f32 %v2172, %v2175
    %vm2177 = vweird.f32 %v2171
    %vm2178 = vweird.f32 %v2172
    %vm2179 = vmor %vm2177, %vm2178
    %v2180 = vsel %vm2179, %v2172, %v2176
    %v2181 = vand.u32 2147483647, %v2171
    %vm2182 = vcmp.eq.f32.partialorder %v2181, 8.507059e+37
    %v2183 = vand.u32 %v2171, 2147483648
    %v2184 = vor.u32 1.1754944e-38, %v2183
    %v2185 = vsel %vm2182, %v2184, %v2180
    %v2186 = vmul.f32 %v2161, %v2185
    %v2187 = vmin.f32 %v2186, 1.0
    %v2188 = vmax.f32 %v2187, -1.0
    %v2189 = vmul.f32 %v2146, %v2146
    %v2190 = vmin.f32 16.0, %v2189
    %v2191 = vmul.f32 %v2190, 2.1237322e-06
    %v2192 = vadd.f32 %v2191, 0.00028619796
    %v2193 = vmul.f32 %v2190, %v2192
    %v2194 = vadd.f32 %v2193, 0.0036580483
    %v2195 = vmul.f32 %v2190, %v2194
    %v2196 = vadd.f32 %v2195, 0.05243302
    %v2197 = vmul.f32 %v2190, %v2196
    %v2198 = vadd.f32 %v2197, 0.18741608
    %v2199 = vmul.f32 %v2190, %v2198
    %v2200 = vadd.f32 %v2199, 1.1283791
    %v2201 = vmul.f32 %v2146, %v2200
    %v2202 = vmul.f32 %v2190, 3.8918573e-05
    %v2203 = vadd.f32 %v2202, 0.001143296
    %v2204 = vmul.f32 %v2190, %v2203
    %v2205 = vadd.f32 %v2204, 0.014752088
    %v2206 = vmul.f32 %v2190, %v2205
    %v2207 = vadd.f32 %v2206, 0.112945676
    %v2208 = vmul.f32 %v2190, %v2207
    %v2209 = vadd.f32 %v2208, 0.4994258
    %v2210 = vmul.f32 %v2190, %v2209
    %v2211 = vadd.f32 %v2210, 1.0
    %v2212 = vrcp.pop %v2211
    %v2213 = vmul.f32 %v2211, %v2212
    %v2214 = vsub.f32 1.0, %v2213
    %v2215 = vmul.f32 %v2212, %v2214
    %v2216 = vadd.f32 %v2212, %v2215
    %vm2217 = vweird.f32 %v2211
    %vm2218 = vweird.f32 %v2212
    %vm2219 = vmor %vm2217, %vm2218
    %v2220 = vsel %vm2219, %v2212, %v2216
    %v2221 = vand.u32 2147483647, %v2211
    %vm2222 = vcmp.eq.f32.partialorder %v2221, 8.507059e+37
    %v2223 = vand.u32 %v2211, 2147483648
    %v2224 = vor.u32 1.1754944e-38, %v2223
    %v2225 = vsel %vm2222, %v2224, %v2220
    %v2226 = vmul.f32 %v2201, %v2225
    %v2227 = vmin.f32 %v2226, 1.0
    %v2228 = vmax.f32 %v2227, -1.0
    %v2229 = vmul.f32 %v2147, %v2147
    %v2230 = vmin.f32 16.0, %v2229
    %v2231 = vmul.f32 %v2230, 2.1237322e-06
    %v2232 = vadd.f32 %v2231, 0.00028619796
    %v2233 = vmul.f32 %v2230, %v2232
    %v2234 = vadd.f32 %v2233, 0.0036580483
    %v2235 = vmul.f32 %v2230, %v2234
    %v2236 = vadd.f32 %v2235, 0.05243302
    %v2237 = vmul.f32 %v2230, %v2236
    %v2238 = vadd.f32 %v2237, 0.18741608
    %v2239 = vmul.f32 %v2230, %v2238
    %v2240 = vadd.f32 %v2239, 1.1283791
    %v2241 = vmul.f32 %v2147, %v2240
    %v2242 = vmul.f32 %v2230, 3.8918573e-05
    %v2243 = vadd.f32 %v2242, 0.001143296
    %v2244 = vmul.f32 %v2230, %v2243
    %v2245 = vadd.f32 %v2244, 0.014752088
    %v2246 = vmul.f32 %v2230, %v2245
    %v2247 = vadd.f32 %v2246, 0.112945676
    %v2248 = vmul.f32 %v2230, %v2247
    %v2249 = vadd.f32 %v2248, 0.4994258
    %v2250 = vmul.f32 %v2230, %v2249
    %v2251 = vadd.f32 %v2250, 1.0
    %v2252 = vrcp.pop %v2251
    %v2253 = vmul.f32 %v2251, %v2252
    %v2254 = vsub.f32 1.0, %v2253
    %v2255 = vmul.f32 %v2252, %v2254
    %v2256 = vadd.f32 %v2252, %v2255
    %vm2257 = vweird.f32 %v2251
    %vm2258 = vweird.f32 %v2252
    %vm2259 = vmor %vm2257, %vm2258
    %v2260 = vsel %vm2259, %v2252, %v2256
    %v2261 = vand.u32 2147483647, %v2251
    %vm2262 = vcmp.eq.f32.partialorder %v2261, 8.507059e+37
    %v2263 = vand.u32 %v2251, 2147483648
    %v2264 = vor.u32 1.1754944e-38, %v2263
    %v2265 = vsel %vm2262, %v2264, %v2260
    %v2266 = vmul.f32 %v2241, %v2265
    %v2267 = vmin.f32 %v2266, 1.0
    %v2268 = vmax.f32 %v2267, -1.0
    %v2269 = vmul.f32 %v2148, %v2148
    %v2270 = vmin.f32 16.0, %v2269
    %v2271 = vmul.f32 %v2270, 2.1237322e-06
    %v2272 = vadd.f32 %v2271, 0.00028619796
    %v2273 = vmul.f32 %v2270, %v2272
    %v2274 = vadd.f32 %v2273, 0.0036580483
    %v2275 = vmul.f32 %v2270, %v2274
    %v2276 = vadd.f32 %v2275, 0.05243302
    %v2277 = vmul.f32 %v2270, %v2276
    %v2278 = vadd.f32 %v2277, 0.18741608
    %v2279 = vmul.f32 %v2270, %v2278
    %v2280 = vadd.f32 %v2279, 1.1283791
    %v2281 = vmul.f32 %v2148, %v2280
    %v2282 = vmul.f32 %v2270, 3.8918573e-05
    %v2283 = vadd.f32 %v2282, 0.001143296
    %v2284 = vmul.f32 %v2270, %v2283
    %v2285 = vadd.f32 %v2284, 0.014752088
    %v2286 = vmul.f32 %v2270, %v2285
    %v2287 = vadd.f32 %v2286, 0.112945676
    %v2288 = vmul.f32 %v2270, %v2287
    %v2289 = vadd.f32 %v2288, 0.4994258
    %v2290 = vmul.f32 %v2270, %v2289
    %v2291 = vadd.f32 %v2290, 1.0
    %v2292 = vrcp.pop %v2291
    %v2293 = vmul.f32 %v2291, %v2292
    %v2294 = vsub.f32 1.0, %v2293
    %v2295 = vmul.f32 %v2292, %v2294
    %v2296 = vadd.f32 %v2292, %v2295
    %vm2297 = vweird.f32 %v2291
    %vm2298 = vweird.f32 %v2292
    %vm2299 = vmor %vm2297, %vm2298
    %v2300 = vsel %vm2299, %v2292, %v2296
    %v2301 = vand.u32 2147483647, %v2291
    %vm2302 = vcmp.eq.f32.partialorder %v2301, 8.507059e+37
    %v2303 = vand.u32 %v2291, 2147483648
    %v2304 = vor.u32 1.1754944e-38, %v2303
    %v2305 = vsel %vm2302, %v2304, %v2300
    %v2306 = vmul.f32 %v2281, %v2305
    %v2307 = vmin.f32 %v2306, 1.0
    %v2308 = vmax.f32 %v2307, -1.0
    %v2309 = vadd.f32 %v2188, 1.0
    %v2310 = vadd.f32 %v2228, 1.0
    %v2311 = vadd.f32 %v2268, 1.0
    %v2312 = vadd.f32 %v2308, 1.0
    %v2313 = vmul.f32 %v2141, %v2309
    %v2314 = vmul.f32 %v2142, %v2310
    %v2315 = vmul.f32 %v2143, %v2311
    %v2316 = vmul.f32 %v2144, %v2312
    %v2317 = vld [vmem:[%s10] sm:$0xff]
    %v2318 = vld [vmem:[%s10 + $0x8] sm:$0xff]
    %v2319 = vld [vmem:[%s10 + $0x10] sm:$0xff]
    %v2320 = vld [vmem:[%s10 + $0x18] sm:$0xff]
    %v2321 = vld [vmem:[%s10 + $0x20] sm:$0xff]
    %v2322 = vld [vmem:[%s10 + $0x28] sm:$0xff]
    %v2323 = vld [vmem:[%s10 + $0x30] sm:$0xff]
    %v2324 = vld [vmem:[%s10 + $0x38] sm:$0xff]
    %vm2325 = vcmask 523264
    %v2327 = vsel %vm2325, %v2313, 0
    %v2330 = vsel %vm2325, %v2314, 0
    %v2333 = vsel %vm2325, %v2315, 0
    %v2336 = vsel %vm2325, %v2316, 0
    %2338 = vmatpush.msra.mxu0 0.0
    %2339 = vmatpush.msra.mxu0 0.0
    %2340 = vmatpush.msra.mxu0 0.0
    %2341 = vmatpush.msra.mxu0 0.0
    %2342 = vmatpush.msra.mxu0 0.0
    %2343 = vmatpush.msra.mxu0 0.0
    %2344 = vmatpush.msra.mxu0 0.0
    %2345 = vmatpush.msra.mxu0 0.0
    %2346 = vmatpush.msra.mxu0 %v2324
    %2347 = vmatpush.msra.mxu0 %v2323
    %2348 = vmatpush.msra.mxu0 %v2322
    %2349 = vmatpush.msra.mxu0 %v2321
    %2350 = vmatpush.msra.mxu0 %v2320
    %2351 = vmatpush.msra.mxu0 %v2319
    %2352 = vmatpush.msra.mxu0 %v2318
    %2353 = vmatpush.msra.mxu0 %v2317
    %2354 = vmatmul.f32.gmra.mxu0 %v2327
    %v2355 = vpop.f32.mrf.mxu0
    %v2356 = vadd.f32 0.0, %v2355
    %2357 = vmatmul.f32.gmra.mxu0 %v2330
    %v2358 = vpop.f32.mrf.mxu0
    %v2359 = vadd.f32 0.0, %v2358
    %2360 = vmatmul.f32.gmra.mxu0 %v2333
    %v2361 = vpop.f32.mrf.mxu0
    %v2362 = vadd.f32 0.0, %v2361
    %2363 = vmatmul.f32.gmra.mxu0 %v2336
    %v2364 = vpop.f32.mrf.mxu0
    %v2365 = vadd.f32 0.0, %v2364
    %2366 = vdwg.mxu0
    %v2367 = vadd.f32 %v1990, %v2356
    %v2368 = vadd.f32 %v1991, %v2359
    %v2369 = vadd.f32 %v1992, %v2362
    %v2370 = vadd.f32 %v1993, %v2365
    %v2371 = vperm.slane %v755, 5
    %v2372 = vadd.f32 %v2367, %v2371
    %v2373 = vadd.f32 %v2368, %v2371
    %v2374 = vadd.f32 %v2369, %v2371
    %v2375 = vadd.f32 %v2370, %v2371
    %s2376 = scalar_lea.vmem %s7, 8
    %v2377 = vld [vmem:[%s2376] sm:$0x3f]
    %v2378 = vsel %vm142, %v2372, 0.0
    %2379 = vadd.xlane.f32.xlu0 %v2378
    %v2380 = vpop.xlane.xlu0 %2379
    %v2381 = vsel %vm142, %v2373, 0.0
    %2382 = vadd.xlane.f32.xlu0 %v2381
    %v2383 = vpop.xlane.xlu0 %2382
    %v2384 = vsel %vm142, %v2374, 0.0
    %2385 = vadd.xlane.f32.xlu0 %v2384
    %v2386 = vpop.xlane.xlu0 %2385
    %v2387 = vsel %vm142, %v2375, 0.0
    %2388 = vadd.xlane.f32.xlu0 %v2387
    %v2389 = vpop.xlane.xlu0 %2388
    %v2390 = vmul.f32 %v2380, %v774
    %v2391 = vmul.f32 %v2383, %v774
    %v2392 = vmul.f32 %v2386, %v774
    %v2393 = vmul.f32 %v2389, %v774
    %v2394 = vsub.f32 %v2372, %v2390
    %v2395 = vsub.f32 %v2373, %v2391
    %v2396 = vsub.f32 %v2374, %v2392
    %v2397 = vsub.f32 %v2375, %v2393
    %v2398 = vmul.f32 %v2394, %v2394
    %v2399 = vmul.f32 %v2395, %v2395
    %v2400 = vmul.f32 %v2396, %v2396
    %v2401 = vmul.f32 %v2397, %v2397
    %v2402 = vsel %vm142, %v2398, 0.0
    %2403 = vadd.xlane.f32.xlu0 %v2402
    %v2404 = vpop.xlane.xlu0 %2403
    %v2405 = vsel %vm142, %v2399, 0.0
    %2406 = vadd.xlane.f32.xlu0 %v2405
    %v2407 = vpop.xlane.xlu0 %2406
    %v2408 = vsel %vm142, %v2400, 0.0
    %2409 = vadd.xlane.f32.xlu0 %v2408
    %v2410 = vpop.xlane.xlu0 %2409
    %v2411 = vsel %vm142, %v2401, 0.0
    %2412 = vadd.xlane.f32.xlu0 %v2411
    %v2413 = vpop.xlane.xlu0 %2412
    %v2414 = vmul.f32 %v2404, %v774
    %v2415 = vmul.f32 %v2407, %v774
    %v2416 = vmul.f32 %v2410, %v774
    %v2417 = vmul.f32 %v2413, %v774
    %v2418 = vadd.f32 %v2414, 1e-05
    %v2419 = vadd.f32 %v2415, 1e-05
    %v2420 = vadd.f32 %v2416, 1e-05
    %v2421 = vadd.f32 %v2417, 1e-05
    %v2422 = vrsqrt.pop %v2418
    %v2423 = vmul.f32 %v2422, %v2418
    %v2424 = vmul.f32 %v2423, %v2422
    %v2425 = vmul.f32 0.5, %v2424
    %v2426 = vsub.f32 1.5, %v2425
    %v2427 = vmul.f32 %v2422, %v2426
    %vm2428 = vweird.f32 %v2418
    %vm2429 = vweird.f32 %v2422
    %vm2430 = vmor %vm2428, %vm2429
    %v2431 = vsel %vm2430, %v2422, %v2427
    %v2432 = vrsqrt.pop %v2419
    %v2433 = vmul.f32 %v2432, %v2419
    %v2434 = vmul.f32 %v2433, %v2432
    %v2435 = vmul.f32 0.5, %v2434
    %v2436 = vsub.f32 1.5, %v2435
    %v2437 = vmul.f32 %v2432, %v2436
    %vm2438 = vweird.f32 %v2419
    %vm2439 = vweird.f32 %v2432
    %vm2440 = vmor %vm2438, %vm2439
    %v2441 = vsel %vm2440, %v2432, %v2437
    %v2442 = vrsqrt.pop %v2420
    %v2443 = vmul.f32 %v2442, %v2420
    %v2444 = vmul.f32 %v2443, %v2442
    %v2445 = vmul.f32 0.5, %v2444
    %v2446 = vsub.f32 1.5, %v2445
    %v2447 = vmul.f32 %v2442, %v2446
    %vm2448 = vweird.f32 %v2420
    %vm2449 = vweird.f32 %v2442
    %vm2450 = vmor %vm2448, %vm2449
    %v2451 = vsel %vm2450, %v2442, %v2447
    %v2452 = vrsqrt.pop %v2421
    %v2453 = vmul.f32 %v2452, %v2421
    %v2454 = vmul.f32 %v2453, %v2452
    %v2455 = vmul.f32 0.5, %v2454
    %v2456 = vsub.f32 1.5, %v2455
    %v2457 = vmul.f32 %v2452, %v2456
    %vm2458 = vweird.f32 %v2421
    %vm2459 = vweird.f32 %v2452
    %vm2460 = vmor %vm2458, %vm2459
    %v2461 = vsel %vm2460, %v2452, %v2457
    %v2462 = vmul.f32 %v2394, %v2431
    %v2463 = vmul.f32 %v2395, %v2441
    %v2464 = vmul.f32 %v2396, %v2451
    %v2465 = vmul.f32 %v2397, %v2461
    %v2466 = vperm.slane %v2377, 0
    %v2467 = vmul.f32 %v2462, %v2466
    %v2468 = vmul.f32 %v2463, %v2466
    %v2469 = vmul.f32 %v2464, %v2466
    %v2470 = vmul.f32 %v2465, %v2466
    %v2471 = vperm.slane %v2377, 1
    %v2472 = vadd.f32 %v2467, %v2471
    %v2473 = vadd.f32 %v2468, %v2471
    %v2474 = vadd.f32 %v2469, %v2471
    %v2475 = vadd.f32 %v2470, %v2471
    %s2476 = scalar_lea.vmem %s5, 32
    %v2477 = vld [vmem:[%s2476] sm:$0xff]
    %v2478 = vld [vmem:[%s2476 + $0x8] sm:$0xff]
    %v2479 = vld [vmem:[%s2476 + $0x10] sm:$0xff]
    %v2480 = vld [vmem:[%s2476 + $0x18] sm:$0xff]
    %v2482 = vsel %vm142, %v2472, 0
    %v2485 = vsel %vm142, %v2473, 0
    %v2488 = vsel %vm142, %v2474, 0
    %v2491 = vsel %vm142, %v2475, 0
    %2493 = vmatpush.msra.mxu0 0.0
    %2494 = vmatpush.msra.mxu0 0.0
    %2495 = vmatpush.msra.mxu0 0.0
    %2496 = vmatpush.msra.mxu0 0.0
    %2497 = vmatpush.msra.mxu0 0.0
    %2498 = vmatpush.msra.mxu0 0.0
    %2499 = vmatpush.msra.mxu0 0.0
    %2500 = vmatpush.msra.mxu0 0.0
    %2501 = vmatpush.msra.mxu0 0.0
    %2502 = vmatpush.msra.mxu0 0.0
    %2503 = vmatpush.msra.mxu0 0.0
    %2504 = vmatpush.msra.mxu0 0.0
    %2505 = vmatpush.msra.mxu0 %v2480
    %2506 = vmatpush.msra.mxu0 %v2479
    %2507 = vmatpush.msra.mxu0 %v2478
    %2508 = vmatpush.msra.mxu0 %v2477
    %2509 = vmatmul.f32.gmra.mxu0 %v2482
    %v2510 = vpop.f32.mrf.mxu0
    %v2511 = vadd.f32 0.0, %v2510
    %2512 = vmatmul.f32.gmra.mxu0 %v2485
    %v2513 = vpop.f32.mrf.mxu0
    %v2514 = vadd.f32 0.0, %v2513
    %2515 = vmatmul.f32.gmra.mxu0 %v2488
    %v2516 = vpop.f32.mrf.mxu0
    %v2517 = vadd.f32 0.0, %v2516
    %2518 = vmatmul.f32.gmra.mxu0 %v2491
    %v2519 = vpop.f32.mrf.mxu0
    %v2520 = vadd.f32 0.0, %v2519
    %2521 = vdwg.mxu0
    %2524 = vrot.lane.b32.xlu0 %v2511, 96
    %v2525 = vpop.permute.xlu0 %2524
    %2526 = vrot.lane.b32.xlu0 %v2514, 96
    %v2527 = vpop.permute.xlu0 %2526
    %v2528 = vsel %vm912, %v2511, 0
    %v2530 = vsel %vm912, %v2514, 0
    %v2532 = vsel %vm912, %v2525, 0
    %v2534 = vsel %vm912, %v2527, 0
    %2536 = vmatpush.xpose.msra.mxu0 0.0
    %2537 = vmatpush.xpose.msra.mxu0 0.0
    %2538 = vmatpush.xpose.msra.mxu0 0.0
    %2539 = vmatpush.xpose.msra.mxu0 0.0
    %2540 = vmatpush.xpose.msra.mxu0 0.0
    %2541 = vmatpush.xpose.msra.mxu0 0.0
    %2542 = vmatpush.xpose.msra.mxu0 0.0
    %2543 = vmatpush.xpose.msra.mxu0 0.0
    %2544 = vmatpush.xpose.msra.mxu0 0.0
    %2545 = vmatpush.xpose.msra.mxu0 0.0
    %2546 = vmatpush.xpose.msra.mxu0 0.0
    %2547 = vmatpush.xpose.msra.mxu0 0.0
    %2548 = vmatpush.xpose.msra.mxu0 0.0
    %2549 = vmatpush.xpose.msra.mxu0 0.0
    %2550 = vmatpush.xpose.msra.mxu0 %v2534
    %2551 = vmatpush.xpose.msra.mxu0 %v2532
    %2552 = vmatmul.f32.gmra.mxu0 %v2528
    %v2553 = vpop.f32.mrf.mxu0
    %v2554 = vadd.f32 %v733, %v2553
    %2555 = vmatmul.f32.gmra.mxu0 %v2530
    %v2556 = vpop.f32.mrf.mxu0
    %v2557 = vadd.f32 %v734, %v2556
    %2558 = vdwg.mxu0
    %2561 = vrot.lane.b32.xlu0 %v2517, 96
    %v2562 = vpop.permute.xlu0 %2561
    %2563 = vrot.lane.b32.xlu0 %v2520, 96
    %v2564 = vpop.permute.xlu0 %2563
    %v2565 = vsel %vm912, %v2517, 0
    %v2567 = vsel %vm912, %v2520, 0
    %v2569 = vsel %vm912, %v2562, 0
    %v2571 = vsel %vm912, %v2564, 0
    %2573 = vmatpush.xpose.msra.mxu0 0.0
    %2574 = vmatpush.xpose.msra.mxu0 0.0
    %2575 = vmatpush.xpose.msra.mxu0 0.0
    %2576 = vmatpush.xpose.msra.mxu0 0.0
    %2577 = vmatpush.xpose.msra.mxu0 0.0
    %2578 = vmatpush.xpose.msra.mxu0 0.0
    %2579 = vmatpush.xpose.msra.mxu0 0.0
    %2580 = vmatpush.xpose.msra.mxu0 0.0
    %2581 = vmatpush.xpose.msra.mxu0 0.0
    %2582 = vmatpush.xpose.msra.mxu0 0.0
    %2583 = vmatpush.xpose.msra.mxu0 0.0
    %2584 = vmatpush.xpose.msra.mxu0 0.0
    %2585 = vmatpush.xpose.msra.mxu0 0.0
    %2586 = vmatpush.xpose.msra.mxu0 0.0
    %2587 = vmatpush.xpose.msra.mxu0 %v2571
    %2588 = vmatpush.xpose.msra.mxu0 %v2569
    %2589 = vmatmul.f32.gmra.mxu0 %v2565
    %v2590 = vpop.f32.mrf.mxu0
    %v2591 = vadd.f32 %v735, %v2590
    %2592 = vmatmul.f32.gmra.mxu0 %v2567
    %v2593 = vpop.f32.mrf.mxu0
    %v2594 = vadd.f32 %v736, %v2593
    %2595 = vdwg.mxu0
    %v2596 = vsel %vm100, %v2554, -inf
    %2597 = vmax.xlane.f32.xlu0 %v2596
    %v2598 = vpop.xlane.xlu0 %2597
    %v2599 = vsel %vm100, %v2557, -inf
    %2600 = vmax.xlane.f32.xlu0 %v2599
    %v2601 = vpop.xlane.xlu0 %2600
    %v2602 = vsel %vm100, %v2591, -inf
    %2603 = vmax.xlane.f32.xlu0 %v2602
    %v2604 = vpop.xlane.xlu0 %2603
    %v2605 = vsel %vm100, %v2594, -inf
    %2606 = vmax.xlane.f32.xlu0 %v2605
    %v2607 = vpop.xlane.xlu0 %2606
    %v2608 = vsub.f32 %v2554, %v2598
    %v2609 = vsub.f32 %v2557, %v2601
    %v2610 = vsub.f32 %v2591, %v2604
    %v2611 = vsub.f32 %v2594, %v2607
    %v2612 = vmul.f32 %v2608, 1.442695
    %v2613 = vpow.pop %v2612
    %v2614 = vmul.f32 %v2609, 1.442695
    %v2615 = vpow.pop %v2614
    %v2616 = vmul.f32 %v2610, 1.442695
    %v2617 = vpow.pop %v2616
    %v2618 = vmul.f32 %v2611, 1.442695
    %v2619 = vpow.pop %v2618
    %v2620 = vsel %vm100, %v2613, 0.0
    %2621 = vadd.xlane.f32.xlu0 %v2620
    %v2622 = vpop.xlane.xlu0 %2621
    %v2623 = vsel %vm100, %v2615, 0.0
    %2624 = vadd.xlane.f32.xlu0 %v2623
    %v2625 = vpop.xlane.xlu0 %2624
    %v2626 = vsel %vm100, %v2617, 0.0
    %2627 = vadd.xlane.f32.xlu0 %v2626
    %v2628 = vpop.xlane.xlu0 %2627
    %v2629 = vsel %vm100, %v2619, 0.0
    %2630 = vadd.xlane.f32.xlu0 %v2629
    %v2631 = vpop.xlane.xlu0 %2630
    %v2632 = vrcp.pop %v2622
    %v2633 = vmul.f32 %v2622, %v2632
    %v2634 = vsub.f32 1.0, %v2633
    %v2635 = vmul.f32 %v2632, %v2634
    %v2636 = vadd.f32 %v2632, %v2635
    %vm2637 = vweird.f32 %v2622
    %vm2638 = vweird.f32 %v2632
    %vm2639 = vmor %vm2637, %vm2638
    %v2640 = vsel %vm2639, %v2632, %v2636
    %v2641 = vand.u32 2147483647, %v2622
    %vm2642 = vcmp.eq.f32.partialorder %v2641, 8.507059e+37
    %v2643 = vand.u32 %v2622, 2147483648
    %v2644 = vor.u32 1.1754944e-38, %v2643
    %v2645 = vsel %vm2642, %v2644, %v2640
    %v2646 = vmul.f32 %v2613, %v2645
    %v2647 = vrcp.pop %v2625
    %v2648 = vmul.f32 %v2625, %v2647
    %v2649 = vsub.f32 1.0, %v2648
    %v2650 = vmul.f32 %v2647, %v2649
    %v2651 = vadd.f32 %v2647, %v2650
    %vm2652 = vweird.f32 %v2625
    %vm2653 = vweird.f32 %v2647
    %vm2654 = vmor %vm2652, %vm2653
    %v2655 = vsel %vm2654, %v2647, %v2651
    %v2656 = vand.u32 2147483647, %v2625
    %vm2657 = vcmp.eq.f32.partialorder %v2656, 8.507059e+37
    %v2658 = vand.u32 %v2625, 2147483648
    %v2659 = vor.u32 1.1754944e-38, %v2658
    %v2660 = vsel %vm2657, %v2659, %v2655
    %v2661 = vmul.f32 %v2615, %v2660
    %v2662 = vrcp.pop %v2628
    %v2663 = vmul.f32 %v2628, %v2662
    %v2664 = vsub.f32 1.0, %v2663
    %v2665 = vmul.f32 %v2662, %v2664
    %v2666 = vadd.f32 %v2662, %v2665
    %vm2667 = vweird.f32 %v2628
    %vm2668 = vweird.f32 %v2662
    %vm2669 = vmor %vm2667, %vm2668
    %v2670 = vsel %vm2669, %v2662, %v2666
    %v2671 = vand.u32 2147483647, %v2628
    %vm2672 = vcmp.eq.f32.partialorder %v2671, 8.507059e+37
    %v2673 = vand.u32 %v2628, 2147483648
    %v2674 = vor.u32 1.1754944e-38, %v2673
    %v2675 = vsel %vm2672, %v2674, %v2670
    %v2676 = vmul.f32 %v2617, %v2675
    %v2677 = vrcp.pop %v2631
    %v2678 = vmul.f32 %v2631, %v2677
    %v2679 = vsub.f32 1.0, %v2678
    %v2680 = vmul.f32 %v2677, %v2679
    %v2681 = vadd.f32 %v2677, %v2680
    %vm2682 = vweird.f32 %v2631
    %vm2683 = vweird.f32 %v2677
    %vm2684 = vmor %vm2682, %vm2683
    %v2685 = vsel %vm2684, %v2677, %v2681
    %v2686 = vand.u32 2147483647, %v2631
    %vm2687 = vcmp.eq.f32.partialorder %v2686, 8.507059e+37
    %v2688 = vand.u32 %v2631, 2147483648
    %v2689 = vor.u32 1.1754944e-38, %v2688
    %v2690 = vsel %vm2687, %v2689, %v2685
    %v2691 = vmul.f32 %v2619, %v2690
    %2692 = vrot.lane.b32.xlu0 %v2511, 64
    %v2693 = vpop.permute.xlu0 %2692
    %2694 = vrot.lane.b32.xlu0 %v2514, 64
    %v2695 = vpop.permute.xlu0 %2694
    %v2699 = vsel %vm100, %v2646, 0
    %v2702 = vsel %vm100, %v2661, 0
    %2704 = vmatpush.msra.mxu0 0.0
    %2705 = vmatpush.msra.mxu0 0.0
    %2706 = vmatpush.msra.mxu0 0.0
    %2707 = vmatpush.msra.mxu0 0.0
    %2708 = vmatpush.msra.mxu0 0.0
    %2709 = vmatpush.msra.mxu0 0.0
    %2710 = vmatpush.msra.mxu0 0.0
    %2711 = vmatpush.msra.mxu0 0.0
    %2712 = vmatpush.msra.mxu0 0.0
    %2713 = vmatpush.msra.mxu0 0.0
    %2714 = vmatpush.msra.mxu0 0.0
    %2715 = vmatpush.msra.mxu0 0.0
    %2716 = vmatpush.msra.mxu0 0.0
    %2717 = vmatpush.msra.mxu0 0.0
    %2718 = vmatpush.msra.mxu0 %v2695
    %2719 = vmatpush.msra.mxu0 %v2693
    %2720 = vmatmul.f32.gmra.mxu0 %v2699
    %v2721 = vpop.f32.mrf.mxu0
    %v2722 = vadd.f32 0.0, %v2721
    %2723 = vmatmul.f32.gmra.mxu0 %v2702
    %v2724 = vpop.f32.mrf.mxu0
    %v2725 = vadd.f32 0.0, %v2724
    %2726 = vdwg.mxu0
    %2727 = vrot.lane.b32.xlu0 %v2517, 64
    %v2728 = vpop.permute.xlu0 %2727
    %2729 = vrot.lane.b32.xlu0 %v2520, 64
    %v2730 = vpop.permute.xlu0 %2729
    %v2734 = vsel %vm100, %v2676, 0
    %v2737 = vsel %vm100, %v2691, 0
    %2739 = vmatpush.msra.mxu0 0.0
    %2740 = vmatpush.msra.mxu0 0.0
    %2741 = vmatpush.msra.mxu0 0.0
    %2742 = vmatpush.msra.mxu0 0.0
    %2743 = vmatpush.msra.mxu0 0.0
    %2744 = vmatpush.msra.mxu0 0.0
    %2745 = vmatpush.msra.mxu0 0.0
    %2746 = vmatpush.msra.mxu0 0.0
    %2747 = vmatpush.msra.mxu0 0.0
    %2748 = vmatpush.msra.mxu0 0.0
    %2749 = vmatpush.msra.mxu0 0.0
    %2750 = vmatpush.msra.mxu0 0.0
    %2751 = vmatpush.msra.mxu0 0.0
    %2752 = vmatpush.msra.mxu0 0.0
    %2753 = vmatpush.msra.mxu0 %v2730
    %2754 = vmatpush.msra.mxu0 %v2728
    %2755 = vmatmul.f32.gmra.mxu0 %v2734
    %v2756 = vpop.f32.mrf.mxu0
    %v2757 = vadd.f32 0.0, %v2756
    %2758 = vmatmul.f32.gmra.mxu0 %v2737
    %v2759 = vpop.f32.mrf.mxu0
    %v2760 = vadd.f32 0.0, %v2759
    %2761 = vdwg.mxu0
    %2762 = vrot.lane.b32.xlu0 %v2511, 120
    %v2763 = vpop.permute.xlu0 %2762
    %2764 = vrot.lane.b32.xlu0 %v2514, 120
    %v2765 = vpop.permute.xlu0 %2764
    %2766 = vrot.lane.b32.xlu0 %v2511, 88
    %v2767 = vpop.permute.xlu0 %2766
    %2768 = vrot.lane.b32.xlu0 %v2514, 88
    %v2769 = vpop.permute.xlu0 %2768
    %v2770 = vsel %vm912, %v2763, 0
    %v2772 = vsel %vm912, %v2765, 0
    %v2774 = vsel %vm912, %v2767, 0
    %v2776 = vsel %vm912, %v2769, 0
    %2778 = vmatpush.xpose.msra.mxu0 0.0
    %2779 = vmatpush.xpose.msra.mxu0 0.0
    %2780 = vmatpush.xpose.msra.mxu0 0.0
    %2781 = vmatpush.xpose.msra.mxu0 0.0
    %2782 = vmatpush.xpose.msra.mxu0 0.0
    %2783 = vmatpush.xpose.msra.mxu0 0.0
    %2784 = vmatpush.xpose.msra.mxu0 0.0
    %2785 = vmatpush.xpose.msra.mxu0 0.0
    %2786 = vmatpush.xpose.msra.mxu0 0.0
    %2787 = vmatpush.xpose.msra.mxu0 0.0
    %2788 = vmatpush.xpose.msra.mxu0 0.0
    %2789 = vmatpush.xpose.msra.mxu0 0.0
    %2790 = vmatpush.xpose.msra.mxu0 0.0
    %2791 = vmatpush.xpose.msra.mxu0 0.0
    %2792 = vmatpush.xpose.msra.mxu0 %v2776
    %2793 = vmatpush.xpose.msra.mxu0 %v2774
    %2794 = vmatmul.f32.gmra.mxu0 %v2770
    %v2795 = vpop.f32.mrf.mxu0
    %v2796 = vadd.f32 %v739, %v2795
    %2797 = vmatmul.f32.gmra.mxu0 %v2772
    %v2798 = vpop.f32.mrf.mxu0
    %v2799 = vadd.f32 %v740, %v2798
    %2800 = vdwg.mxu0
    %2801 = vrot.lane.b32.xlu0 %v2517, 120
    %v2802 = vpop.permute.xlu0 %2801
    %2803 = vrot.lane.b32.xlu0 %v2520, 120
    %v2804 = vpop.permute.xlu0 %2803
    %2805 = vrot.lane.b32.xlu0 %v2517, 88
    %v2806 = vpop.permute.xlu0 %2805
    %2807 = vrot.lane.b32.xlu0 %v2520, 88
    %v2808 = vpop.permute.xlu0 %2807
    %v2809 = vsel %vm912, %v2802, 0
    %v2811 = vsel %vm912, %v2804, 0
    %v2813 = vsel %vm912, %v2806, 0
    %v2815 = vsel %vm912, %v2808, 0
    %2817 = vmatpush.xpose.msra.mxu0 0.0
    %2818 = vmatpush.xpose.msra.mxu0 0.0
    %2819 = vmatpush.xpose.msra.mxu0 0.0
    %2820 = vmatpush.xpose.msra.mxu0 0.0
    %2821 = vmatpush.xpose.msra.mxu0 0.0
    %2822 = vmatpush.xpose.msra.mxu0 0.0
    %2823 = vmatpush.xpose.msra.mxu0 0.0
    %2824 = vmatpush.xpose.msra.mxu0 0.0
    %2825 = vmatpush.xpose.msra.mxu0 0.0
    %2826 = vmatpush.xpose.msra.mxu0 0.0
    %2827 = vmatpush.xpose.msra.mxu0 0.0
    %2828 = vmatpush.xpose.msra.mxu0 0.0
    %2829 = vmatpush.xpose.msra.mxu0 0.0
    %2830 = vmatpush.xpose.msra.mxu0 0.0
    %2831 = vmatpush.xpose.msra.mxu0 %v2815
    %2832 = vmatpush.xpose.msra.mxu0 %v2813
    %2833 = vmatmul.f32.gmra.mxu0 %v2809
    %v2834 = vpop.f32.mrf.mxu0
    %v2835 = vadd.f32 %v741, %v2834
    %2836 = vmatmul.f32.gmra.mxu0 %v2811
    %v2837 = vpop.f32.mrf.mxu0
    %v2838 = vadd.f32 %v742, %v2837
    %2839 = vdwg.mxu0
    %v2840 = vsel %vm100, %v2796, -inf
    %2841 = vmax.xlane.f32.xlu0 %v2840
    %v2842 = vpop.xlane.xlu0 %2841
    %v2843 = vsel %vm100, %v2799, -inf
    %2844 = vmax.xlane.f32.xlu0 %v2843
    %v2845 = vpop.xlane.xlu0 %2844
    %v2846 = vsel %vm100, %v2835, -inf
    %2847 = vmax.xlane.f32.xlu0 %v2846
    %v2848 = vpop.xlane.xlu0 %2847
    %v2849 = vsel %vm100, %v2838, -inf
    %2850 = vmax.xlane.f32.xlu0 %v2849
    %v2851 = vpop.xlane.xlu0 %2850
    %v2852 = vsub.f32 %v2796, %v2842
    %v2853 = vsub.f32 %v2799, %v2845
    %v2854 = vsub.f32 %v2835, %v2848
    %v2855 = vsub.f32 %v2838, %v2851
    %v2856 = vmul.f32 %v2852, 1.442695
    %v2857 = vpow.pop %v2856
    %v2858 = vmul.f32 %v2853, 1.442695
    %v2859 = vpow.pop %v2858
    %v2860 = vmul.f32 %v2854, 1.442695
    %v2861 = vpow.pop %v2860
    %v2862 = vmul.f32 %v2855, 1.442695
    %v2863 = vpow.pop %v2862
    %v2864 = vsel %vm100, %v2857, 0.0
    %2865 = vadd.xlane.f32.xlu0 %v2864
    %v2866 = vpop.xlane.xlu0 %2865
    %v2867 = vsel %vm100, %v2859, 0.0
    %2868 = vadd.xlane.f32.xlu0 %v2867
    %v2869 = vpop.xlane.xlu0 %2868
    %v2870 = vsel %vm100, %v2861, 0.0
    %2871 = vadd.xlane.f32.xlu0 %v2870
    %v2872 = vpop.xlane.xlu0 %2871
    %v2873 = vsel %vm100, %v2863, 0.0
    %2874 = vadd.xlane.f32.xlu0 %v2873
    %v2875 = vpop.xlane.xlu0 %2874
    %v2876 = vrcp.pop %v2866
    %v2877 = vmul.f32 %v2866, %v2876
    %v2878 = vsub.f32 1.0, %v2877
    %v2879 = vmul.f32 %v2876, %v2878
    %v2880 = vadd.f32 %v2876, %v2879
    %vm2881 = vweird.f32 %v2866
    %vm2882 = vweird.f32 %v2876
    %vm2883 = vmor %vm2881, %vm2882
    %v2884 = vsel %vm2883, %v2876, %v2880
    %v2885 = vand.u32 2147483647, %v2866
    %vm2886 = vcmp.eq.f32.partialorder %v2885, 8.507059e+37
    %v2887 = vand.u32 %v2866, 2147483648
    %v2888 = vor.u32 1.1754944e-38, %v2887
    %v2889 = vsel %vm2886, %v2888, %v2884
    %v2890 = vmul.f32 %v2857, %v2889
    %v2891 = vrcp.pop %v2869
    %v2892 = vmul.f32 %v2869, %v2891
    %v2893 = vsub.f32 1.0, %v2892
    %v2894 = vmul.f32 %v2891, %v2893
    %v2895 = vadd.f32 %v2891, %v2894
    %vm2896 = vweird.f32 %v2869
    %vm2897 = vweird.f32 %v2891
    %vm2898 = vmor %vm2896, %vm2897
    %v2899 = vsel %vm2898, %v2891, %v2895
    %v2900 = vand.u32 2147483647, %v2869
    %vm2901 = vcmp.eq.f32.partialorder %v2900, 8.507059e+37
    %v2902 = vand.u32 %v2869, 2147483648
    %v2903 = vor.u32 1.1754944e-38, %v2902
    %v2904 = vsel %vm2901, %v2903, %v2899
    %v2905 = vmul.f32 %v2859, %v2904
    %v2906 = vrcp.pop %v2872
    %v2907 = vmul.f32 %v2872, %v2906
    %v2908 = vsub.f32 1.0, %v2907
    %v2909 = vmul.f32 %v2906, %v2908
    %v2910 = vadd.f32 %v2906, %v2909
    %vm2911 = vweird.f32 %v2872
    %vm2912 = vweird.f32 %v2906
    %vm2913 = vmor %vm2911, %vm2912
    %v2914 = vsel %vm2913, %v2906, %v2910
    %v2915 = vand.u32 2147483647, %v2872
    %vm2916 = vcmp.eq.f32.partialorder %v2915, 8.507059e+37
    %v2917 = vand.u32 %v2872, 2147483648
    %v2918 = vor.u32 1.1754944e-38, %v2917
    %v2919 = vsel %vm2916, %v2918, %v2914
    %v2920 = vmul.f32 %v2861, %v2919
    %v2921 = vrcp.pop %v2875
    %v2922 = vmul.f32 %v2875, %v2921
    %v2923 = vsub.f32 1.0, %v2922
    %v2924 = vmul.f32 %v2921, %v2923
    %v2925 = vadd.f32 %v2921, %v2924
    %vm2926 = vweird.f32 %v2875
    %vm2927 = vweird.f32 %v2921
    %vm2928 = vmor %vm2926, %vm2927
    %v2929 = vsel %vm2928, %v2921, %v2925
    %v2930 = vand.u32 2147483647, %v2875
    %vm2931 = vcmp.eq.f32.partialorder %v2930, 8.507059e+37
    %v2932 = vand.u32 %v2875, 2147483648
    %v2933 = vor.u32 1.1754944e-38, %v2932
    %v2934 = vsel %vm2931, %v2933, %v2929
    %v2935 = vmul.f32 %v2863, %v2934
    %2936 = vrot.lane.b32.xlu0 %v2511, 56
    %v2937 = vpop.permute.xlu0 %2936
    %2938 = vrot.lane.b32.xlu0 %v2514, 56
    %v2939 = vpop.permute.xlu0 %2938
    %v2943 = vsel %vm100, %v2890, 0
    %v2946 = vsel %vm100, %v2905, 0
    %2948 = vmatpush.msra.mxu0 0.0
    %2949 = vmatpush.msra.mxu0 0.0
    %2950 = vmatpush.msra.mxu0 0.0
    %2951 = vmatpush.msra.mxu0 0.0
    %2952 = vmatpush.msra.mxu0 0.0
    %2953 = vmatpush.msra.mxu0 0.0
    %2954 = vmatpush.msra.mxu0 0.0
    %2955 = vmatpush.msra.mxu0 0.0
    %2956 = vmatpush.msra.mxu0 0.0
    %2957 = vmatpush.msra.mxu0 0.0
    %2958 = vmatpush.msra.mxu0 0.0
    %2959 = vmatpush.msra.mxu0 0.0
    %2960 = vmatpush.msra.mxu0 0.0
    %2961 = vmatpush.msra.mxu0 0.0
    %2962 = vmatpush.msra.mxu0 %v2939
    %2963 = vmatpush.msra.mxu0 %v2937
    %2964 = vmatmul.f32.gmra.mxu0 %v2943
    %v2965 = vpop.f32.mrf.mxu0
    %v2966 = vadd.f32 0.0, %v2965
    %2967 = vmatmul.f32.gmra.mxu0 %v2946
    %v2968 = vpop.f32.mrf.mxu0
    %v2969 = vadd.f32 0.0, %v2968
    %2970 = vdwg.mxu0
    %2971 = vrot.lane.b32.xlu0 %v2517, 56
    %v2972 = vpop.permute.xlu0 %2971
    %2973 = vrot.lane.b32.xlu0 %v2520, 56
    %v2974 = vpop.permute.xlu0 %2973
    %v2978 = vsel %vm100, %v2920, 0
    %v2981 = vsel %vm100, %v2935, 0
    %2983 = vmatpush.msra.mxu0 0.0
    %2984 = vmatpush.msra.mxu0 0.0
    %2985 = vmatpush.msra.mxu0 0.0
    %2986 = vmatpush.msra.mxu0 0.0
    %2987 = vmatpush.msra.mxu0 0.0
    %2988 = vmatpush.msra.mxu0 0.0
    %2989 = vmatpush.msra.mxu0 0.0
    %2990 = vmatpush.msra.mxu0 0.0
    %2991 = vmatpush.msra.mxu0 0.0
    %2992 = vmatpush.msra.mxu0 0.0
    %2993 = vmatpush.msra.mxu0 0.0
    %2994 = vmatpush.msra.mxu0 0.0
    %2995 = vmatpush.msra.mxu0 0.0
    %2996 = vmatpush.msra.mxu0 0.0
    %2997 = vmatpush.msra.mxu0 %v2974
    %2998 = vmatpush.msra.mxu0 %v2972
    %2999 = vmatmul.f32.gmra.mxu0 %v2978
    %v3000 = vpop.f32.mrf.mxu0
    %v3001 = vadd.f32 0.0, %v3000
    %3002 = vmatmul.f32.gmra.mxu0 %v2981
    %v3003 = vpop.f32.mrf.mxu0
    %v3004 = vadd.f32 0.0, %v3003
    %3005 = vdwg.mxu0
    %3006 = vrot.lane.b32.xlu0 %v2511, 112
    %v3007 = vpop.permute.xlu0 %3006
    %3008 = vrot.lane.b32.xlu0 %v2514, 112
    %v3009 = vpop.permute.xlu0 %3008
    %3010 = vrot.lane.b32.xlu0 %v2511, 80
    %v3011 = vpop.permute.xlu0 %3010
    %3012 = vrot.lane.b32.xlu0 %v2514, 80
    %v3013 = vpop.permute.xlu0 %3012
    %v3014 = vsel %vm912, %v3007, 0
    %v3016 = vsel %vm912, %v3009, 0
    %v3018 = vsel %vm912, %v3011, 0
    %v3020 = vsel %vm912, %v3013, 0
    %3022 = vmatpush.xpose.msra.mxu0 0.0
    %3023 = vmatpush.xpose.msra.mxu0 0.0
    %3024 = vmatpush.xpose.msra.mxu0 0.0
    %3025 = vmatpush.xpose.msra.mxu0 0.0
    %3026 = vmatpush.xpose.msra.mxu0 0.0
    %3027 = vmatpush.xpose.msra.mxu0 0.0
    %3028 = vmatpush.xpose.msra.mxu0 0.0
    %3029 = vmatpush.xpose.msra.mxu0 0.0
    %3030 = vmatpush.xpose.msra.mxu0 0.0
    %3031 = vmatpush.xpose.msra.mxu0 0.0
    %3032 = vmatpush.xpose.msra.mxu0 0.0
    %3033 = vmatpush.xpose.msra.mxu0 0.0
    %3034 = vmatpush.xpose.msra.mxu0 0.0
    %3035 = vmatpush.xpose.msra.mxu0 0.0
    %3036 = vmatpush.xpose.msra.mxu0 %v3020
    %3037 = vmatpush.xpose.msra.mxu0 %v3018
    %3038 = vmatmul.f32.gmra.mxu0 %v3014
    %v3039 = vpop.f32.mrf.mxu0
    %v3040 = vadd.f32 %v745, %v3039
    %3041 = vmatmul.f32.gmra.mxu0 %v3016
    %v3042 = vpop.f32.mrf.mxu0
    %v3043 = vadd.f32 %v746, %v3042
    %3044 = vdwg.mxu0
    %3045 = vrot.lane.b32.xlu0 %v2517, 112
    %v3046 = vpop.permute.xlu0 %3045
    %3047 = vrot.lane.b32.xlu0 %v2520, 112
    %v3048 = vpop.permute.xlu0 %3047
    %3049 = vrot.lane.b32.xlu0 %v2517, 80
    %v3050 = vpop.permute.xlu0 %3049
    %3051 = vrot.lane.b32.xlu0 %v2520, 80
    %v3052 = vpop.permute.xlu0 %3051
    %v3053 = vsel %vm912, %v3046, 0
    %v3055 = vsel %vm912, %v3048, 0
    %v3057 = vsel %vm912, %v3050, 0
    %v3059 = vsel %vm912, %v3052, 0
    %3061 = vmatpush.xpose.msra.mxu0 0.0
    %3062 = vmatpush.xpose.msra.mxu0 0.0
    %3063 = vmatpush.xpose.msra.mxu0 0.0
    %3064 = vmatpush.xpose.msra.mxu0 0.0
    %3065 = vmatpush.xpose.msra.mxu0 0.0
    %3066 = vmatpush.xpose.msra.mxu0 0.0
    %3067 = vmatpush.xpose.msra.mxu0 0.0
    %3068 = vmatpush.xpose.msra.mxu0 0.0
    %3069 = vmatpush.xpose.msra.mxu0 0.0
    %3070 = vmatpush.xpose.msra.mxu0 0.0
    %3071 = vmatpush.xpose.msra.mxu0 0.0
    %3072 = vmatpush.xpose.msra.mxu0 0.0
    %3073 = vmatpush.xpose.msra.mxu0 0.0
    %3074 = vmatpush.xpose.msra.mxu0 0.0
    %3075 = vmatpush.xpose.msra.mxu0 %v3059
    %3076 = vmatpush.xpose.msra.mxu0 %v3057
    %3077 = vmatmul.f32.gmra.mxu0 %v3053
    %v3078 = vpop.f32.mrf.mxu0
    %v3079 = vadd.f32 %v747, %v3078
    %3080 = vmatmul.f32.gmra.mxu0 %v3055
    %v3081 = vpop.f32.mrf.mxu0
    %v3082 = vadd.f32 %v748, %v3081
    %3083 = vdwg.mxu0
    %v3084 = vsel %vm100, %v3040, -inf
    %3085 = vmax.xlane.f32.xlu0 %v3084
    %v3086 = vpop.xlane.xlu0 %3085
    %v3087 = vsel %vm100, %v3043, -inf
    %3088 = vmax.xlane.f32.xlu0 %v3087
    %v3089 = vpop.xlane.xlu0 %3088
    %v3090 = vsel %vm100, %v3079, -inf
    %3091 = vmax.xlane.f32.xlu0 %v3090
    %v3092 = vpop.xlane.xlu0 %3091
    %v3093 = vsel %vm100, %v3082, -inf
    %3094 = vmax.xlane.f32.xlu0 %v3093
    %v3095 = vpop.xlane.xlu0 %3094
    %v3096 = vsub.f32 %v3040, %v3086
    %v3097 = vsub.f32 %v3043, %v3089
    %v3098 = vsub.f32 %v3079, %v3092
    %v3099 = vsub.f32 %v3082, %v3095
    %v3100 = vmul.f32 %v3096, 1.442695
    %v3101 = vpow.pop %v3100
    %v3102 = vmul.f32 %v3097, 1.442695
    %v3103 = vpow.pop %v3102
    %v3104 = vmul.f32 %v3098, 1.442695
    %v3105 = vpow.pop %v3104
    %v3106 = vmul.f32 %v3099, 1.442695
    %v3107 = vpow.pop %v3106
    %v3108 = vsel %vm100, %v3101, 0.0
    %3109 = vadd.xlane.f32.xlu0 %v3108
    %v3110 = vpop.xlane.xlu0 %3109
    %v3111 = vsel %vm100, %v3103, 0.0
    %3112 = vadd.xlane.f32.xlu0 %v3111
    %v3113 = vpop.xlane.xlu0 %3112
    %v3114 = vsel %vm100, %v3105, 0.0
    %3115 = vadd.xlane.f32.xlu0 %v3114
    %v3116 = vpop.xlane.xlu0 %3115
    %v3117 = vsel %vm100, %v3107, 0.0
    %3118 = vadd.xlane.f32.xlu0 %v3117
    %v3119 = vpop.xlane.xlu0 %3118
    %v3120 = vrcp.pop %v3110
    %v3121 = vmul.f32 %v3110, %v3120
    %v3122 = vsub.f32 1.0, %v3121
    %v3123 = vmul.f32 %v3120, %v3122
    %v3124 = vadd.f32 %v3120, %v3123
    %vm3125 = vweird.f32 %v3110
    %vm3126 = vweird.f32 %v3120
    %vm3127 = vmor %vm3125, %vm3126
    %v3128 = vsel %vm3127, %v3120, %v3124
    %v3129 = vand.u32 2147483647, %v3110
    %vm3130 = vcmp.eq.f32.partialorder %v3129, 8.507059e+37
    %v3131 = vand.u32 %v3110, 2147483648
    %v3132 = vor.u32 1.1754944e-38, %v3131
    %v3133 = vsel %vm3130, %v3132, %v3128
    %v3134 = vmul.f32 %v3101, %v3133
    %v3135 = vrcp.pop %v3113
    %v3136 = vmul.f32 %v3113, %v3135
    %v3137 = vsub.f32 1.0, %v3136
    %v3138 = vmul.f32 %v3135, %v3137
    %v3139 = vadd.f32 %v3135, %v3138
    %vm3140 = vweird.f32 %v3113
    %vm3141 = vweird.f32 %v3135
    %vm3142 = vmor %vm3140, %vm3141
    %v3143 = vsel %vm3142, %v3135, %v3139
    %v3144 = vand.u32 2147483647, %v3113
    %vm3145 = vcmp.eq.f32.partialorder %v3144, 8.507059e+37
    %v3146 = vand.u32 %v3113, 2147483648
    %v3147 = vor.u32 1.1754944e-38, %v3146
    %v3148 = vsel %vm3145, %v3147, %v3143
    %v3149 = vmul.f32 %v3103, %v3148
    %v3150 = vrcp.pop %v3116
    %v3151 = vmul.f32 %v3116, %v3150
    %v3152 = vsub.f32 1.0, %v3151
    %v3153 = vmul.f32 %v3150, %v3152
    %v3154 = vadd.f32 %v3150, %v3153
    %vm3155 = vweird.f32 %v3116
    %vm3156 = vweird.f32 %v3150
    %vm3157 = vmor %vm3155, %vm3156
    %v3158 = vsel %vm3157, %v3150, %v3154
    %v3159 = vand.u32 2147483647, %v3116
    %vm3160 = vcmp.eq.f32.partialorder %v3159, 8.507059e+37
    %v3161 = vand.u32 %v3116, 2147483648
    %v3162 = vor.u32 1.1754944e-38, %v3161
    %v3163 = vsel %vm3160, %v3162, %v3158
    %v3164 = vmul.f32 %v3105, %v3163
    %v3165 = vrcp.pop %v3119
    %v3166 = vmul.f32 %v3119, %v3165
    %v3167 = vsub.f32 1.0, %v3166
    %v3168 = vmul.f32 %v3165, %v3167
    %v3169 = vadd.f32 %v3165, %v3168
    %vm3170 = vweird.f32 %v3119
    %vm3171 = vweird.f32 %v3165
    %vm3172 = vmor %vm3170, %vm3171
    %v3173 = vsel %vm3172, %v3165, %v3169
    %v3174 = vand.u32 2147483647, %v3119
    %vm3175 = vcmp.eq.f32.partialorder %v3174, 8.507059e+37
    %v3176 = vand.u32 %v3119, 2147483648
    %v3177 = vor.u32 1.1754944e-38, %v3176
    %v3178 = vsel %vm3175, %v3177, %v3173
    %v3179 = vmul.f32 %v3107, %v3178
    %3180 = vrot.lane.b32.xlu0 %v2511, 48
    %v3181 = vpop.permute.xlu0 %3180
    %3182 = vrot.lane.b32.xlu0 %v2514, 48
    %v3183 = vpop.permute.xlu0 %3182
    %v3187 = vsel %vm100, %v3134, 0
    %v3190 = vsel %vm100, %v3149, 0
    %3192 = vmatpush.msra.mxu0 0.0
    %3193 = vmatpush.msra.mxu0 0.0
    %3194 = vmatpush.msra.mxu0 0.0
    %3195 = vmatpush.msra.mxu0 0.0
    %3196 = vmatpush.msra.mxu0 0.0
    %3197 = vmatpush.msra.mxu0 0.0
    %3198 = vmatpush.msra.mxu0 0.0
    %3199 = vmatpush.msra.mxu0 0.0
    %3200 = vmatpush.msra.mxu0 0.0
    %3201 = vmatpush.msra.mxu0 0.0
    %3202 = vmatpush.msra.mxu0 0.0
    %3203 = vmatpush.msra.mxu0 0.0
    %3204 = vmatpush.msra.mxu0 0.0
    %3205 = vmatpush.msra.mxu0 0.0
    %3206 = vmatpush.msra.mxu0 %v3183
    %3207 = vmatpush.msra.mxu0 %v3181
    %3208 = vmatmul.f32.gmra.mxu0 %v3187
    %v3209 = vpop.f32.mrf.mxu0
    %v3210 = vadd.f32 0.0, %v3209
    %3211 = vmatmul.f32.gmra.mxu0 %v3190
    %v3212 = vpop.f32.mrf.mxu0
    %v3213 = vadd.f32 0.0, %v3212
    %3214 = vdwg.mxu0
    %3215 = vrot.lane.b32.xlu0 %v2517, 48
    %v3216 = vpop.permute.xlu0 %3215
    %3217 = vrot.lane.b32.xlu0 %v2520, 48
    %v3218 = vpop.permute.xlu0 %3217
    %v3222 = vsel %vm100, %v3164, 0
    %v3225 = vsel %vm100, %v3179, 0
    %3227 = vmatpush.msra.mxu0 0.0
    %3228 = vmatpush.msra.mxu0 0.0
    %3229 = vmatpush.msra.mxu0 0.0
    %3230 = vmatpush.msra.mxu0 0.0
    %3231 = vmatpush.msra.mxu0 0.0
    %3232 = vmatpush.msra.mxu0 0.0
    %3233 = vmatpush.msra.mxu0 0.0
    %3234 = vmatpush.msra.mxu0 0.0
    %3235 = vmatpush.msra.mxu0 0.0
    %3236 = vmatpush.msra.mxu0 0.0
    %3237 = vmatpush.msra.mxu0 0.0
    %3238 = vmatpush.msra.mxu0 0.0
    %3239 = vmatpush.msra.mxu0 0.0
    %3240 = vmatpush.msra.mxu0 0.0
    %3241 = vmatpush.msra.mxu0 %v3218
    %3242 = vmatpush.msra.mxu0 %v3216
    %3243 = vmatmul.f32.gmra.mxu0 %v3222
    %v3244 = vpop.f32.mrf.mxu0
    %v3245 = vadd.f32 0.0, %v3244
    %3246 = vmatmul.f32.gmra.mxu0 %v3225
    %v3247 = vpop.f32.mrf.mxu0
    %v3248 = vadd.f32 0.0, %v3247
    %3249 = vdwg.mxu0
    %3250 = vrot.lane.b32.xlu0 %v2511, 104
    %v3251 = vpop.permute.xlu0 %3250
    %3252 = vrot.lane.b32.xlu0 %v2514, 104
    %v3253 = vpop.permute.xlu0 %3252
    %3254 = vrot.lane.b32.xlu0 %v2511, 72
    %v3255 = vpop.permute.xlu0 %3254
    %3256 = vrot.lane.b32.xlu0 %v2514, 72
    %v3257 = vpop.permute.xlu0 %3256
    %v3258 = vsel %vm912, %v3251, 0
    %v3260 = vsel %vm912, %v3253, 0
    %v3262 = vsel %vm912, %v3255, 0
    %v3264 = vsel %vm912, %v3257, 0
    %3266 = vmatpush.xpose.msra.mxu0 0.0
    %3267 = vmatpush.xpose.msra.mxu0 0.0
    %3268 = vmatpush.xpose.msra.mxu0 0.0
    %3269 = vmatpush.xpose.msra.mxu0 0.0
    %3270 = vmatpush.xpose.msra.mxu0 0.0
    %3271 = vmatpush.xpose.msra.mxu0 0.0
    %3272 = vmatpush.xpose.msra.mxu0 0.0
    %3273 = vmatpush.xpose.msra.mxu0 0.0
    %3274 = vmatpush.xpose.msra.mxu0 0.0
    %3275 = vmatpush.xpose.msra.mxu0 0.0
    %3276 = vmatpush.xpose.msra.mxu0 0.0
    %3277 = vmatpush.xpose.msra.mxu0 0.0
    %3278 = vmatpush.xpose.msra.mxu0 0.0
    %3279 = vmatpush.xpose.msra.mxu0 0.0
    %3280 = vmatpush.xpose.msra.mxu0 %v3264
    %3281 = vmatpush.xpose.msra.mxu0 %v3262
    %3282 = vmatmul.f32.gmra.mxu0 %v3258
    %v3283 = vpop.f32.mrf.mxu0
    %v3284 = vadd.f32 %v751, %v3283
    %3285 = vmatmul.f32.gmra.mxu0 %v3260
    %v3286 = vpop.f32.mrf.mxu0
    %v3287 = vadd.f32 %v752, %v3286
    %3288 = vdwg.mxu0
    %3289 = vrot.lane.b32.xlu0 %v2517, 104
    %v3290 = vpop.permute.xlu0 %3289
    %3291 = vrot.lane.b32.xlu0 %v2520, 104
    %v3292 = vpop.permute.xlu0 %3291
    %3293 = vrot.lane.b32.xlu0 %v2517, 72
    %v3294 = vpop.permute.xlu0 %3293
    %3295 = vrot.lane.b32.xlu0 %v2520, 72
    %v3296 = vpop.permute.xlu0 %3295
    %v3297 = vsel %vm912, %v3290, 0
    %v3299 = vsel %vm912, %v3292, 0
    %v3301 = vsel %vm912, %v3294, 0
    %v3303 = vsel %vm912, %v3296, 0
    %3305 = vmatpush.xpose.msra.mxu0 0.0
    %3306 = vmatpush.xpose.msra.mxu0 0.0
    %3307 = vmatpush.xpose.msra.mxu0 0.0
    %3308 = vmatpush.xpose.msra.mxu0 0.0
    %3309 = vmatpush.xpose.msra.mxu0 0.0
    %3310 = vmatpush.xpose.msra.mxu0 0.0
    %3311 = vmatpush.xpose.msra.mxu0 0.0
    %3312 = vmatpush.xpose.msra.mxu0 0.0
    %3313 = vmatpush.xpose.msra.mxu0 0.0
    %3314 = vmatpush.xpose.msra.mxu0 0.0
    %3315 = vmatpush.xpose.msra.mxu0 0.0
    %3316 = vmatpush.xpose.msra.mxu0 0.0
    %3317 = vmatpush.xpose.msra.mxu0 0.0
    %3318 = vmatpush.xpose.msra.mxu0 0.0
    %3319 = vmatpush.xpose.msra.mxu0 %v3303
    %3320 = vmatpush.xpose.msra.mxu0 %v3301
    %3321 = vmatmul.f32.gmra.mxu0 %v3297
    %v3322 = vpop.f32.mrf.mxu0
    %v3323 = vadd.f32 %v753, %v3322
    %3324 = vmatmul.f32.gmra.mxu0 %v3299
    %v3325 = vpop.f32.mrf.mxu0
    %v3326 = vadd.f32 %v754, %v3325
    %3327 = vdwg.mxu0
    %v3328 = vsel %vm100, %v3284, -inf
    %3329 = vmax.xlane.f32.xlu0 %v3328
    %v3330 = vpop.xlane.xlu0 %3329
    %v3331 = vsel %vm100, %v3287, -inf
    %3332 = vmax.xlane.f32.xlu0 %v3331
    %v3333 = vpop.xlane.xlu0 %3332
    %v3334 = vsel %vm100, %v3323, -inf
    %3335 = vmax.xlane.f32.xlu0 %v3334
    %v3336 = vpop.xlane.xlu0 %3335
    %v3337 = vsel %vm100, %v3326, -inf
    %3338 = vmax.xlane.f32.xlu0 %v3337
    %v3339 = vpop.xlane.xlu0 %3338
    %v3340 = vsub.f32 %v3284, %v3330
    %v3341 = vsub.f32 %v3287, %v3333
    %v3342 = vsub.f32 %v3323, %v3336
    %v3343 = vsub.f32 %v3326, %v3339
    %v3344 = vmul.f32 %v3340, 1.442695
    %v3345 = vpow.pop %v3344
    %v3346 = vmul.f32 %v3341, 1.442695
    %v3347 = vpow.pop %v3346
    %v3348 = vmul.f32 %v3342, 1.442695
    %v3349 = vpow.pop %v3348
    %v3350 = vmul.f32 %v3343, 1.442695
    %v3351 = vpow.pop %v3350
    %v3352 = vsel %vm100, %v3345, 0.0
    %3353 = vadd.xlane.f32.xlu0 %v3352
    %v3354 = vpop.xlane.xlu0 %3353
    %v3355 = vsel %vm100, %v3347, 0.0
    %3356 = vadd.xlane.f32.xlu0 %v3355
    %v3357 = vpop.xlane.xlu0 %3356
    %v3358 = vsel %vm100, %v3349, 0.0
    %3359 = vadd.xlane.f32.xlu0 %v3358
    %v3360 = vpop.xlane.xlu0 %3359
    %v3361 = vsel %vm100, %v3351, 0.0
    %3362 = vadd.xlane.f32.xlu0 %v3361
    %v3363 = vpop.xlane.xlu0 %3362
    %v3364 = vrcp.pop %v3354
    %v3365 = vmul.f32 %v3354, %v3364
    %v3366 = vsub.f32 1.0, %v3365
    %v3367 = vmul.f32 %v3364, %v3366
    %v3368 = vadd.f32 %v3364, %v3367
    %vm3369 = vweird.f32 %v3354
    %vm3370 = vweird.f32 %v3364
    %vm3371 = vmor %vm3369, %vm3370
    %v3372 = vsel %vm3371, %v3364, %v3368
    %v3373 = vand.u32 2147483647, %v3354
    %vm3374 = vcmp.eq.f32.partialorder %v3373, 8.507059e+37
    %v3375 = vand.u32 %v3354, 2147483648
    %v3376 = vor.u32 1.1754944e-38, %v3375
    %v3377 = vsel %vm3374, %v3376, %v3372
    %v3378 = vmul.f32 %v3345, %v3377
    %v3379 = vrcp.pop %v3357
    %v3380 = vmul.f32 %v3357, %v3379
    %v3381 = vsub.f32 1.0, %v3380
    %v3382 = vmul.f32 %v3379, %v3381
    %v3383 = vadd.f32 %v3379, %v3382
    %vm3384 = vweird.f32 %v3357
    %vm3385 = vweird.f32 %v3379
    %vm3386 = vmor %vm3384, %vm3385
    %v3387 = vsel %vm3386, %v3379, %v3383
    %v3388 = vand.u32 2147483647, %v3357
    %vm3389 = vcmp.eq.f32.partialorder %v3388, 8.507059e+37
    %v3390 = vand.u32 %v3357, 2147483648
    %v3391 = vor.u32 1.1754944e-38, %v3390
    %v3392 = vsel %vm3389, %v3391, %v3387
    %v3393 = vmul.f32 %v3347, %v3392
    %v3394 = vrcp.pop %v3360
    %v3395 = vmul.f32 %v3360, %v3394
    %v3396 = vsub.f32 1.0, %v3395
    %v3397 = vmul.f32 %v3394, %v3396
    %v3398 = vadd.f32 %v3394, %v3397
    %vm3399 = vweird.f32 %v3360
    %vm3400 = vweird.f32 %v3394
    %vm3401 = vmor %vm3399, %vm3400
    %v3402 = vsel %vm3401, %v3394, %v3398
    %v3403 = vand.u32 2147483647, %v3360
    %vm3404 = vcmp.eq.f32.partialorder %v3403, 8.507059e+37
    %v3405 = vand.u32 %v3360, 2147483648
    %v3406 = vor.u32 1.1754944e-38, %v3405
    %v3407 = vsel %vm3404, %v3406, %v3402
    %v3408 = vmul.f32 %v3349, %v3407
    %v3409 = vrcp.pop %v3363
    %v3410 = vmul.f32 %v3363, %v3409
    %v3411 = vsub.f32 1.0, %v3410
    %v3412 = vmul.f32 %v3409, %v3411
    %v3413 = vadd.f32 %v3409, %v3412
    %vm3414 = vweird.f32 %v3363
    %vm3415 = vweird.f32 %v3409
    %vm3416 = vmor %vm3414, %vm3415
    %v3417 = vsel %vm3416, %v3409, %v3413
    %v3418 = vand.u32 2147483647, %v3363
    %vm3419 = vcmp.eq.f32.partialorder %v3418, 8.507059e+37
    %v3420 = vand.u32 %v3363, 2147483648
    %v3421 = vor.u32 1.1754944e-38, %v3420
    %v3422 = vsel %vm3419, %v3421, %v3417
    %v3423 = vmul.f32 %v3351, %v3422
    %3424 = vrot.lane.b32.xlu0 %v2511, 40
    %v3425 = vpop.permute.xlu0 %3424
    %3426 = vrot.lane.b32.xlu0 %v2514, 40
    %v3427 = vpop.permute.xlu0 %3426
    %v3431 = vsel %vm100, %v3378, 0
    %v3434 = vsel %vm100, %v3393, 0
    %3436 = vmatpush.msra.mxu0 0.0
    %3437 = vmatpush.msra.mxu0 0.0
    %3438 = vmatpush.msra.mxu0 0.0
    %3439 = vmatpush.msra.mxu0 0.0
    %3440 = vmatpush.msra.mxu0 0.0
    %3441 = vmatpush.msra.mxu0 0.0
    %3442 = vmatpush.msra.mxu0 0.0
    %3443 = vmatpush.msra.mxu0 0.0
    %3444 = vmatpush.msra.mxu0 0.0
    %3445 = vmatpush.msra.mxu0 0.0
    %3446 = vmatpush.msra.mxu0 0.0
    %3447 = vmatpush.msra.mxu0 0.0
    %3448 = vmatpush.msra.mxu0 0.0
    %3449 = vmatpush.msra.mxu0 0.0
    %3450 = vmatpush.msra.mxu0 %v3427
    %3451 = vmatpush.msra.mxu0 %v3425
    %3452 = vmatmul.f32.gmra.mxu0 %v3431
    %v3453 = vpop.f32.mrf.mxu0
    %v3454 = vadd.f32 0.0, %v3453
    %3455 = vmatmul.f32.gmra.mxu0 %v3434
    %v3456 = vpop.f32.mrf.mxu0
    %v3457 = vadd.f32 0.0, %v3456
    %3458 = vdwg.mxu0
    %3459 = vrot.lane.b32.xlu0 %v2517, 40
    %v3460 = vpop.permute.xlu0 %3459
    %3461 = vrot.lane.b32.xlu0 %v2520, 40
    %v3462 = vpop.permute.xlu0 %3461
    %v3466 = vsel %vm100, %v3408, 0
    %v3469 = vsel %vm100, %v3423, 0
    %3471 = vmatpush.msra.mxu0 0.0
    %3472 = vmatpush.msra.mxu0 0.0
    %3473 = vmatpush.msra.mxu0 0.0
    %3474 = vmatpush.msra.mxu0 0.0
    %3475 = vmatpush.msra.mxu0 0.0
    %3476 = vmatpush.msra.mxu0 0.0
    %3477 = vmatpush.msra.mxu0 0.0
    %3478 = vmatpush.msra.mxu0 0.0
    %3479 = vmatpush.msra.mxu0 0.0
    %3480 = vmatpush.msra.mxu0 0.0
    %3481 = vmatpush.msra.mxu0 0.0
    %3482 = vmatpush.msra.mxu0 0.0
    %3483 = vmatpush.msra.mxu0 0.0
    %3484 = vmatpush.msra.mxu0 0.0
    %3485 = vmatpush.msra.mxu0 %v3462
    %3486 = vmatpush.msra.mxu0 %v3460
    %3487 = vmatmul.f32.gmra.mxu0 %v3466
    %v3488 = vpop.f32.mrf.mxu0
    %v3489 = vadd.f32 0.0, %v3488
    %3490 = vmatmul.f32.gmra.mxu0 %v3469
    %v3491 = vpop.f32.mrf.mxu0
    %v3492 = vadd.f32 0.0, %v3491
    %3493 = vdwg.mxu0
    %3498 = vrot.lane.b32.xlu0 %v2966, 8
    %v3499 = vpop.permute.xlu0 %3498
    %3500 = vrot.lane.b32.xlu0 %v2969, 8
    %v3501 = vpop.permute.xlu0 %3500
    %3502 = vrot.lane.b32.xlu0 %v3001, 8
    %v3503 = vpop.permute.xlu0 %3502
    %3504 = vrot.lane.b32.xlu0 %v3004, 8
    %v3505 = vpop.permute.xlu0 %3504
    %3514 = vrot.lane.b32.xlu0 %v3210, 16
    %v3515 = vpop.permute.xlu0 %3514
    %3516 = vrot.lane.b32.xlu0 %v3213, 16
    %v3517 = vpop.permute.xlu0 %3516
    %3518 = vrot.lane.b32.xlu0 %v3245, 16
    %v3519 = vpop.permute.xlu0 %3518
    %3520 = vrot.lane.b32.xlu0 %v3248, 16
    %v3521 = vpop.permute.xlu0 %3520
    %3530 = vrot.lane.b32.xlu0 %v3454, 24
    %v3531 = vpop.permute.xlu0 %3530
    %3532 = vrot.lane.b32.xlu0 %v3457, 24
    %v3533 = vpop.permute.xlu0 %3532
    %3534 = vrot.lane.b32.xlu0 %v3489, 24
    %v3535 = vpop.permute.xlu0 %3534
    %3536 = vrot.lane.b32.xlu0 %v3492, 24
    %v3537 = vpop.permute.xlu0 %3536
    %v3542 = vsel %vm912, %v2722, %v3499
    %v3543 = vsel %vm912, %v2725, %v3501
    %v3544 = vsel %vm912, %v2757, %v3503
    %v3545 = vsel %vm912, %v2760, %v3505
    %v3546 = vsel %vm100, %v3542, %v3515
    %v3547 = vsel %vm100, %v3543, %v3517
    %v3548 = vsel %vm100, %v3544, %v3519
    %v3549 = vsel %vm100, %v3545, %v3521
    %v3550 = vsel %vm1935, %v3546, %v3531
    %v3551 = vsel %vm1935, %v3547, %v3533
    %v3552 = vsel %vm1935, %v3548, %v3535
    %v3553 = vsel %vm1935, %v3549, %v3537
    %s3554 = scalar_lea.vmem %s6, 32
    %v3555 = vld [vmem:[%s3554] sm:$0xff]
    %v3556 = vld [vmem:[%s3554 + $0x8] sm:$0xff]
    %v3557 = vld [vmem:[%s3554 + $0x10] sm:$0xff]
    %v3558 = vld [vmem:[%s3554 + $0x18] sm:$0xff]
    %v3560 = vsel %vm142, %v3550, 0
    %v3563 = vsel %vm142, %v3551, 0
    %v3566 = vsel %vm142, %v3552, 0
    %v3569 = vsel %vm142, %v3553, 0
    %3571 = vmatpush.msra.mxu0 0.0
    %3572 = vmatpush.msra.mxu0 0.0
    %3573 = vmatpush.msra.mxu0 0.0
    %3574 = vmatpush.msra.mxu0 0.0
    %3575 = vmatpush.msra.mxu0 0.0
    %3576 = vmatpush.msra.mxu0 0.0
    %3577 = vmatpush.msra.mxu0 0.0
    %3578 = vmatpush.msra.mxu0 0.0
    %3579 = vmatpush.msra.mxu0 0.0
    %3580 = vmatpush.msra.mxu0 0.0
    %3581 = vmatpush.msra.mxu0 0.0
    %3582 = vmatpush.msra.mxu0 0.0
    %3583 = vmatpush.msra.mxu0 %v3558
    %3584 = vmatpush.msra.mxu0 %v3557
    %3585 = vmatpush.msra.mxu0 %v3556
    %3586 = vmatpush.msra.mxu0 %v3555
    %3587 = vmatmul.f32.gmra.mxu0 %v3560
    %v3588 = vpop.f32.mrf.mxu0
    %v3589 = vadd.f32 0.0, %v3588
    %3590 = vmatmul.f32.gmra.mxu0 %v3563
    %v3591 = vpop.f32.mrf.mxu0
    %v3592 = vadd.f32 0.0, %v3591
    %3593 = vmatmul.f32.gmra.mxu0 %v3566
    %v3594 = vpop.f32.mrf.mxu0
    %v3595 = vadd.f32 0.0, %v3594
    %3596 = vmatmul.f32.gmra.mxu0 %v3569
    %v3597 = vpop.f32.mrf.mxu0
    %v3598 = vadd.f32 0.0, %v3597
    %3599 = vdwg.mxu0
    %v3600 = vadd.f32 %v2372, %v3589
    %v3601 = vadd.f32 %v2373, %v3592
    %v3602 = vadd.f32 %v2374, %v3595
    %v3603 = vadd.f32 %v2375, %v3598
    %v3604 = vperm.slane %v2377, 4
    %v3605 = vadd.f32 %v3600, %v3604
    %v3606 = vadd.f32 %v3601, %v3604
    %v3607 = vadd.f32 %v3602, %v3604
    %v3608 = vadd.f32 %v3603, %v3604
    %v3609 = vsel %vm142, %v3605, 0.0
    %3610 = vadd.xlane.f32.xlu0 %v3609
    %v3611 = vpop.xlane.xlu0 %3610
    %v3612 = vsel %vm142, %v3606, 0.0
    %3613 = vadd.xlane.f32.xlu0 %v3612
    %v3614 = vpop.xlane.xlu0 %3613
    %v3615 = vsel %vm142, %v3607, 0.0
    %3616 = vadd.xlane.f32.xlu0 %v3615
    %v3617 = vpop.xlane.xlu0 %3616
    %v3618 = vsel %vm142, %v3608, 0.0
    %3619 = vadd.xlane.f32.xlu0 %v3618
    %v3620 = vpop.xlane.xlu0 %3619
    %v3621 = vmul.f32 %v3611, %v774
    %v3622 = vmul.f32 %v3614, %v774
    %v3623 = vmul.f32 %v3617, %v774
    %v3624 = vmul.f32 %v3620, %v774
    %v3625 = vsub.f32 %v3605, %v3621
    %v3626 = vsub.f32 %v3606, %v3622
    %v3627 = vsub.f32 %v3607, %v3623
    %v3628 = vsub.f32 %v3608, %v3624
    %v3629 = vmul.f32 %v3625, %v3625
    %v3630 = vmul.f32 %v3626, %v3626
    %v3631 = vmul.f32 %v3627, %v3627
    %v3632 = vmul.f32 %v3628, %v3628
    %v3633 = vsel %vm142, %v3629, 0.0
    %3634 = vadd.xlane.f32.xlu0 %v3633
    %v3635 = vpop.xlane.xlu0 %3634
    %v3636 = vsel %vm142, %v3630, 0.0
    %3637 = vadd.xlane.f32.xlu0 %v3636
    %v3638 = vpop.xlane.xlu0 %3637
    %v3639 = vsel %vm142, %v3631, 0.0
    %3640 = vadd.xlane.f32.xlu0 %v3639
    %v3641 = vpop.xlane.xlu0 %3640
    %v3642 = vsel %vm142, %v3632, 0.0
    %3643 = vadd.xlane.f32.xlu0 %v3642
    %v3644 = vpop.xlane.xlu0 %3643
    %v3645 = vmul.f32 %v3635, %v774
    %v3646 = vmul.f32 %v3638, %v774
    %v3647 = vmul.f32 %v3641, %v774
    %v3648 = vmul.f32 %v3644, %v774
    %v3649 = vadd.f32 %v3645, 1e-05
    %v3650 = vadd.f32 %v3646, 1e-05
    %v3651 = vadd.f32 %v3647, 1e-05
    %v3652 = vadd.f32 %v3648, 1e-05
    %v3653 = vrsqrt.pop %v3649
    %v3654 = vmul.f32 %v3653, %v3649
    %v3655 = vmul.f32 %v3654, %v3653
    %v3656 = vmul.f32 0.5, %v3655
    %v3657 = vsub.f32 1.5, %v3656
    %v3658 = vmul.f32 %v3653, %v3657
    %vm3659 = vweird.f32 %v3649
    %vm3660 = vweird.f32 %v3653
    %vm3661 = vmor %vm3659, %vm3660
    %v3662 = vsel %vm3661, %v3653, %v3658
    %v3663 = vrsqrt.pop %v3650
    %v3664 = vmul.f32 %v3663, %v3650
    %v3665 = vmul.f32 %v3664, %v3663
    %v3666 = vmul.f32 0.5, %v3665
    %v3667 = vsub.f32 1.5, %v3666
    %v3668 = vmul.f32 %v3663, %v3667
    %vm3669 = vweird.f32 %v3650
    %vm3670 = vweird.f32 %v3663
    %vm3671 = vmor %vm3669, %vm3670
    %v3672 = vsel %vm3671, %v3663, %v3668
    %v3673 = vrsqrt.pop %v3651
    %v3674 = vmul.f32 %v3673, %v3651
    %v3675 = vmul.f32 %v3674, %v3673
    %v3676 = vmul.f32 0.5, %v3675
    %v3677 = vsub.f32 1.5, %v3676
    %v3678 = vmul.f32 %v3673, %v3677
    %vm3679 = vweird.f32 %v3651
    %vm3680 = vweird.f32 %v3673
    %vm3681 = vmor %vm3679, %vm3680
    %v3682 = vsel %vm3681, %v3673, %v3678
    %v3683 = vrsqrt.pop %v3652
    %v3684 = vmul.f32 %v3683, %v3652
    %v3685 = vmul.f32 %v3684, %v3683
    %v3686 = vmul.f32 0.5, %v3685
    %v3687 = vsub.f32 1.5, %v3686
    %v3688 = vmul.f32 %v3683, %v3687
    %vm3689 = vweird.f32 %v3652
    %vm3690 = vweird.f32 %v3683
    %vm3691 = vmor %vm3689, %vm3690
    %v3692 = vsel %vm3691, %v3683, %v3688
    %v3693 = vmul.f32 %v3625, %v3662
    %v3694 = vmul.f32 %v3626, %v3672
    %v3695 = vmul.f32 %v3627, %v3682
    %v3696 = vmul.f32 %v3628, %v3692
    %v3697 = vperm.slane %v2377, 2
    %v3698 = vmul.f32 %v3693, %v3697
    %v3699 = vmul.f32 %v3694, %v3697
    %v3700 = vmul.f32 %v3695, %v3697
    %v3701 = vmul.f32 %v3696, %v3697
    %v3702 = vperm.slane %v2377, 3
    %v3703 = vadd.f32 %v3698, %v3702
    %v3704 = vadd.f32 %v3699, %v3702
    %v3705 = vadd.f32 %v3700, %v3702
    %v3706 = vadd.f32 %v3701, %v3702
    %s3707 = scalar_lea.vmem %s8, 32
    %v3708 = vld [vmem:[%s3707] sm:$0xff]
    %v3709 = vld [vmem:[%s3707 + $0x8] sm:$0xff]
    %v3710 = vld [vmem:[%s3707 + $0x10] sm:$0xff]
    %v3711 = vld [vmem:[%s3707 + $0x18] sm:$0xff]
    %s3712 = scalar_lea.vmem %s9, 1
    %v3713 = vld [vmem:[%s3712] sm:$0x1]
    %v3715 = vperm.slane %v3713, 0
    %v3718 = vsel %vm142, %v3703, 0
    %v3721 = vsel %vm142, %v3704, 0
    %v3724 = vsel %vm142, %v3705, 0
    %v3727 = vsel %vm142, %v3706, 0
    %3729 = vmatpush.msra.mxu0 0.0
    %3730 = vmatpush.msra.mxu0 0.0
    %3731 = vmatpush.msra.mxu0 0.0
    %3732 = vmatpush.msra.mxu0 0.0
    %3733 = vmatpush.msra.mxu0 0.0
    %3734 = vmatpush.msra.mxu0 0.0
    %3735 = vmatpush.msra.mxu0 0.0
    %3736 = vmatpush.msra.mxu0 0.0
    %3737 = vmatpush.msra.mxu0 0.0
    %3738 = vmatpush.msra.mxu0 0.0
    %3739 = vmatpush.msra.mxu0 0.0
    %3740 = vmatpush.msra.mxu0 0.0
    %3741 = vmatpush.msra.mxu0 %v3711
    %3742 = vmatpush.msra.mxu0 %v3710
    %3743 = vmatpush.msra.mxu0 %v3709
    %3744 = vmatpush.msra.mxu0 %v3708
    %3745 = vmatmul.f32.gmra.mxu0 %v3718
    %v3746 = vpop.f32.mrf.mxu0
    %v3747 = vadd.f32 %v3715, %v3746
    %3748 = vmatmul.f32.gmra.mxu0 %v3721
    %v3749 = vpop.f32.mrf.mxu0
    %v3750 = vadd.f32 %v3715, %v3749
    %3751 = vmatmul.f32.gmra.mxu0 %v3724
    %v3752 = vpop.f32.mrf.mxu0
    %v3753 = vadd.f32 %v3715, %v3752
    %3754 = vmatmul.f32.gmra.mxu0 %v3727
    %v3755 = vpop.f32.mrf.mxu0
    %v3756 = vadd.f32 %v3715, %v3755
    %3757 = vdwg.mxu0
    %v3758 = vmul.f32 %v3747, 0.5
    %v3759 = vmul.f32 %v3750, 0.5
    %v3760 = vmul.f32 %v3753, 0.5
    %v3761 = vmul.f32 %v3756, 0.5
    %v3762 = vmul.f32 %v3747, 0.70710677
    %v3763 = vmul.f32 %v3750, 0.70710677
    %v3764 = vmul.f32 %v3753, 0.70710677
    %v3765 = vmul.f32 %v3756, 0.70710677
    %v3766 = vmul.f32 %v3762, %v3762
    %v3767 = vmin.f32 16.0, %v3766
    %v3768 = vmul.f32 %v3767, 2.1237322e-06
    %v3769 = vadd.f32 %v3768, 0.00028619796
    %v3770 = vmul.f32 %v3767, %v3769
    %v3771 = vadd.f32 %v3770, 0.0036580483
    %v3772 = vmul.f32 %v3767, %v3771
    %v3773 = vadd.f32 %v3772, 0.05243302
    %v3774 = vmul.f32 %v3767, %v3773
    %v3775 = vadd.f32 %v3774, 0.18741608
    %v3776 = vmul.f32 %v3767, %v3775
    %v3777 = vadd.f32 %v3776, 1.1283791
    %v3778 = vmul.f32 %v3762, %v3777
    %v3779 = vmul.f32 %v3767, 3.8918573e-05
    %v3780 = vadd.f32 %v3779, 0.001143296
    %v3781 = vmul.f32 %v3767, %v3780
    %v3782 = vadd.f32 %v3781, 0.014752088
    %v3783 = vmul.f32 %v3767, %v3782
    %v3784 = vadd.f32 %v3783, 0.112945676
    %v3785 = vmul.f32 %v3767, %v3784
    %v3786 = vadd.f32 %v3785, 0.4994258
    %v3787 = vmul.f32 %v3767, %v3786
    %v3788 = vadd.f32 %v3787, 1.0
    %v3789 = vrcp.pop %v3788
    %v3790 = vmul.f32 %v3788, %v3789
    %v3791 = vsub.f32 1.0, %v3790
    %v3792 = vmul.f32 %v3789, %v3791
    %v3793 = vadd.f32 %v3789, %v3792
    %vm3794 = vweird.f32 %v3788
    %vm3795 = vweird.f32 %v3789
    %vm3796 = vmor %vm3794, %vm3795
    %v3797 = vsel %vm3796, %v3789, %v3793
    %v3798 = vand.u32 2147483647, %v3788
    %vm3799 = vcmp.eq.f32.partialorder %v3798, 8.507059e+37
    %v3800 = vand.u32 %v3788, 2147483648
    %v3801 = vor.u32 1.1754944e-38, %v3800
    %v3802 = vsel %vm3799, %v3801, %v3797
    %v3803 = vmul.f32 %v3778, %v3802
    %v3804 = vmin.f32 %v3803, 1.0
    %v3805 = vmax.f32 %v3804, -1.0
    %v3806 = vmul.f32 %v3763, %v3763
    %v3807 = vmin.f32 16.0, %v3806
    %v3808 = vmul.f32 %v3807, 2.1237322e-06
    %v3809 = vadd.f32 %v3808, 0.00028619796
    %v3810 = vmul.f32 %v3807, %v3809
    %v3811 = vadd.f32 %v3810, 0.0036580483
    %v3812 = vmul.f32 %v3807, %v3811
    %v3813 = vadd.f32 %v3812, 0.05243302
    %v3814 = vmul.f32 %v3807, %v3813
    %v3815 = vadd.f32 %v3814, 0.18741608
    %v3816 = vmul.f32 %v3807, %v3815
    %v3817 = vadd.f32 %v3816, 1.1283791
    %v3818 = vmul.f32 %v3763, %v3817
    %v3819 = vmul.f32 %v3807, 3.8918573e-05
    %v3820 = vadd.f32 %v3819, 0.001143296
    %v3821 = vmul.f32 %v3807, %v3820
    %v3822 = vadd.f32 %v3821, 0.014752088
    %v3823 = vmul.f32 %v3807, %v3822
    %v3824 = vadd.f32 %v3823, 0.112945676
    %v3825 = vmul.f32 %v3807, %v3824
    %v3826 = vadd.f32 %v3825, 0.4994258
    %v3827 = vmul.f32 %v3807, %v3826
    %v3828 = vadd.f32 %v3827, 1.0
    %v3829 = vrcp.pop %v3828
    %v3830 = vmul.f32 %v3828, %v3829
    %v3831 = vsub.f32 1.0, %v3830
    %v3832 = vmul.f32 %v3829, %v3831
    %v3833 = vadd.f32 %v3829, %v3832
    %vm3834 = vweird.f32 %v3828
    %vm3835 = vweird.f32 %v3829
    %vm3836 = vmor %vm3834, %vm3835
    %v3837 = vsel %vm3836, %v3829, %v3833
    %v3838 = vand.u32 2147483647, %v3828
    %vm3839 = vcmp.eq.f32.partialorder %v3838, 8.507059e+37
    %v3840 = vand.u32 %v3828, 2147483648
    %v3841 = vor.u32 1.1754944e-38, %v3840
    %v3842 = vsel %vm3839, %v3841, %v3837
    %v3843 = vmul.f32 %v3818, %v3842
    %v3844 = vmin.f32 %v3843, 1.0
    %v3845 = vmax.f32 %v3844, -1.0
    %v3846 = vmul.f32 %v3764, %v3764
    %v3847 = vmin.f32 16.0, %v3846
    %v3848 = vmul.f32 %v3847, 2.1237322e-06
    %v3849 = vadd.f32 %v3848, 0.00028619796
    %v3850 = vmul.f32 %v3847, %v3849
    %v3851 = vadd.f32 %v3850, 0.0036580483
    %v3852 = vmul.f32 %v3847, %v3851
    %v3853 = vadd.f32 %v3852, 0.05243302
    %v3854 = vmul.f32 %v3847, %v3853
    %v3855 = vadd.f32 %v3854, 0.18741608
    %v3856 = vmul.f32 %v3847, %v3855
    %v3857 = vadd.f32 %v3856, 1.1283791
    %v3858 = vmul.f32 %v3764, %v3857
    %v3859 = vmul.f32 %v3847, 3.8918573e-05
    %v3860 = vadd.f32 %v3859, 0.001143296
    %v3861 = vmul.f32 %v3847, %v3860
    %v3862 = vadd.f32 %v3861, 0.014752088
    %v3863 = vmul.f32 %v3847, %v3862
    %v3864 = vadd.f32 %v3863, 0.112945676
    %v3865 = vmul.f32 %v3847, %v3864
    %v3866 = vadd.f32 %v3865, 0.4994258
    %v3867 = vmul.f32 %v3847, %v3866
    %v3868 = vadd.f32 %v3867, 1.0
    %v3869 = vrcp.pop %v3868
    %v3870 = vmul.f32 %v3868, %v3869
    %v3871 = vsub.f32 1.0, %v3870
    %v3872 = vmul.f32 %v3869, %v3871
    %v3873 = vadd.f32 %v3869, %v3872
    %vm3874 = vweird.f32 %v3868
    %vm3875 = vweird.f32 %v3869
    %vm3876 = vmor %vm3874, %vm3875
    %v3877 = vsel %vm3876, %v3869, %v3873
    %v3878 = vand.u32 2147483647, %v3868
    %vm3879 = vcmp.eq.f32.partialorder %v3878, 8.507059e+37
    %v3880 = vand.u32 %v3868, 2147483648
    %v3881 = vor.u32 1.1754944e-38, %v3880
    %v3882 = vsel %vm3879, %v3881, %v3877
    %v3883 = vmul.f32 %v3858, %v3882
    %v3884 = vmin.f32 %v3883, 1.0
    %v3885 = vmax.f32 %v3884, -1.0
    %v3886 = vmul.f32 %v3765, %v3765
    %v3887 = vmin.f32 16.0, %v3886
    %v3888 = vmul.f32 %v3887, 2.1237322e-06
    %v3889 = vadd.f32 %v3888, 0.00028619796
    %v3890 = vmul.f32 %v3887, %v3889
    %v3891 = vadd.f32 %v3890, 0.0036580483
    %v3892 = vmul.f32 %v3887, %v3891
    %v3893 = vadd.f32 %v3892, 0.05243302
    %v3894 = vmul.f32 %v3887, %v3893
    %v3895 = vadd.f32 %v3894, 0.18741608
    %v3896 = vmul.f32 %v3887, %v3895
    %v3897 = vadd.f32 %v3896, 1.1283791
    %v3898 = vmul.f32 %v3765, %v3897
    %v3899 = vmul.f32 %v3887, 3.8918573e-05
    %v3900 = vadd.f32 %v3899, 0.001143296
    %v3901 = vmul.f32 %v3887, %v3900
    %v3902 = vadd.f32 %v3901, 0.014752088
    %v3903 = vmul.f32 %v3887, %v3902
    %v3904 = vadd.f32 %v3903, 0.112945676
    %v3905 = vmul.f32 %v3887, %v3904
    %v3906 = vadd.f32 %v3905, 0.4994258
    %v3907 = vmul.f32 %v3887, %v3906
    %v3908 = vadd.f32 %v3907, 1.0
    %v3909 = vrcp.pop %v3908
    %v3910 = vmul.f32 %v3908, %v3909
    %v3911 = vsub.f32 1.0, %v3910
    %v3912 = vmul.f32 %v3909, %v3911
    %v3913 = vadd.f32 %v3909, %v3912
    %vm3914 = vweird.f32 %v3908
    %vm3915 = vweird.f32 %v3909
    %vm3916 = vmor %vm3914, %vm3915
    %v3917 = vsel %vm3916, %v3909, %v3913
    %v3918 = vand.u32 2147483647, %v3908
    %vm3919 = vcmp.eq.f32.partialorder %v3918, 8.507059e+37
    %v3920 = vand.u32 %v3908, 2147483648
    %v3921 = vor.u32 1.1754944e-38, %v3920
    %v3922 = vsel %vm3919, %v3921, %v3917
    %v3923 = vmul.f32 %v3898, %v3922
    %v3924 = vmin.f32 %v3923, 1.0
    %v3925 = vmax.f32 %v3924, -1.0
    %v3926 = vadd.f32 %v3805, 1.0
    %v3927 = vadd.f32 %v3845, 1.0
    %v3928 = vadd.f32 %v3885, 1.0
    %v3929 = vadd.f32 %v3925, 1.0
    %v3930 = vmul.f32 %v3758, %v3926
    %v3931 = vmul.f32 %v3759, %v3927
    %v3932 = vmul.f32 %v3760, %v3928
    %v3933 = vmul.f32 %v3761, %v3929
    %s3934 = scalar_lea.vmem %s10, 64
    %v3935 = vld [vmem:[%s3934] sm:$0xff]
    %v3936 = vld [vmem:[%s3934 + $0x8] sm:$0xff]
    %v3937 = vld [vmem:[%s3934 + $0x10] sm:$0xff]
    %v3938 = vld [vmem:[%s3934 + $0x18] sm:$0xff]
    %v3939 = vld [vmem:[%s3934 + $0x20] sm:$0xff]
    %v3940 = vld [vmem:[%s3934 + $0x28] sm:$0xff]
    %v3941 = vld [vmem:[%s3934 + $0x30] sm:$0xff]
    %v3942 = vld [vmem:[%s3934 + $0x38] sm:$0xff]
    %v3944 = vsel %vm2325, %v3930, 0
    %v3947 = vsel %vm2325, %v3931, 0
    %v3950 = vsel %vm2325, %v3932, 0
    %v3953 = vsel %vm2325, %v3933, 0
    %3955 = vmatpush.msra.mxu0 0.0
    %3956 = vmatpush.msra.mxu0 0.0
    %3957 = vmatpush.msra.mxu0 0.0
    %3958 = vmatpush.msra.mxu0 0.0
    %3959 = vmatpush.msra.mxu0 0.0
    %3960 = vmatpush.msra.mxu0 0.0
    %3961 = vmatpush.msra.mxu0 0.0
    %3962 = vmatpush.msra.mxu0 0.0
    %3963 = vmatpush.msra.mxu0 %v3942
    %3964 = vmatpush.msra.mxu0 %v3941
    %3965 = vmatpush.msra.mxu0 %v3940
    %3966 = vmatpush.msra.mxu0 %v3939
    %3967 = vmatpush.msra.mxu0 %v3938
    %3968 = vmatpush.msra.mxu0 %v3937
    %3969 = vmatpush.msra.mxu0 %v3936
    %3970 = vmatpush.msra.mxu0 %v3935
    %3971 = vmatmul.f32.gmra.mxu0 %v3944
    %v3972 = vpop.f32.mrf.mxu0
    %v3973 = vadd.f32 0.0, %v3972
    %3974 = vmatmul.f32.gmra.mxu0 %v3947
    %v3975 = vpop.f32.mrf.mxu0
    %v3976 = vadd.f32 0.0, %v3975
    %3977 = vmatmul.f32.gmra.mxu0 %v3950
    %v3978 = vpop.f32.mrf.mxu0
    %v3979 = vadd.f32 0.0, %v3978
    %3980 = vmatmul.f32.gmra.mxu0 %v3953
    %v3981 = vpop.f32.mrf.mxu0
    %v3982 = vadd.f32 0.0, %v3981
    %3983 = vdwg.mxu0
    %v3984 = vadd.f32 %v3605, %v3973
    %v3985 = vadd.f32 %v3606, %v3976
    %v3986 = vadd.f32 %v3607, %v3979
    %v3987 = vadd.f32 %v3608, %v3982
    %v3988 = vperm.slane %v2377, 5
    %v3989 = vadd.f32 %v3984, %v3988
    %v3990 = vadd.f32 %v3985, %v3988
    %v3991 = vadd.f32 %v3986, %v3988
    %v3992 = vadd.f32 %v3987, %v3988
    %v3993 = vsel %vm142, %v3989, 0.0
    %3994 = vadd.xlane.f32.xlu0 %v3993
    %v3995 = vpop.xlane.xlu0 %3994
    %v3996 = vsel %vm142, %v3990, 0.0
    %3997 = vadd.xlane.f32.xlu0 %v3996
    %v3998 = vpop.xlane.xlu0 %3997
    %v3999 = vsel %vm142, %v3991, 0.0
    %4000 = vadd.xlane.f32.xlu0 %v3999
    %v4001 = vpop.xlane.xlu0 %4000
    %v4002 = vsel %vm142, %v3992, 0.0
    %4003 = vadd.xlane.f32.xlu0 %v4002
    %v4004 = vpop.xlane.xlu0 %4003
    %v4005 = vmul.f32 %v3995, %v774
    %v4006 = vmul.f32 %v3998, %v774
    %v4007 = vmul.f32 %v4001, %v774
    %v4008 = vmul.f32 %v4004, %v774
    %v4009 = vsub.f32 %v3989, %v4005
    %v4010 = vsub.f32 %v3990, %v4006
    %v4011 = vsub.f32 %v3991, %v4007
    %v4012 = vsub.f32 %v3992, %v4008
    %v4013 = vmul.f32 %v4009, %v4009
    %v4014 = vmul.f32 %v4010, %v4010
    %v4015 = vmul.f32 %v4011, %v4011
    %v4016 = vmul.f32 %v4012, %v4012
    %v4017 = vsel %vm142, %v4013, 0.0
    %4018 = vadd.xlane.f32.xlu0 %v4017
    %v4019 = vpop.xlane.xlu0 %4018
    %v4020 = vsel %vm142, %v4014, 0.0
    %4021 = vadd.xlane.f32.xlu0 %v4020
    %v4022 = vpop.xlane.xlu0 %4021
    %v4023 = vsel %vm142, %v4015, 0.0
    %4024 = vadd.xlane.f32.xlu0 %v4023
    %v4025 = vpop.xlane.xlu0 %4024
    %v4026 = vsel %vm142, %v4016, 0.0
    %4027 = vadd.xlane.f32.xlu0 %v4026
    %v4028 = vpop.xlane.xlu0 %4027
    %v4029 = vmul.f32 %v4019, %v774
    %v4030 = vmul.f32 %v4022, %v774
    %v4031 = vmul.f32 %v4025, %v774
    %v4032 = vmul.f32 %v4028, %v774
    %v4033 = vadd.f32 %v4029, 1e-05
    %v4034 = vadd.f32 %v4030, 1e-05
    %v4035 = vadd.f32 %v4031, 1e-05
    %v4036 = vadd.f32 %v4032, 1e-05
    %v4037 = vrsqrt.pop %v4033
    %v4038 = vmul.f32 %v4037, %v4033
    %v4039 = vmul.f32 %v4038, %v4037
    %v4040 = vmul.f32 0.5, %v4039
    %v4041 = vsub.f32 1.5, %v4040
    %v4042 = vmul.f32 %v4037, %v4041
    %vm4043 = vweird.f32 %v4033
    %vm4044 = vweird.f32 %v4037
    %vm4045 = vmor %vm4043, %vm4044
    %v4046 = vsel %vm4045, %v4037, %v4042
    %v4047 = vrsqrt.pop %v4034
    %v4048 = vmul.f32 %v4047, %v4034
    %v4049 = vmul.f32 %v4048, %v4047
    %v4050 = vmul.f32 0.5, %v4049
    %v4051 = vsub.f32 1.5, %v4050
    %v4052 = vmul.f32 %v4047, %v4051
    %vm4053 = vweird.f32 %v4034
    %vm4054 = vweird.f32 %v4047
    %vm4055 = vmor %vm4053, %vm4054
    %v4056 = vsel %vm4055, %v4047, %v4052
    %v4057 = vrsqrt.pop %v4035
    %v4058 = vmul.f32 %v4057, %v4035
    %v4059 = vmul.f32 %v4058, %v4057
    %v4060 = vmul.f32 0.5, %v4059
    %v4061 = vsub.f32 1.5, %v4060
    %v4062 = vmul.f32 %v4057, %v4061
    %vm4063 = vweird.f32 %v4035
    %vm4064 = vweird.f32 %v4057
    %vm4065 = vmor %vm4063, %vm4064
    %v4066 = vsel %vm4065, %v4057, %v4062
    %v4067 = vrsqrt.pop %v4036
    %v4068 = vmul.f32 %v4067, %v4036
    %v4069 = vmul.f32 %v4068, %v4067
    %v4070 = vmul.f32 0.5, %v4069
    %v4071 = vsub.f32 1.5, %v4070
    %v4072 = vmul.f32 %v4067, %v4071
    %vm4073 = vweird.f32 %v4036
    %vm4074 = vweird.f32 %v4067
    %vm4075 = vmor %vm4073, %vm4074
    %v4076 = vsel %vm4075, %v4067, %v4072
    %v4077 = vmul.f32 %v4009, %v4046
    %v4078 = vmul.f32 %v4010, %v4056
    %v4079 = vmul.f32 %v4011, %v4066
    %v4080 = vmul.f32 %v4012, %v4076
    %v4081 = vperm.slane %v92, 2
    %v4082 = vmul.f32 %v4077, %v4081
    %v4083 = vmul.f32 %v4078, %v4081
    %v4084 = vmul.f32 %v4079, %v4081
    %v4085 = vmul.f32 %v4080, %v4081
    %v4086 = vperm.slane %v92, 3
    %v4087 = vadd.f32 %v4082, %v4086
    %v4088 = vadd.f32 %v4083, %v4086
    %v4089 = vadd.f32 %v4084, %v4086
    %v4090 = vadd.f32 %v4085, %v4086
    %v4091 = vld [vmem:[#allocation8] sm:$0xff]
    %v4092 = vld [vmem:[#allocation8 + $0x8] sm:$0xff]
    %v4093 = vld [vmem:[#allocation8 + $0x10] sm:$0xff]
    %v4094 = vld [vmem:[#allocation8 + $0x18] sm:$0xff]
    %v4095 = vld [vmem:[%s12] sm:$0x1]
    %v4097 = vperm.slane %v4095, 0
    %v4100 = vsel %vm142, %v4087, 0
    %v4103 = vsel %vm142, %v4088, 0
    %v4106 = vsel %vm142, %v4089, 0
    %v4109 = vsel %vm142, %v4090, 0
    %4111 = vmatpush.msra.mxu0 0.0
    %4112 = vmatpush.msra.mxu0 0.0
    %4113 = vmatpush.msra.mxu0 0.0
    %4114 = vmatpush.msra.mxu0 0.0
    %4115 = vmatpush.msra.mxu0 0.0
    %4116 = vmatpush.msra.mxu0 0.0
    %4117 = vmatpush.msra.mxu0 0.0
    %4118 = vmatpush.msra.mxu0 0.0
    %4119 = vmatpush.msra.mxu0 0.0
    %4120 = vmatpush.msra.mxu0 0.0
    %4121 = vmatpush.msra.mxu0 0.0
    %4122 = vmatpush.msra.mxu0 0.0
    %4123 = vmatpush.msra.mxu0 %v4094
    %4124 = vmatpush.msra.mxu0 %v4093
    %4125 = vmatpush.msra.mxu0 %v4092
    %4126 = vmatpush.msra.mxu0 %v4091
    %4127 = vmatmul.f32.gmra.mxu0 %v4100
    %v4128 = vpop.f32.mrf.mxu0
    %v4129 = vadd.f32 %v4097, %v4128
    %4130 = vmatmul.f32.gmra.mxu0 %v4103
    %v4131 = vpop.f32.mrf.mxu0
    %v4132 = vadd.f32 %v4097, %v4131
    %4133 = vmatmul.f32.gmra.mxu0 %v4106
    %v4134 = vpop.f32.mrf.mxu0
    %v4135 = vadd.f32 %v4097, %v4134
    %4136 = vmatmul.f32.gmra.mxu0 %v4109
    %v4137 = vpop.f32.mrf.mxu0
    %v4138 = vadd.f32 %v4097, %v4137
    %4139 = vdwg.mxu0
    %4140 = vst.msk [vmem:[#allocation9] sm:$0xff] %vm142, %v4129
    %4141 = vst.msk [vmem:[#allocation9 + $0x8] sm:$0xff] %vm142, %v4132
    %4142 = vst.msk [vmem:[#allocation9 + $0x10] sm:$0xff] %vm142, %v4135
    %4143 = vst.msk [vmem:[#allocation9 + $0x18] sm:$0xff] %vm142, %v4138
    // Predicated region
    $region66: #{audio_encoder_forward.1} parent=1 // pred_check
      _
    $region67: #{audio_encoder_forward.1} parent=1 // pred_check_branch
      %4145 = sbr.rel (0) target = $region69
    $region68: #{audio_encoder_forward.1} parent=1 // pred_region
      %4147 = vsyncadd [#allocation5], 0
      %s4148 = sshll.u32 [#allocation9], 4
      %s4149 = int_to_ptr.vmem [resolvable:$true] %s4148
      %s4150 = sshll.u32 %s13, 4
      %s4151 = int_to_ptr.hbm [resolvable:$true] %s4150
      %4156 = dma.vmem_to_hbm [thread:$0]  %s4149, 512, %s4151, [#allocation5], 128, 128, 8
    $region69: #{audio_encoder_forward.1} parent=1 // pred_fallthru
      _
    // Predicated region
    $region70: #{audio_encoder_forward.1} parent=1 // pred_check
      _
    $region71: #{audio_encoder_forward.1} parent=1 // pred_check_branch
      %4158 = sbr.rel (0) target = $region73
    $region72: #{audio_encoder_forward.1} parent=1 // pred_region
      %4160 = dma.done [#allocation5], 512
    $region73: #{audio_encoder_forward.1} parent=1 // pred_fallthru
      _
    %4161 = vsyncpa [#allocation4], 1
    %4162 = vsyncpa [#allocation7], 1
    %4163 = vsyncpa [#allocation5], 1

</llo_original>
